<compile_context>
chip_gen: v7x
topology: tpu7x:2x2x1
jax: 0.10.0
libtpu: 0.0.40
codegen_flags: <defaults>
</compile_context>

<pallas_src>
import functools

import jax
import jax.numpy as jnp
from jax import lax
from jax.experimental import pallas as pl
from jax.experimental.pallas import tpu as pltpu

N_FEATURES = 20
GROUP = 128                      # samples packed per row (one lane-group of 20 each)
ROW_W = GROUP * N_FEATURES       # 2560 lanes per packed row (lane-dense, 10 KiB f32)


def _logreg_kernel(x_ref, w_ref, b_ref, o_ref, *, dot_dtype):
    # x_ref: (tb, ROW_W)  packed samples (GROUP samples per row, 20 lanes each)
    # w_ref: (1, ROW_W)   weight tiled GROUP times along lanes (fetched once)
    # b_ref: (1, 1)       bias scalar in SMEM
    # o_ref: (tb, GROUP)  lane-dense sigmoid outputs
    xw = x_ref[...] * w_ref[...]                      # VPU, sublane broadcast

    # 0/1 selection matrix summing each group of N_FEATURES lanes into one
    # output lane: S[i, j] = 1 iff j*F <= i < (j+1)*F.  Rebuilt from iotas
    # every step (a few hundred cycles, hidden under the x-tile DMA); no
    # cross-step state, so no init guard is needed under megacore sharding.
    i_idx = lax.broadcasted_iota(jnp.int32, (ROW_W, GROUP), 0)
    j_lo = lax.broadcasted_iota(jnp.int32, (ROW_W, GROUP), 1) * N_FEATURES
    sel = jnp.logical_and(i_idx >= j_lo, i_idx < j_lo + N_FEATURES)
    s_mat = sel.astype(dot_dtype)

    logits = jnp.dot(xw.astype(dot_dtype), s_mat,
                     preferred_element_type=jnp.float32)
    logits = logits + b_ref[0, 0]
    # sigmoid(x) = 0.5 * (tanh(x/2) + 1): tanh runs on the EUP, no VALU divide.
    o_ref[...] = (0.5 * (jnp.tanh(0.5 * logits) + 1.0)).astype(o_ref.dtype)


def logistic_regression(x, weight, bias, *, block_rows=None, dot_dtype=None):
    """sigmoid(x @ weight.T + bias).

    x: (B, 20), weight: (1, 20) (torch nn.Linear layout), bias: (1,).
    Returns (B, 1) float32.
    dot_dtype: None / jnp.float32 for exact f32 (default); jnp.bfloat16 trades
      ~1e-3 relative error for a much cheaper MXU reduction (useful on v5e).
    """
    B, n_feat = x.shape
    assert n_feat == N_FEATURES, f"expected {N_FEATURES} features, got {n_feat}"
    dtype = x.dtype
    itemsize = jnp.dtype(dtype).itemsize
    if dot_dtype is None:
        dot_dtype = jnp.float32

    # ---- lane-dense repack: pad only to the next multiple of GROUP ---------
    # (jnp.pad copies x, but only when B % GROUP != 0; no padding to a tb
    #  multiple — the last grid block is allowed to be partial.)
    n_rows = pl.cdiv(B, GROUP)
    b_pad = n_rows * GROUP
    if b_pad != B:
        x = jnp.pad(x, ((0, b_pad - B), (0, 0)))
    x_packed = x.reshape(n_rows, ROW_W)             # free row-major view

    # Weight tiled along lanes: w_lane[0, j*F + f] = w[f]   (10 KiB total).
    w_lane = jnp.tile(weight.reshape(1, N_FEATURES).astype(dtype), (1, GROUP))
    b_smem = bias.reshape(1, 1).astype(jnp.float32)

    # ---- generation-aware tile size & VMEM limit ----------------------------
    row_bytes = ROW_W * itemsize
    out_row_bytes = GROUP * 4
    try:
        info = pltpu.get_tpu_info()
        vmem_cap = int(getattr(info, "vmem_capacity_bytes", 64 << 20))
    except Exception:
        vmem_cap = 64 << 20                          # conservative (v7x-sized)
    budget = vmem_cap // 3
    # per packed row: double-buffered x + xw temp + double-buffered out
    tb_cap = max(8, budget // (3 * row_bytes + 2 * out_row_bytes))

    tb = 1024 if block_rows is None else block_rows
    tb = min(tb, tb_cap)
    if n_rows >= 32:
        tb = min(tb, pl.cdiv(n_rows, 4))   # >= 4 steps -> >= 2 per v7x core
    tb = min(tb, n_rows)
    if tb < n_rows:
        tb = max(8, (tb // 8) * 8)         # (8, 128) sublane tiling constraint
    grid = (pl.cdiv(n_rows, tb),)          # last block may be partial

    vmem_limit = (3 * tb * row_bytes             # x double buffer + xw temp
                  + 2 * tb * out_row_bytes       # output double buffer
                  + ROW_W * GROUP * 4            # selection matrix
                  + 2 * ROW_W * itemsize         # lane-tiled weight
                  + (8 << 20))                   # iotas / logits / headroom
    vmem_limit = int(min(max(vmem_limit, 16 << 20), int(0.9 * vmem_cap)))

    kernel = functools.partial(_logreg_kernel, dot_dtype=dot_dtype)

    out_packed = pl.pallas_call(
        kernel,
        out_shape=jax.ShapeDtypeStruct((n_rows, GROUP), jnp.float32),
        grid_spec=pltpu.PrefetchScalarGridSpec(
            num_scalar_prefetch=0,
            grid=grid,
            in_specs=[
                pl.BlockSpec((tb, ROW_W), lambda i: (i, 0)),
                pl.BlockSpec((1, ROW_W), lambda i: (0, 0)),      # fetched once
                pl.BlockSpec(memory_space=pltpu.MemorySpace.SMEM),
            ],
            out_specs=pl.BlockSpec((tb, GROUP), lambda i: (i, 0)),
        ),
        compiler_params=pltpu.CompilerParams(
            dimension_semantics=("parallel",),
            vmem_limit_bytes=vmem_limit,
        ),
        cost_estimate=pl.CostEstimate(
            flops=2 * n_rows * ROW_W * GROUP,
            transcendentals=b_pad,
            bytes_accessed=b_pad * N_FEATURES * itemsize + b_pad * 4,
        ),
    )(x_packed, w_lane, b_smem)

    # (n_rows, GROUP) -> (b_pad, 1); rows past B are padding and are dropped.
    return out_packed.reshape(b_pad, 1)[:B]


if __name__ == "__main__":
    key = jax.random.PRNGKey(0)
    kx, kw, kb = jax.random.split(key, 3)

    # batch not a multiple of 128 -> exercises the (minimal) pad path; with
    # block_rows=16 the 24 packed rows give a 2-step grid whose last block is
    # partial (masked writeback path).
    batch = 3000
    x = jax.random.normal(kx, (batch, N_FEATURES), dtype=jnp.float32)

    # Deterministic params mirroring torch.nn.Linear's uniform(-1/sqrt(F), 1/sqrt(F)).
    bound = 1.0 / (N_FEATURES ** 0.5)
    weight = jax.random.uniform(kw, (1, N_FEATURES), minval=-bound, maxval=bound,
                                dtype=jnp.float32)
    bias = jax.random.uniform(kb, (1,), minval=-bound, maxval=bound,
                              dtype=jnp.float32)

    # Reference computed without a matmul (avoids XLA's default matmul
    # precision ambiguity on TPU): sigmoid(sum_f x*w + b).
    ref = jax.nn.sigmoid(jnp.sum(x * weight, axis=1, keepdims=True) + bias)

    # 1) exact f32 path, multi-step grid with a partial last block.
    out = jax.block_until_ready(
        logistic_regression(x, weight, bias, block_rows=16))
    assert out.shape == (batch, 1)
    assert jnp.allclose(out, ref, atol=1e-5, rtol=1e-5)

    # 2) exact f32 path, batch a multiple of 128 (no pad copy), auto tile size
    #    -> single grid step with tb == n_rows.
    b2 = 2560
    out2 = jax.block_until_ready(logistic_regression(x[:b2], weight, bias))
    assert jnp.allclose(out2, ref[:b2], atol=1e-5, rtol=1e-5)

    # 3) optional bf16 MXU reduction (v5e-friendly); tolerance loosened
    #    deliberately as the review notes.
    out3 = jax.block_until_ready(
        logistic_regression(x, weight, bias, dot_dtype=jnp.bfloat16))
    assert jnp.allclose(out3, ref, atol=5e-3, rtol=5e-3)

    print("KERNEL_OK")
</pallas_src>

<mosaic_0001>
module attributes {stable_mosaic.version = 11 : i64} {
  func.func @_logreg_kernel(%arg0: i32, %arg1: memref<16x2560xf32, #tpu.memory_space<vmem>>, %arg2: memref<1x2560xf32, #tpu.memory_space<vmem>>, %arg3: memref<1x1xf32, #tpu.memory_space<smem>>, %arg4: memref<16x128xf32, #tpu.memory_space<vmem>>) attributes {dimension_semantics = [#tpu.dimension_semantics<parallel>], iteration_bounds = array<i64: 2>, scalar_prefetch = 0 : i64, scratch_operands = 0 : i64, tpu.core_type = #tpu.core_type<tc>, window_params = [{transform_indices = @transform_0, window_bounds = array<i64: 16, 2560>}, {pipeline_mode = #tpu.pipeline_mode<synchronous>, transform_indices = @transform_1, window_bounds = array<i64: 1, 2560>}, {transform_indices = @transform_2, window_bounds = array<i64: 1, 1>}, {transform_indices = @transform_3, window_bounds = array<i64: 16, 128>}]} {
    %c0 = arith.constant 0 : index
    %c0_0 = arith.constant 0 : index
    %0 = vector.load %arg1[%c0, %c0_0] : memref<16x2560xf32, #tpu.memory_space<vmem>>, vector<16x2560xf32>
    %c0_1 = arith.constant 0 : index
    %c0_2 = arith.constant 0 : index
    %1 = vector.load %arg2[%c0_1, %c0_2] : memref<1x2560xf32, #tpu.memory_space<vmem>>, vector<1x2560xf32>
    %2 = vector.broadcast %1 : vector<1x2560xf32> to vector<16x2560xf32>
    %3 = arith.mulf %0, %2 : vector<16x2560xf32>
    %4 = tpu.iota {dimensions = array<i32: 0>} : vector<2560x128xi32>
    %5 = tpu.iota {dimensions = array<i32: 1>} : vector<2560x128xi32>
    %c20_i32 = arith.constant 20 : i32
    %6 = vector.broadcast %c20_i32 : i32 to vector<2560x128xi32>
    %7 = arith.muli %5, %6 : vector<2560x128xi32>
    %8 = arith.cmpi sge, %4, %7 : vector<2560x128xi32>
    %c20_i32_3 = arith.constant 20 : i32
    %9 = vector.broadcast %c20_i32_3 : i32 to vector<2560x128xi32>
    %10 = arith.addi %7, %9 : vector<2560x128xi32>
    %11 = arith.cmpi slt, %4, %10 : vector<2560x128xi32>
    %12 = arith.andi %8, %11 : vector<2560x128xi1>
    %13 = arith.extui %12 : vector<2560x128xi1> to vector<2560x128xi32>
    %14 = arith.sitofp %13 : vector<2560x128xi32> to vector<2560x128xf32>
    %cst = arith.constant dense<0.000000e+00> : vector<16x128xf32>
    %15 = tpu.matmul %3, %14, %cst {dimension_numbers = #tpu.dot_dimension_numbers<[1], [0], [0], [1], [0, 0, 1, 1], [], []>} : vector<16x2560xf32>, vector<2560x128xf32>, vector<16x128xf32> -> vector<16x128xf32>
    %c0_4 = arith.constant 0 : index
    %c0_5 = arith.constant 0 : index
    %16 = memref.load %arg3[%c0_4, %c0_5] : memref<1x1xf32, #tpu.memory_space<smem>>
    %17 = vector.broadcast %16 : f32 to vector<16x128xf32>
    %18 = arith.addf %15, %17 : vector<16x128xf32>
    %cst_6 = arith.constant 5.000000e-01 : f32
    %19 = vector.broadcast %cst_6 : f32 to vector<16x128xf32>
    %20 = arith.mulf %19, %18 : vector<16x128xf32>
    %21 = math.tanh %20 : vector<16x128xf32>
    %cst_7 = arith.constant 1.000000e+00 : f32
    %22 = vector.broadcast %cst_7 : f32 to vector<16x128xf32>
    %23 = arith.addf %21, %22 : vector<16x128xf32>
    %cst_8 = arith.constant 5.000000e-01 : f32
    %24 = vector.broadcast %cst_8 : f32 to vector<16x128xf32>
    %25 = arith.mulf %24, %23 : vector<16x128xf32>
    %c0_9 = arith.constant 0 : index
    %c0_10 = arith.constant 0 : index
    %26 = vector.load %arg4[%c0_9, %c0_10] : memref<16x128xf32, #tpu.memory_space<vmem>>, vector<16x128xf32>
    tpu.vector_store %arg4[%c0_9, %c0_10], %25 {strides = array<i32>} : memref<16x128xf32, #tpu.memory_space<vmem>>, vector<16x128xf32>,
    return
  }
  func.func @transform_0(%arg0: i32) -> (i32, i32) {
    %c0_i32 = arith.constant 0 : i32
    %c0_i32_0 = arith.constant 0 : i32
    return %arg0, %c0_i32 : i32, i32
  }
  func.func @transform_1(%arg0: i32) -> (i32, i32) {
    %c0_i32 = arith.constant 0 : i32
    %c0_i32_0 = arith.constant 0 : i32
    %c0_i32_1 = arith.constant 0 : i32
    return %c0_i32, %c0_i32_0 : i32, i32
  }
  func.func @transform_2(%arg0: i32) -> (i32, i32) {
    %c0_i32 = arith.constant 0 : i32
    %c0_i32_0 = arith.constant 0 : i32
    %c0_i32_1 = arith.constant 0 : i32
    return %c0_i32, %c0_i32_0 : i32, i32
  }
  func.func @transform_3(%arg0: i32) -> (i32, i32) {
    %c0_i32 = arith.constant 0 : i32
    %c0_i32_0 = arith.constant 0 : i32
    return %arg0, %c0_i32 : i32, i32
  }
}

</mosaic_0001>

<llo_original>
// kernel: tpu_custom_call.1
$region0: #{tpu_custom_call.1}
  #allocation0 [shape = 'u32[]', space=smem, size = 0x4, offset = 0x4, fixed_abs, tag = 'smem constant byte address 0x4 - core index']
  #allocation1 [shape = 'u32[144,128]{1,0:T(1,128)}', space=vmem, size = 0x12000, scoped, tag = 'internal scratch']
  #allocation2 [shape = 'f32[1,1]{1,0:T(1,128)S(6)}', space=smem, size = 0x200, scoped, tag = 'scoped memory for tpu_custom_call.1']
  %s0 = inlined_call_operand.hbm [shape: f32[24,2560], index: 0, kind: input, shape index: {}]
  %s1 = inlined_call_operand.hbm [shape: f32[1,2560], index: 1, kind: input, shape index: {}]
  %s2 = inlined_call_operand.<no memory space> [shape: f32[1,1], index: 2, kind: input, shape index: {}]
  %s3 = inlined_call_operand.hbm [shape: f32[24,128], index: 3, kind: output, shape index: {}]
  %s4 = sld [smem:[#allocation0]]
  $region53: #{tpu_custom_call.1} parent=0
    _
  %s6 = ssub.s32 1, %s4
  %s7 = scalar_select 0, %s6, %s4
  %8 = sst [smem:[#allocation2]] %s2
  $region1: #{tpu_custom_call.1} parent=0
    #allocation3 [shape = 'u8[327680]{0}', space=vmem, size = 0x50000, scoped, tag = 'input window, operand 0']
    #allocation4 [shape = 's32[2]{0}', space=sflag, size = 0x8, scoped, tag = 'scoped memory for tpu_custom_call.1']
    #allocation5 [shape = 's32[2]{0}', space=sflag, size = 0x8, scoped, tag = 'scoped memory for tpu_custom_call.1']
    #allocation6 [shape = 'u8[10240]{0}', space=vmem, size = 0x2800, scoped, tag = 'input window, operand 1, single buffered']
    #allocation7 [shape = 's32[1]{0}', space=sflag, size = 0x4, scoped, tag = 'scoped memory for tpu_custom_call.1']
    #allocation8 [shape = 'u8[16384]{0}', space=vmem, size = 0x4000, scoped, tag = 'output window, operand 0']
    %9 = vsyncpa [#allocation4], 0
    %s10 = scalar_lea.sflag [#allocation4], 1
    %11 = vsyncpa %s10, 0
    %12 = vsyncpa [#allocation7], 0
    %13 = vsyncpa [#allocation5], 0
    %s14 = scalar_lea.sflag [#allocation5], 1
    %15 = vsyncpa %s14, 0
    loop: start=0, step=1, limit=4
    $region2: #{tpu_custom_call.1} parent=1 // loop_pre_header
      _
    $region3: #{tpu_custom_call.1} parent=1 // loop_header
      %s17 = sphi 0, %s21
      %p18 = scmp.ge.s32.totalorder %s17, 4
      %s27 = sphi 0, %s29
      %s30 = sphi 0, %s27
      %s31 = sphi 0, %s30
      %s47 = sphi 0, %s31
      %s51 = sphi 0, %s51
      %s53 = sphi 0, %s51
      %s54 = sphi 0, %s53
      %s68 = sphi 0, %s54
      %s72 = sphi 0, %s72
      %s74 = sphi 0, %s72
      %s75 = sphi 0, %s74
      %s89 = sphi 0, %s75
      %s95 = sphi 0, %s97
      %s98 = sphi 0, %s95
      %s99 = sphi 0, %s98
      %s115 = sphi 0, %s99
    $region4: #{tpu_custom_call.1} parent=1 // loop_header_branch
      %20 = sbr.rel (%p18) target = $region8
    $region5: #{tpu_custom_call.1} parent=1 // loop_body
      %s22 = ssub.s32 %s17, 1
      %s23 = ssub.s32 %s17, 2
      %s24 = sadd.s32 %s17, 1
      %s25 = ssub.s32 %s17, %s24
      %p26 = scmp.eq.s32.totalorder %s25, 0
      %s28 = sadd.s32 %s27, 1
      %s29 = scalar_select %p26, %s27, %s28
      %p32 = pneg %p26
      %p33 = scmp.eq.s32.totalorder %s17, 1
      %p34 = por %p32, %p33
      %p35 = scmp.ne.s32.totalorder %s27, %s30
      %p36 = scmp.eq.s32.totalorder %s17, 0
      %p37 = por %p35, %p36
      %p38 = scmp.ne.s32.totalorder %s27, %s30
      %p39 = scmp.eq.s32.totalorder %s22, 1
      %p40 = por %p38, %p39
      %p41 = scmp.ne.s32.totalorder %s30, %s31
      %p42 = scmp.eq.s32.totalorder %s22, 0
      %p43 = por %p41, %p42
      %p44 = scmp.ne.s32.totalorder %s30, %s31
      %p45 = scmp.eq.s32.totalorder %s23, 1
      %p46 = por %p44, %p45
      %p48 = scmp.ne.s32.totalorder %s31, %s47
      %p49 = scmp.eq.s32.totalorder %s23, 0
      %p50 = por %p48, %p49
      %s52 = sadd.s32 %s51, 1
      %p55 = scmp.eq.s32.totalorder %s17, 1
      %p56 = scmp.ne.s32.totalorder %s51, %s53
      %p57 = scmp.eq.s32.totalorder %s17, 0
      %p58 = por %p56, %p57
      %p59 = scmp.ne.s32.totalorder %s51, %s53
      %p60 = scmp.eq.s32.totalorder %s22, 1
      %p61 = por %p59, %p60
      %p62 = scmp.ne.s32.totalorder %s53, %s54
      %p63 = scmp.eq.s32.totalorder %s22, 0
      %p64 = por %p62, %p63
      %p65 = scmp.ne.s32.totalorder %s53, %s54
      %p66 = scmp.eq.s32.totalorder %s23, 1
      %p67 = por %p65, %p66
      %p69 = scmp.ne.s32.totalorder %s54, %s68
      %p70 = scmp.eq.s32.totalorder %s23, 0
      %p71 = por %p69, %p70
      %s73 = sadd.s32 %s72, 1
      %p76 = scmp.eq.s32.totalorder %s17, 1
      %p77 = scmp.ne.s32.totalorder %s72, %s74
      %p78 = scmp.eq.s32.totalorder %s17, 0
      %p79 = por %p77, %p78
      %p80 = scmp.ne.s32.totalorder %s72, %s74
      %p81 = scmp.eq.s32.totalorder %s22, 1
      %p82 = por %p80, %p81
      %p83 = scmp.ne.s32.totalorder %s74, %s75
      %p84 = scmp.eq.s32.totalorder %s22, 0
      %p85 = por %p83, %p84
      %p86 = scmp.ne.s32.totalorder %s74, %s75
      %p87 = scmp.eq.s32.totalorder %s23, 1
      %p88 = por %p86, %p87
      %p90 = scmp.ne.s32.totalorder %s75, %s89
      %p91 = scmp.eq.s32.totalorder %s23, 0
      %p92 = por %p90, %p91
      %s93 = ssub.s32 %s17, %s24
      %p94 = scmp.eq.s32.totalorder %s93, 0
      %s96 = sadd.s32 %s95, 1
      %s97 = scalar_select %p94, %s95, %s96
      %p100 = pneg %p94
      %p101 = scmp.eq.s32.totalorder %s17, 1
      %p102 = por %p100, %p101
      %p103 = scmp.ne.s32.totalorder %s95, %s98
      %p104 = scmp.eq.s32.totalorder %s17, 0
      %p105 = por %p103, %p104
      %p106 = scmp.ne.s32.totalorder %s95, %s98
      %p107 = scmp.eq.s32.totalorder %s22, 1
      %p108 = por %p106, %p107
      %p109 = scmp.ne.s32.totalorder %s98, %s99
      %p110 = scmp.eq.s32.totalorder %s22, 0
      %p111 = por %p109, %p110
      %p112 = scmp.ne.s32.totalorder %s98, %s99
      %p113 = scmp.eq.s32.totalorder %s23, 1
      %p114 = por %p112, %p113
      %p116 = scmp.ne.s32.totalorder %s99, %s115
      %p117 = scmp.eq.s32.totalorder %s23, 0
      %p118 = por %p116, %p117
      %p119 = scmp.le.s32.totalorder 1, %s17
      %p120 = scmp.lt.s32.totalorder %s17, 3
      %p121 = pnand %p119, %p120
      %p122 = pneg %p121
      // Predicated region
      $region9: #{tpu_custom_call.1} parent=5 // pred_check
        _
      $region10: #{tpu_custom_call.1} parent=5 // pred_check_branch
        %124 = sbr.rel (%p121) target = $region12
      $region11: #{tpu_custom_call.1} parent=5 // pred_region
        %s125 = ssub.s32 %s17, 1
        // Predicated region
        $region13: #{tpu_custom_call.1} parent=11 // pred_check
          %p126 = pneg %p64
        $region14: #{tpu_custom_call.1} parent=11 // pred_check_branch
          %128 = sbr.rel (%p126) target = $region16
        $region15: #{tpu_custom_call.1} parent=11 // pred_region
          %s130 = ssub.s32 320, 320
          %131 = vsyncadd [#allocation7], %s130
          %s133 = sshll.u32 [#allocation6], 4
          %s134 = int_to_ptr.vmem [resolvable:$true] %s133
          %136 = dma.hbm_to_vmem [thread:$0]  %s1, 320, %s134, [#allocation7]
        $region16: #{tpu_custom_call.1} parent=11 // pred_fallthru
          _
        // Predicated region
        $region17: #{tpu_custom_call.1} parent=11 // pred_check
          %p137 = pneg %p85
        $region18: #{tpu_custom_call.1} parent=11 // pred_check_branch
          %139 = sbr.rel (%p137) target = $region20
        $region19: #{tpu_custom_call.1} parent=11 // pred_region
          _
        $region20: #{tpu_custom_call.1} parent=11 // pred_fallthru
          _
      $region12: #{tpu_custom_call.1} parent=5 // pred_fallthru
        _
      %p140 = scmp.lt.s32.totalorder %s17, 2
      // Predicated region
      $region21: #{tpu_custom_call.1} parent=5 // pred_check
        %p141 = pneg %p140
      $region22: #{tpu_custom_call.1} parent=5 // pred_check_branch
        %143 = sbr.rel (%p141) target = $region24
      $region23: #{tpu_custom_call.1} parent=5 // pred_region
        // Predicated region
        $region25: #{tpu_custom_call.1} parent=23 // pred_check
          %p144 = pneg %p37
        $region26: #{tpu_custom_call.1} parent=23 // pred_check_branch
          %146 = sbr.rel (%p144) target = $region28
        $region27: #{tpu_custom_call.1} parent=23 // pred_region
          %s147 = sand.u32 %s27, 1
          %s148 = scalar_lea.sflag [#allocation4], %s147
          %s149 = sand.u32 %s27, 1
          %s150 = smul.addr %s149, 320
          %s151 = scalar_lea.vmem [#allocation3], %s150
          %s152 = smul.u32 2, %s17
          %s153 = ssub.s32 3, %s152
          %p154 = scmp.lt.s32.totalorder %s153, 2
          %s155 = scalar_select %p154, %s153, 2
          %s156 = smul.u32 128, %s155
          %s157 = smul.u32 %s156, 20
          %s159 = ssub.s32 5120, %s157
          %160 = vsyncadd %s148, %s159
          %p161 = scmp.ne.s32.totalorder 0, %s157
          %s162 = smul.addr %s152, 20
          %s163 = smul.addr %s162, 128
          %s164 = scalar_lea.hbm %s0, %s163
          %s165 = smul.u32 160, %s155
          %s166 = sshll.u32 %s151, 4
          %s167 = int_to_ptr.vmem [resolvable:$true] %s166
          %s168 = sshll.u32 %s165, 4
          %172 = dma.hbm_to_vmem [thread:$0]  (%p161), %s164, %s168, %s167, %s148, 2560, 2560, 160
        $region28: #{tpu_custom_call.1} parent=23 // pred_fallthru
          _
      $region24: #{tpu_custom_call.1} parent=5 // pred_fallthru
        _
      %p173 = scmp.le.s32.totalorder 1, %s17
      %p174 = scmp.lt.s32.totalorder %s17, 3
      %p175 = pnand %p173, %p174
      %p176 = pneg %p175
      // Predicated region
      $region29: #{tpu_custom_call.1} parent=5 // pred_check
        _
      $region30: #{tpu_custom_call.1} parent=5 // pred_check_branch
        %178 = sbr.rel (%p175) target = $region32
      $region31: #{tpu_custom_call.1} parent=5 // pred_region
        %s179 = ssub.s32 %s17, 1
        %s180 = sand.u32 %s30, 1
        %s181 = scalar_lea.sflag [#allocation4], %s180
        %s182 = sand.u32 %s30, 1
        %s183 = smul.addr %s182, 320
        %s184 = scalar_lea.vmem [#allocation3], %s183
        // Predicated region
        $region33: #{tpu_custom_call.1} parent=31 // pred_check
          %p185 = pneg %p43
        $region34: #{tpu_custom_call.1} parent=31 // pred_check_branch
          %187 = sbr.rel (%p185) target = $region36
        $region35: #{tpu_custom_call.1} parent=31 // pred_region
          %188 = dma.done %s181, 5120
        $region36: #{tpu_custom_call.1} parent=31 // pred_fallthru
          _
        // Predicated region
        $region37: #{tpu_custom_call.1} parent=31 // pred_check
          %p189 = pneg %p64
        $region38: #{tpu_custom_call.1} parent=31 // pred_check_branch
          %191 = sbr.rel (%p189) target = $region40
        $region39: #{tpu_custom_call.1} parent=31 // pred_region
          %192 = dma.done [#allocation7], 320
        $region40: #{tpu_custom_call.1} parent=31 // pred_fallthru
          _
        %s193 = sand.u32 %s30, 1
        %s194 = scalar_lea.sflag [#allocation4], %s193
        %s195 = sand.u32 %s30, 1
        %s196 = smul.addr %s195, 320
        %s197 = scalar_lea.vmem [#allocation3], %s196
        %p198 = pneg %p43
        %p199 = pneg %p40
        %p200 = pneg %p64
        %p201 = pneg %p61
        %p202 = pneg %p85
        %p203 = pneg %p82
        %p204 = pneg %p111
        %p205 = pneg %p108
        %s206 = sand.u32 %s98, 1
        %s207 = scalar_lea.sflag [#allocation5], %s206
        %s208 = sand.u32 %s98, 1
        %s209 = smul.addr %s208, 16
        %s210 = scalar_lea.vmem [#allocation8], %s209
        %s211 = smul.u32 2, %s22
        %s212 = ssub.s32 3, %s211
        %p213 = scmp.lt.s32.totalorder %s212, 2
        %s214 = scalar_select %p213, %s212, 2
        %s215 = smul.u32 128, %s214
        %s216 = smul.u32 %s215, 20
        %s217 = smul.u32 2, %s22
        %s218 = ssub.s32 3, %s217
        %p219 = scmp.lt.s32.totalorder %s218, 2
        %s220 = scalar_select %p219, %s218, 2
        %s221 = smul.u32 128, %s220
        %v222 = vld [vmem:[%s184] sm:$0xff]
        %v223 = vld [vmem:[%s184 + $0x8] sm:$0xff]
        %v224 = vld [vmem:[%s184 + $0x10] sm:$0xff]
        %v225 = vld [vmem:[%s184 + $0x18] sm:$0xff]
        %v226 = vld [vmem:[%s184 + $0x20] sm:$0xff]
        %v227 = vld [vmem:[%s184 + $0x28] sm:$0xff]
        %v228 = vld [vmem:[%s184 + $0x30] sm:$0xff]
        %v229 = vld [vmem:[%s184 + $0x38] sm:$0xff]
        %v230 = vld [vmem:[%s184 + $0x40] sm:$0xff]
        %v231 = vld [vmem:[%s184 + $0x48] sm:$0xff]
        %v232 = vld [vmem:[%s184 + $0x50] sm:$0xff]
        %v233 = vld [vmem:[%s184 + $0x58] sm:$0xff]
        %v234 = vld [vmem:[%s184 + $0x60] sm:$0xff]
        %v235 = vld [vmem:[%s184 + $0x68] sm:$0xff]
        %v236 = vld [vmem:[%s184 + $0x70] sm:$0xff]
        %v237 = vld [vmem:[%s184 + $0x78] sm:$0xff]
        %v238 = vld [vmem:[%s184 + $0x80] sm:$0xff]
        %v239 = vld [vmem:[%s184 + $0x88] sm:$0xff]
        %v240 = vld [vmem:[%s184 + $0x90] sm:$0xff]
        %v241 = vld [vmem:[%s184 + $0x98] sm:$0xff]
        %v242 = vld [vmem:[%s184 + $0xa0] sm:$0xff]
        %v243 = vld [vmem:[%s184 + $0xa8] sm:$0xff]
        %v244 = vld [vmem:[%s184 + $0xb0] sm:$0xff]
        %v245 = vld [vmem:[%s184 + $0xb8] sm:$0xff]
        %v246 = vld [vmem:[%s184 + $0xc0] sm:$0xff]
        %v247 = vld [vmem:[%s184 + $0xc8] sm:$0xff]
        %v248 = vld [vmem:[%s184 + $0xd0] sm:$0xff]
        %v249 = vld [vmem:[%s184 + $0xd8] sm:$0xff]
        %v250 = vld [vmem:[%s184 + $0xe0] sm:$0xff]
        %v251 = vld [vmem:[%s184 + $0xe8] sm:$0xff]
        %v252 = vld [vmem:[%s184 + $0xf0] sm:$0xff]
        %v253 = vld [vmem:[%s184 + $0xf8] sm:$0xff]
        %v254 = vld [vmem:[%s184 + $0x100] sm:$0xff]
        %v255 = vld [vmem:[%s184 + $0x108] sm:$0xff]
        %v256 = vld [vmem:[%s184 + $0x110] sm:$0xff]
        %v257 = vld [vmem:[%s184 + $0x118] sm:$0xff]
        %v258 = vld [vmem:[%s184 + $0x120] sm:$0xff]
        %v259 = vld [vmem:[%s184 + $0x128] sm:$0xff]
        %v260 = vld [vmem:[%s184 + $0x130] sm:$0xff]
        %v261 = vld [vmem:[%s184 + $0x138] sm:$0xff]
        %v262 = vld [vmem:[#allocation6] sm:$0xff]
        %v263 = vld [vmem:[#allocation6 + $0x8] sm:$0xff]
        %v264 = vld [vmem:[#allocation6 + $0x10] sm:$0xf]
        %v268 = vlaneseq
        %v269 = vshrl.u32 %v268, 7
        %v270 = vsub.s32 0, %v269
        %v271 = vrot.slane %v262, %v270
        %v272 = vlaneseq
        %v273 = vshrl.u32 %v272, 7
        %v274 = vsub.s32 1, %v273
        %v275 = vrot.slane %v262, %v274
        %v276 = vlaneseq
        %v277 = vshrl.u32 %v276, 7
        %v278 = vsub.s32 2, %v277
        %v279 = vrot.slane %v262, %v278
        %v280 = vlaneseq
        %v281 = vshrl.u32 %v280, 7
        %v282 = vsub.s32 3, %v281
        %v283 = vrot.slane %v262, %v282
        %v284 = vlaneseq
        %v285 = vshrl.u32 %v284, 7
        %v286 = vsub.s32 4, %v285
        %v287 = vrot.slane %v262, %v286
        %v288 = vlaneseq
        %v289 = vshrl.u32 %v288, 7
        %v290 = vsub.s32 5, %v289
        %v291 = vrot.slane %v262, %v290
        %v292 = vlaneseq
        %v293 = vshrl.u32 %v292, 7
        %v294 = vsub.s32 6, %v293
        %v295 = vrot.slane %v262, %v294
        %v296 = vlaneseq
        %v297 = vshrl.u32 %v296, 7
        %v298 = vsub.s32 7, %v297
        %v299 = vrot.slane %v262, %v298
        %v300 = vlaneseq
        %v301 = vshrl.u32 %v300, 7
        %v302 = vsub.s32 0, %v301
        %v303 = vrot.slane %v263, %v302
        %v304 = vlaneseq
        %v305 = vshrl.u32 %v304, 7
        %v306 = vsub.s32 1, %v305
        %v307 = vrot.slane %v263, %v306
        %v308 = vlaneseq
        %v309 = vshrl.u32 %v308, 7
        %v310 = vsub.s32 2, %v309
        %v311 = vrot.slane %v263, %v310
        %v312 = vlaneseq
        %v313 = vshrl.u32 %v312, 7
        %v314 = vsub.s32 3, %v313
        %v315 = vrot.slane %v263, %v314
        %v316 = vlaneseq
        %v317 = vshrl.u32 %v316, 7
        %v318 = vsub.s32 4, %v317
        %v319 = vrot.slane %v263, %v318
        %v320 = vlaneseq
        %v321 = vshrl.u32 %v320, 7
        %v322 = vsub.s32 5, %v321
        %v323 = vrot.slane %v263, %v322
        %v324 = vlaneseq
        %v325 = vshrl.u32 %v324, 7
        %v326 = vsub.s32 6, %v325
        %v327 = vrot.slane %v263, %v326
        %v328 = vlaneseq
        %v329 = vshrl.u32 %v328, 7
        %v330 = vsub.s32 7, %v329
        %v331 = vrot.slane %v263, %v330
        %v332 = vlaneseq
        %v333 = vshrl.u32 %v332, 7
        %v334 = vsub.s32 0, %v333
        %v335 = vrot.slane %v264, %v334
        %v336 = vlaneseq
        %v337 = vshrl.u32 %v336, 7
        %v338 = vsub.s32 1, %v337
        %v339 = vrot.slane %v264, %v338
        %v340 = vlaneseq
        %v341 = vshrl.u32 %v340, 7
        %v342 = vsub.s32 2, %v341
        %v343 = vrot.slane %v264, %v342
        %v344 = vlaneseq
        %v345 = vshrl.u32 %v344, 7
        %v346 = vsub.s32 3, %v345
        %v347 = vrot.slane %v264, %v346
        %v368 = vmul.f32 %v222, %v271
        %v369 = vmul.f32 %v223, %v275
        %v370 = vmul.f32 %v224, %v279
        %v371 = vmul.f32 %v225, %v283
        %v372 = vmul.f32 %v226, %v287
        %v373 = vmul.f32 %v227, %v291
        %v374 = vmul.f32 %v228, %v295
        %v375 = vmul.f32 %v229, %v299
        %v376 = vmul.f32 %v230, %v303
        %v377 = vmul.f32 %v231, %v307
        %v378 = vmul.f32 %v232, %v311
        %v379 = vmul.f32 %v233, %v315
        %v380 = vmul.f32 %v234, %v319
        %v381 = vmul.f32 %v235, %v323
        %v382 = vmul.f32 %v236, %v327
        %v383 = vmul.f32 %v237, %v331
        %v384 = vmul.f32 %v238, %v335
        %v385 = vmul.f32 %v239, %v339
        %v386 = vmul.f32 %v240, %v343
        %v387 = vmul.f32 %v241, %v347
        %v388 = vmul.f32 %v242, %v271
        %v389 = vmul.f32 %v243, %v275
        %v390 = vmul.f32 %v244, %v279
        %v391 = vmul.f32 %v245, %v283
        %v392 = vmul.f32 %v246, %v287
        %v393 = vmul.f32 %v247, %v291
        %v394 = vmul.f32 %v248, %v295
        %v395 = vmul.f32 %v249, %v299
        %v396 = vmul.f32 %v250, %v303
        %v397 = vmul.f32 %v251, %v307
        %v398 = vmul.f32 %v252, %v311
        %v399 = vmul.f32 %v253, %v315
        %v400 = vmul.f32 %v254, %v319
        %v401 = vmul.f32 %v255, %v323
        %v402 = vmul.f32 %v256, %v327
        %v403 = vmul.f32 %v257, %v331
        %v404 = vmul.f32 %v258, %v335
        %v405 = vmul.f32 %v259, %v339
        %v406 = vmul.f32 %v260, %v343
        %v407 = vmul.f32 %v261, %v347
        %v408 = vlaneseq
        %v409 = vshrl.u32 %v408, 7
        %v410 = vadd.s32 %v409, 8
        %v411 = vadd.s32 %v409, 16
        %v412 = vadd.s32 %v409, 24
        %v413 = vadd.s32 %v409, 32
        %v414 = vadd.s32 %v409, 40
        %v415 = vadd.s32 %v409, 48
        %v416 = vadd.s32 %v409, 56
        %v417 = vadd.s32 %v409, 64
        %v418 = vadd.s32 %v409, 72
        %v419 = vadd.s32 %v409, 80
        %v420 = vadd.s32 %v409, 88
        %v421 = vadd.s32 %v409, 96
        %v422 = vadd.s32 %v409, 104
        %v423 = vadd.s32 %v409, 112
        %v424 = vadd.s32 %v409, 120
        %v425 = vadd.s32 %v409, 128
        %v426 = vadd.s32 %v409, 136
        %v427 = vadd.s32 %v409, 144
        %v428 = vadd.s32 %v409, 152
        %v429 = vadd.s32 %v409, 160
        %v430 = vadd.s32 %v409, 168
        %v431 = vadd.s32 %v409, 176
        %v432 = vadd.s32 %v409, 184
        %v433 = vadd.s32 %v409, 192
        %v434 = vadd.s32 %v409, 200
        %v435 = vadd.s32 %v409, 208
        %v436 = vadd.s32 %v409, 216
        %v437 = vadd.s32 %v409, 224
        %v438 = vadd.s32 %v409, 232
        %v439 = vadd.s32 %v409, 240
        %v440 = vadd.s32 %v409, 248
        %v441 = vadd.s32 %v409, 256
        %v442 = vadd.s32 %v409, 264
        %v443 = vadd.s32 %v409, 272
        %v444 = vadd.s32 %v409, 280
        %v445 = vadd.s32 %v409, 288
        %v446 = vadd.s32 %v409, 296
        %v447 = vadd.s32 %v409, 304
        %v448 = vadd.s32 %v409, 312
        %v449 = vadd.s32 %v409, 320
        %v450 = vadd.s32 %v409, 328
        %v451 = vadd.s32 %v409, 336
        %v452 = vadd.s32 %v409, 344
        %v453 = vadd.s32 %v409, 352
        %v454 = vadd.s32 %v409, 360
        %v455 = vadd.s32 %v409, 368
        %v456 = vadd.s32 %v409, 376
        %v457 = vadd.s32 %v409, 384
        %v458 = vadd.s32 %v409, 392
        %v459 = vadd.s32 %v409, 400
        %v460 = vadd.s32 %v409, 408
        %v461 = vadd.s32 %v409, 416
        %v462 = vadd.s32 %v409, 424
        %v463 = vadd.s32 %v409, 432
        %v464 = vadd.s32 %v409, 440
        %v465 = vadd.s32 %v409, 448
        %v466 = vadd.s32 %v409, 456
        %v467 = vadd.s32 %v409, 464
        %v468 = vadd.s32 %v409, 472
        %v469 = vadd.s32 %v409, 480
        %v470 = vadd.s32 %v409, 488
        %v471 = vadd.s32 %v409, 496
        %v472 = vadd.s32 %v409, 504
        %v473 = vadd.s32 %v409, 512
        %v474 = vadd.s32 %v409, 520
        %v475 = vadd.s32 %v409, 528
        %v476 = vadd.s32 %v409, 536
        %v477 = vadd.s32 %v409, 544
        %v478 = vadd.s32 %v409, 552
        %v479 = vadd.s32 %v409, 560
        %v480 = vadd.s32 %v409, 568
        %v481 = vadd.s32 %v409, 576
        %v482 = vadd.s32 %v409, 584
        %v483 = vadd.s32 %v409, 592
        %v484 = vadd.s32 %v409, 600
        %v485 = vadd.s32 %v409, 608
        %v486 = vadd.s32 %v409, 616
        %v487 = vadd.s32 %v409, 624
        %v488 = vadd.s32 %v409, 632
        %v489 = vadd.s32 %v409, 640
        %v490 = vadd.s32 %v409, 648
        %v491 = vadd.s32 %v409, 656
        %v492 = vadd.s32 %v409, 664
        %v493 = vadd.s32 %v409, 672
        %v494 = vadd.s32 %v409, 680
        %v495 = vadd.s32 %v409, 688
        %v496 = vadd.s32 %v409, 696
        %v497 = vadd.s32 %v409, 704
        %v498 = vadd.s32 %v409, 712
        %v499 = vadd.s32 %v409, 720
        %v500 = vadd.s32 %v409, 728
        %v501 = vadd.s32 %v409, 736
        %v502 = vadd.s32 %v409, 744
        %v503 = vadd.s32 %v409, 752
        %v504 = vadd.s32 %v409, 760
        %v505 = vadd.s32 %v409, 768
        %v506 = vadd.s32 %v409, 776
        %v507 = vadd.s32 %v409, 784
        %v508 = vadd.s32 %v409, 792
        %v509 = vadd.s32 %v409, 800
        %v510 = vadd.s32 %v409, 808
        %v511 = vadd.s32 %v409, 816
        %v512 = vadd.s32 %v409, 824
        %v513 = vadd.s32 %v409, 832
        %v514 = vadd.s32 %v409, 840
        %v515 = vadd.s32 %v409, 848
        %v516 = vadd.s32 %v409, 856
        %v517 = vadd.s32 %v409, 864
        %v518 = vadd.s32 %v409, 872
        %v519 = vadd.s32 %v409, 880
        %v520 = vadd.s32 %v409, 888
        %v521 = vadd.s32 %v409, 896
        %v522 = vadd.s32 %v409, 904
        %v523 = vadd.s32 %v409, 912
        %v524 = vadd.s32 %v409, 920
        %v525 = vadd.s32 %v409, 928
        %v526 = vadd.s32 %v409, 936
        %v527 = vadd.s32 %v409, 944
        %v528 = vadd.s32 %v409, 952
        %v529 = vadd.s32 %v409, 960
        %v530 = vadd.s32 %v409, 968
        %v531 = vadd.s32 %v409, 976
        %v532 = vadd.s32 %v409, 984
        %v533 = vadd.s32 %v409, 992
        %v534 = vadd.s32 %v409, 1000
        %v535 = vadd.s32 %v409, 1008
        %v536 = vadd.s32 %v409, 1016
        %v537 = vadd.s32 %v409, 1024
        %v538 = vadd.s32 %v409, 1032
        %v539 = vadd.s32 %v409, 1040
        %v540 = vadd.s32 %v409, 1048
        %v541 = vadd.s32 %v409, 1056
        %v542 = vadd.s32 %v409, 1064
        %v543 = vadd.s32 %v409, 1072
        %v544 = vadd.s32 %v409, 1080
        %v545 = vadd.s32 %v409, 1088
        %v546 = vadd.s32 %v409, 1096
        %v547 = vadd.s32 %v409, 1104
        %v548 = vadd.s32 %v409, 1112
        %v549 = vadd.s32 %v409, 1120
        %v550 = vadd.s32 %v409, 1128
        %v551 = vadd.s32 %v409, 1136
        %v552 = vadd.s32 %v409, 1144
        %v553 = vadd.s32 %v409, 1152
        %v554 = vadd.s32 %v409, 1160
        %v555 = vadd.s32 %v409, 1168
        %v556 = vadd.s32 %v409, 1176
        %v557 = vadd.s32 %v409, 1184
        %v558 = vadd.s32 %v409, 1192
        %v559 = vadd.s32 %v409, 1200
        %v560 = vadd.s32 %v409, 1208
        %v561 = vadd.s32 %v409, 1216
        %v562 = vadd.s32 %v409, 1224
        %v563 = vadd.s32 %v409, 1232
        %v564 = vadd.s32 %v409, 1240
        %v565 = vadd.s32 %v409, 1248
        %v566 = vadd.s32 %v409, 1256
        %v567 = vadd.s32 %v409, 1264
        %v568 = vadd.s32 %v409, 1272
        %v569 = vadd.s32 %v409, 1280
        %v570 = vadd.s32 %v409, 1288
        %v571 = vadd.s32 %v409, 1296
        %v572 = vadd.s32 %v409, 1304
        %v573 = vadd.s32 %v409, 1312
        %v574 = vadd.s32 %v409, 1320
        %v575 = vadd.s32 %v409, 1328
        %v576 = vadd.s32 %v409, 1336
        %v577 = vadd.s32 %v409, 1344
        %v578 = vadd.s32 %v409, 1352
        %v579 = vadd.s32 %v409, 1360
        %v580 = vadd.s32 %v409, 1368
        %v581 = vadd.s32 %v409, 1376
        %v582 = vadd.s32 %v409, 1384
        %v583 = vadd.s32 %v409, 1392
        %v584 = vadd.s32 %v409, 1400
        %v585 = vadd.s32 %v409, 1408
        %v586 = vadd.s32 %v409, 1416
        %v587 = vadd.s32 %v409, 1424
        %v588 = vadd.s32 %v409, 1432
        %v589 = vadd.s32 %v409, 1440
        %v590 = vadd.s32 %v409, 1448
        %v591 = vadd.s32 %v409, 1456
        %v592 = vadd.s32 %v409, 1464
        %v593 = vadd.s32 %v409, 1472
        %v594 = vadd.s32 %v409, 1480
        %v595 = vadd.s32 %v409, 1488
        %v596 = vadd.s32 %v409, 1496
        %v597 = vadd.s32 %v409, 1504
        %v598 = vadd.s32 %v409, 1512
        %v599 = vadd.s32 %v409, 1520
        %v600 = vadd.s32 %v409, 1528
        %v601 = vadd.s32 %v409, 1536
        %v602 = vadd.s32 %v409, 1544
        %v603 = vadd.s32 %v409, 1552
        %v604 = vadd.s32 %v409, 1560
        %v605 = vadd.s32 %v409, 1568
        %v606 = vadd.s32 %v409, 1576
        %v607 = vadd.s32 %v409, 1584
        %v608 = vadd.s32 %v409, 1592
        %v609 = vadd.s32 %v409, 1600
        %v610 = vadd.s32 %v409, 1608
        %v611 = vadd.s32 %v409, 1616
        %v612 = vadd.s32 %v409, 1624
        %v613 = vadd.s32 %v409, 1632
        %v614 = vadd.s32 %v409, 1640
        %v615 = vadd.s32 %v409, 1648
        %v616 = vadd.s32 %v409, 1656
        %v617 = vadd.s32 %v409, 1664
        %v618 = vadd.s32 %v409, 1672
        %v619 = vadd.s32 %v409, 1680
        %v620 = vadd.s32 %v409, 1688
        %v621 = vadd.s32 %v409, 1696
        %v622 = vadd.s32 %v409, 1704
        %v623 = vadd.s32 %v409, 1712
        %v624 = vadd.s32 %v409, 1720
        %v625 = vadd.s32 %v409, 1728
        %v626 = vadd.s32 %v409, 1736
        %v627 = vadd.s32 %v409, 1744
        %v628 = vadd.s32 %v409, 1752
        %v629 = vadd.s32 %v409, 1760
        %v630 = vadd.s32 %v409, 1768
        %v631 = vadd.s32 %v409, 1776
        %v632 = vadd.s32 %v409, 1784
        %v633 = vadd.s32 %v409, 1792
        %v634 = vadd.s32 %v409, 1800
        %v635 = vadd.s32 %v409, 1808
        %v636 = vadd.s32 %v409, 1816
        %v637 = vadd.s32 %v409, 1824
        %v638 = vadd.s32 %v409, 1832
        %v639 = vadd.s32 %v409, 1840
        %v640 = vadd.s32 %v409, 1848
        %v641 = vadd.s32 %v409, 1856
        %v642 = vadd.s32 %v409, 1864
        %v643 = vadd.s32 %v409, 1872
        %v644 = vadd.s32 %v409, 1880
        %v645 = vadd.s32 %v409, 1888
        %v646 = vadd.s32 %v409, 1896
        %v647 = vadd.s32 %v409, 1904
        %v648 = vadd.s32 %v409, 1912
        %v649 = vadd.s32 %v409, 1920
        %v650 = vadd.s32 %v409, 1928
        %v651 = vadd.s32 %v409, 1936
        %v652 = vadd.s32 %v409, 1944
        %v653 = vadd.s32 %v409, 1952
        %v654 = vadd.s32 %v409, 1960
        %v655 = vadd.s32 %v409, 1968
        %v656 = vadd.s32 %v409, 1976
        %v657 = vadd.s32 %v409, 1984
        %v658 = vadd.s32 %v409, 1992
        %v659 = vadd.s32 %v409, 2000
        %v660 = vadd.s32 %v409, 2008
        %v661 = vadd.s32 %v409, 2016
        %v662 = vadd.s32 %v409, 2024
        %v663 = vadd.s32 %v409, 2032
        %v664 = vadd.s32 %v409, 2040
        %v665 = vadd.s32 %v409, 2048
        %v666 = vadd.s32 %v409, 2056
        %v667 = vadd.s32 %v409, 2064
        %v668 = vadd.s32 %v409, 2072
        %v669 = vadd.s32 %v409, 2080
        %v670 = vadd.s32 %v409, 2088
        %v671 = vadd.s32 %v409, 2096
        %v672 = vadd.s32 %v409, 2104
        %v673 = vadd.s32 %v409, 2112
        %v674 = vadd.s32 %v409, 2120
        %v675 = vadd.s32 %v409, 2128
        %v676 = vadd.s32 %v409, 2136
        %v677 = vadd.s32 %v409, 2144
        %v678 = vadd.s32 %v409, 2152
        %v679 = vadd.s32 %v409, 2160
        %v680 = vadd.s32 %v409, 2168
        %v681 = vadd.s32 %v409, 2176
        %v682 = vadd.s32 %v409, 2184
        %v683 = vadd.s32 %v409, 2192
        %v684 = vadd.s32 %v409, 2200
        %v685 = vadd.s32 %v409, 2208
        %v686 = vadd.s32 %v409, 2216
        %v687 = vadd.s32 %v409, 2224
        %v688 = vadd.s32 %v409, 2232
        %v689 = vadd.s32 %v409, 2240
        %v690 = vadd.s32 %v409, 2248
        %v691 = vadd.s32 %v409, 2256
        %v692 = vadd.s32 %v409, 2264
        %v693 = vadd.s32 %v409, 2272
        %v694 = vadd.s32 %v409, 2280
        %v695 = vadd.s32 %v409, 2288
        %v696 = vadd.s32 %v409, 2296
        %v697 = vadd.s32 %v409, 2304
        %v698 = vadd.s32 %v409, 2312
        %v699 = vadd.s32 %v409, 2320
        %v700 = vadd.s32 %v409, 2328
        %v701 = vadd.s32 %v409, 2336
        %v702 = vadd.s32 %v409, 2344
        %v703 = vadd.s32 %v409, 2352
        %v704 = vadd.s32 %v409, 2360
        %v705 = vadd.s32 %v409, 2368
        %v706 = vadd.s32 %v409, 2376
        %v707 = vadd.s32 %v409, 2384
        %v708 = vadd.s32 %v409, 2392
        %v709 = vadd.s32 %v409, 2400
        %v710 = vadd.s32 %v409, 2408
        %v711 = vadd.s32 %v409, 2416
        %v712 = vadd.s32 %v409, 2424
        %v713 = vadd.s32 %v409, 2432
        %v714 = vadd.s32 %v409, 2440
        %v715 = vadd.s32 %v409, 2448
        %v716 = vadd.s32 %v409, 2456
        %v717 = vadd.s32 %v409, 2464
        %v718 = vadd.s32 %v409, 2472
        %v719 = vadd.s32 %v409, 2480
        %v720 = vadd.s32 %v409, 2488
        %v721 = vadd.s32 %v409, 2496
        %v722 = vadd.s32 %v409, 2504
        %v723 = vadd.s32 %v409, 2512
        %v724 = vadd.s32 %v409, 2520
        %v725 = vadd.s32 %v409, 2528
        %v726 = vadd.s32 %v409, 2536
        %v727 = vadd.s32 %v409, 2544
        %v728 = vadd.s32 %v409, 2552
        %v729 = vlaneseq
        %v730 = vand.u32 %v729, 127
        %v731 = vmul.u32 %v730, 20
        %vm732 = vcmp.ge.s32.totalorder %v409, %v731
        %vm733 = vcmp.ge.s32.totalorder %v410, %v731
        %vm734 = vcmp.ge.s32.totalorder %v411, %v731
        %vm735 = vcmp.ge.s32.totalorder %v412, %v731
        %vm736 = vcmp.ge.s32.totalorder %v413, %v731
        %vm737 = vcmp.ge.s32.totalorder %v414, %v731
        %vm738 = vcmp.ge.s32.totalorder %v415, %v731
        %vm739 = vcmp.ge.s32.totalorder %v416, %v731
        %vm740 = vcmp.ge.s32.totalorder %v417, %v731
        %vm741 = vcmp.ge.s32.totalorder %v418, %v731
        %vm742 = vcmp.ge.s32.totalorder %v419, %v731
        %vm743 = vcmp.ge.s32.totalorder %v420, %v731
        %vm744 = vcmp.ge.s32.totalorder %v421, %v731
        %vm745 = vcmp.ge.s32.totalorder %v422, %v731
        %vm746 = vcmp.ge.s32.totalorder %v423, %v731
        %vm747 = vcmp.ge.s32.totalorder %v424, %v731
        %vm748 = vcmp.ge.s32.totalorder %v425, %v731
        %vm749 = vcmp.ge.s32.totalorder %v426, %v731
        %vm750 = vcmp.ge.s32.totalorder %v427, %v731
        %vm751 = vcmp.ge.s32.totalorder %v428, %v731
        %vm752 = vcmp.ge.s32.totalorder %v429, %v731
        %vm753 = vcmp.ge.s32.totalorder %v430, %v731
        %vm754 = vcmp.ge.s32.totalorder %v431, %v731
        %vm755 = vcmp.ge.s32.totalorder %v432, %v731
        %vm756 = vcmp.ge.s32.totalorder %v433, %v731
        %vm757 = vcmp.ge.s32.totalorder %v434, %v731
        %vm758 = vcmp.ge.s32.totalorder %v435, %v731
        %vm759 = vcmp.ge.s32.totalorder %v436, %v731
        %vm760 = vcmp.ge.s32.totalorder %v437, %v731
        %vm761 = vcmp.ge.s32.totalorder %v438, %v731
        %vm762 = vcmp.ge.s32.totalorder %v439, %v731
        %vm763 = vcmp.ge.s32.totalorder %v440, %v731
        %vm764 = vcmp.ge.s32.totalorder %v441, %v731
        %vm765 = vcmp.ge.s32.totalorder %v442, %v731
        %vm766 = vcmp.ge.s32.totalorder %v443, %v731
        %vm767 = vcmp.ge.s32.totalorder %v444, %v731
        %vm768 = vcmp.ge.s32.totalorder %v445, %v731
        %vm769 = vcmp.ge.s32.totalorder %v446, %v731
        %vm770 = vcmp.ge.s32.totalorder %v447, %v731
        %vm771 = vcmp.ge.s32.totalorder %v448, %v731
        %vm772 = vcmp.ge.s32.totalorder %v449, %v731
        %vm773 = vcmp.ge.s32.totalorder %v450, %v731
        %vm774 = vcmp.ge.s32.totalorder %v451, %v731
        %vm775 = vcmp.ge.s32.totalorder %v452, %v731
        %vm776 = vcmp.ge.s32.totalorder %v453, %v731
        %vm777 = vcmp.ge.s32.totalorder %v454, %v731
        %vm778 = vcmp.ge.s32.totalorder %v455, %v731
        %vm779 = vcmp.ge.s32.totalorder %v456, %v731
        %vm780 = vcmp.ge.s32.totalorder %v457, %v731
        %vm781 = vcmp.ge.s32.totalorder %v458, %v731
        %vm782 = vcmp.ge.s32.totalorder %v459, %v731
        %vm783 = vcmp.ge.s32.totalorder %v460, %v731
        %vm784 = vcmp.ge.s32.totalorder %v461, %v731
        %vm785 = vcmp.ge.s32.totalorder %v462, %v731
        %vm786 = vcmp.ge.s32.totalorder %v463, %v731
        %vm787 = vcmp.ge.s32.totalorder %v464, %v731
        %vm788 = vcmp.ge.s32.totalorder %v465, %v731
        %vm789 = vcmp.ge.s32.totalorder %v466, %v731
        %vm790 = vcmp.ge.s32.totalorder %v467, %v731
        %vm791 = vcmp.ge.s32.totalorder %v468, %v731
        %vm792 = vcmp.ge.s32.totalorder %v469, %v731
        %vm793 = vcmp.ge.s32.totalorder %v470, %v731
        %vm794 = vcmp.ge.s32.totalorder %v471, %v731
        %vm795 = vcmp.ge.s32.totalorder %v472, %v731
        %vm796 = vcmp.ge.s32.totalorder %v473, %v731
        %vm797 = vcmp.ge.s32.totalorder %v474, %v731
        %vm798 = vcmp.ge.s32.totalorder %v475, %v731
        %vm799 = vcmp.ge.s32.totalorder %v476, %v731
        %vm800 = vcmp.ge.s32.totalorder %v477, %v731
        %vm801 = vcmp.ge.s32.totalorder %v478, %v731
        %vm802 = vcmp.ge.s32.totalorder %v479, %v731
        %vm803 = vcmp.ge.s32.totalorder %v480, %v731
        %vm804 = vcmp.ge.s32.totalorder %v481, %v731
        %vm805 = vcmp.ge.s32.totalorder %v482, %v731
        %vm806 = vcmp.ge.s32.totalorder %v483, %v731
        %vm807 = vcmp.ge.s32.totalorder %v484, %v731
        %vm808 = vcmp.ge.s32.totalorder %v485, %v731
        %vm809 = vcmp.ge.s32.totalorder %v486, %v731
        %vm810 = vcmp.ge.s32.totalorder %v487, %v731
        %vm811 = vcmp.ge.s32.totalorder %v488, %v731
        %vm812 = vcmp.ge.s32.totalorder %v489, %v731
        %vm813 = vcmp.ge.s32.totalorder %v490, %v731
        %vm814 = vcmp.ge.s32.totalorder %v491, %v731
        %vm815 = vcmp.ge.s32.totalorder %v492, %v731
        %vm816 = vcmp.ge.s32.totalorder %v493, %v731
        %vm817 = vcmp.ge.s32.totalorder %v494, %v731
        %vm818 = vcmp.ge.s32.totalorder %v495, %v731
        %vm819 = vcmp.ge.s32.totalorder %v496, %v731
        %vm820 = vcmp.ge.s32.totalorder %v497, %v731
        %vm821 = vcmp.ge.s32.totalorder %v498, %v731
        %vm822 = vcmp.ge.s32.totalorder %v499, %v731
        %vm823 = vcmp.ge.s32.totalorder %v500, %v731
        %vm824 = vcmp.ge.s32.totalorder %v501, %v731
        %vm825 = vcmp.ge.s32.totalorder %v502, %v731
        %vm826 = vcmp.ge.s32.totalorder %v503, %v731
        %vm827 = vcmp.ge.s32.totalorder %v504, %v731
        %vm828 = vcmp.ge.s32.totalorder %v505, %v731
        %vm829 = vcmp.ge.s32.totalorder %v506, %v731
        %vm830 = vcmp.ge.s32.totalorder %v507, %v731
        %vm831 = vcmp.ge.s32.totalorder %v508, %v731
        %vm832 = vcmp.ge.s32.totalorder %v509, %v731
        %vm833 = vcmp.ge.s32.totalorder %v510, %v731
        %vm834 = vcmp.ge.s32.totalorder %v511, %v731
        %vm835 = vcmp.ge.s32.totalorder %v512, %v731
        %vm836 = vcmp.ge.s32.totalorder %v513, %v731
        %vm837 = vcmp.ge.s32.totalorder %v514, %v731
        %vm838 = vcmp.ge.s32.totalorder %v515, %v731
        %vm839 = vcmp.ge.s32.totalorder %v516, %v731
        %vm840 = vcmp.ge.s32.totalorder %v517, %v731
        %vm841 = vcmp.ge.s32.totalorder %v518, %v731
        %vm842 = vcmp.ge.s32.totalorder %v519, %v731
        %vm843 = vcmp.ge.s32.totalorder %v520, %v731
        %vm844 = vcmp.ge.s32.totalorder %v521, %v731
        %vm845 = vcmp.ge.s32.totalorder %v522, %v731
        %vm846 = vcmp.ge.s32.totalorder %v523, %v731
        %vm847 = vcmp.ge.s32.totalorder %v524, %v731
        %vm848 = vcmp.ge.s32.totalorder %v525, %v731
        %vm849 = vcmp.ge.s32.totalorder %v526, %v731
        %vm850 = vcmp.ge.s32.totalorder %v527, %v731
        %vm851 = vcmp.ge.s32.totalorder %v528, %v731
        %vm852 = vcmp.ge.s32.totalorder %v529, %v731
        %vm853 = vcmp.ge.s32.totalorder %v530, %v731
        %vm854 = vcmp.ge.s32.totalorder %v531, %v731
        %vm855 = vcmp.ge.s32.totalorder %v532, %v731
        %vm856 = vcmp.ge.s32.totalorder %v533, %v731
        %vm857 = vcmp.ge.s32.totalorder %v534, %v731
        %vm858 = vcmp.ge.s32.totalorder %v535, %v731
        %vm859 = vcmp.ge.s32.totalorder %v536, %v731
        %vm860 = vcmp.ge.s32.totalorder %v537, %v731
        %vm861 = vcmp.ge.s32.totalorder %v538, %v731
        %vm862 = vcmp.ge.s32.totalorder %v539, %v731
        %vm863 = vcmp.ge.s32.totalorder %v540, %v731
        %vm864 = vcmp.ge.s32.totalorder %v541, %v731
        %vm865 = vcmp.ge.s32.totalorder %v542, %v731
        %vm866 = vcmp.ge.s32.totalorder %v543, %v731
        %vm867 = vcmp.ge.s32.totalorder %v544, %v731
        %vm868 = vcmp.ge.s32.totalorder %v545, %v731
        %vm869 = vcmp.ge.s32.totalorder %v546, %v731
        %vm870 = vcmp.ge.s32.totalorder %v547, %v731
        %vm871 = vcmp.ge.s32.totalorder %v548, %v731
        %vm872 = vcmp.ge.s32.totalorder %v549, %v731
        %vm873 = vcmp.ge.s32.totalorder %v550, %v731
        %vm874 = vcmp.ge.s32.totalorder %v551, %v731
        %vm875 = vcmp.ge.s32.totalorder %v552, %v731
        %vm876 = vcmp.ge.s32.totalorder %v553, %v731
        %vm877 = vcmp.ge.s32.totalorder %v554, %v731
        %vm878 = vcmp.ge.s32.totalorder %v555, %v731
        %vm879 = vcmp.ge.s32.totalorder %v556, %v731
        %vm880 = vcmp.ge.s32.totalorder %v557, %v731
        %vm881 = vcmp.ge.s32.totalorder %v558, %v731
        %vm882 = vcmp.ge.s32.totalorder %v559, %v731
        %vm883 = vcmp.ge.s32.totalorder %v560, %v731
        %vm884 = vcmp.ge.s32.totalorder %v561, %v731
        %vm885 = vcmp.ge.s32.totalorder %v562, %v731
        %vm886 = vcmp.ge.s32.totalorder %v563, %v731
        %vm887 = vcmp.ge.s32.totalorder %v564, %v731
        %vm888 = vcmp.ge.s32.totalorder %v565, %v731
        %vm889 = vcmp.ge.s32.totalorder %v566, %v731
        %vm890 = vcmp.ge.s32.totalorder %v567, %v731
        %vm891 = vcmp.ge.s32.totalorder %v568, %v731
        %vm892 = vcmp.ge.s32.totalorder %v569, %v731
        %vm893 = vcmp.ge.s32.totalorder %v570, %v731
        %vm894 = vcmp.ge.s32.totalorder %v571, %v731
        %vm895 = vcmp.ge.s32.totalorder %v572, %v731
        %vm896 = vcmp.ge.s32.totalorder %v573, %v731
        %vm897 = vcmp.ge.s32.totalorder %v574, %v731
        %vm898 = vcmp.ge.s32.totalorder %v575, %v731
        %vm899 = vcmp.ge.s32.totalorder %v576, %v731
        %vm900 = vcmp.ge.s32.totalorder %v577, %v731
        %vm901 = vcmp.ge.s32.totalorder %v578, %v731
        %vm902 = vcmp.ge.s32.totalorder %v579, %v731
        %vm903 = vcmp.ge.s32.totalorder %v580, %v731
        %vm904 = vcmp.ge.s32.totalorder %v581, %v731
        %vm905 = vcmp.ge.s32.totalorder %v582, %v731
        %vm906 = vcmp.ge.s32.totalorder %v583, %v731
        %vm907 = vcmp.ge.s32.totalorder %v584, %v731
        %vm908 = vcmp.ge.s32.totalorder %v585, %v731
        %vm909 = vcmp.ge.s32.totalorder %v586, %v731
        %vm910 = vcmp.ge.s32.totalorder %v587, %v731
        %vm911 = vcmp.ge.s32.totalorder %v588, %v731
        %vm912 = vcmp.ge.s32.totalorder %v589, %v731
        %vm913 = vcmp.ge.s32.totalorder %v590, %v731
        %vm914 = vcmp.ge.s32.totalorder %v591, %v731
        %vm915 = vcmp.ge.s32.totalorder %v592, %v731
        %vm916 = vcmp.ge.s32.totalorder %v593, %v731
        %vm917 = vcmp.ge.s32.totalorder %v594, %v731
        %vm918 = vcmp.ge.s32.totalorder %v595, %v731
        %vm919 = vcmp.ge.s32.totalorder %v596, %v731
        %vm920 = vcmp.ge.s32.totalorder %v597, %v731
        %vm921 = vcmp.ge.s32.totalorder %v598, %v731
        %vm922 = vcmp.ge.s32.totalorder %v599, %v731
        %vm923 = vcmp.ge.s32.totalorder %v600, %v731
        %vm924 = vcmp.ge.s32.totalorder %v601, %v731
        %vm925 = vcmp.ge.s32.totalorder %v602, %v731
        %vm926 = vcmp.ge.s32.totalorder %v603, %v731
        %vm927 = vcmp.ge.s32.totalorder %v604, %v731
        %vm928 = vcmp.ge.s32.totalorder %v605, %v731
        %vm929 = vcmp.ge.s32.totalorder %v606, %v731
        %vm930 = vcmp.ge.s32.totalorder %v607, %v731
        %vm931 = vcmp.ge.s32.totalorder %v608, %v731
        %vm932 = vcmp.ge.s32.totalorder %v609, %v731
        %vm933 = vcmp.ge.s32.totalorder %v610, %v731
        %vm934 = vcmp.ge.s32.totalorder %v611, %v731
        %vm935 = vcmp.ge.s32.totalorder %v612, %v731
        %vm936 = vcmp.ge.s32.totalorder %v613, %v731
        %vm937 = vcmp.ge.s32.totalorder %v614, %v731
        %vm938 = vcmp.ge.s32.totalorder %v615, %v731
        %vm939 = vcmp.ge.s32.totalorder %v616, %v731
        %vm940 = vcmp.ge.s32.totalorder %v617, %v731
        %vm941 = vcmp.ge.s32.totalorder %v618, %v731
        %vm942 = vcmp.ge.s32.totalorder %v619, %v731
        %vm943 = vcmp.ge.s32.totalorder %v620, %v731
        %vm944 = vcmp.ge.s32.totalorder %v621, %v731
        %vm945 = vcmp.ge.s32.totalorder %v622, %v731
        %vm946 = vcmp.ge.s32.totalorder %v623, %v731
        %vm947 = vcmp.ge.s32.totalorder %v624, %v731
        %vm948 = vcmp.ge.s32.totalorder %v625, %v731
        %vm949 = vcmp.ge.s32.totalorder %v626, %v731
        %vm950 = vcmp.ge.s32.totalorder %v627, %v731
        %vm951 = vcmp.ge.s32.totalorder %v628, %v731
        %vm952 = vcmp.ge.s32.totalorder %v629, %v731
        %vm953 = vcmp.ge.s32.totalorder %v630, %v731
        %vm954 = vcmp.ge.s32.totalorder %v631, %v731
        %vm955 = vcmp.ge.s32.totalorder %v632, %v731
        %vm956 = vcmp.ge.s32.totalorder %v633, %v731
        %vm957 = vcmp.ge.s32.totalorder %v634, %v731
        %vm958 = vcmp.ge.s32.totalorder %v635, %v731
        %vm959 = vcmp.ge.s32.totalorder %v636, %v731
        %vm960 = vcmp.ge.s32.totalorder %v637, %v731
        %vm961 = vcmp.ge.s32.totalorder %v638, %v731
        %vm962 = vcmp.ge.s32.totalorder %v639, %v731
        %vm963 = vcmp.ge.s32.totalorder %v640, %v731
        %vm964 = vcmp.ge.s32.totalorder %v641, %v731
        %vm965 = vcmp.ge.s32.totalorder %v642, %v731
        %vm966 = vcmp.ge.s32.totalorder %v643, %v731
        %vm967 = vcmp.ge.s32.totalorder %v644, %v731
        %vm968 = vcmp.ge.s32.totalorder %v645, %v731
        %vm969 = vcmp.ge.s32.totalorder %v646, %v731
        %vm970 = vcmp.ge.s32.totalorder %v647, %v731
        %vm971 = vcmp.ge.s32.totalorder %v648, %v731
        %vm972 = vcmp.ge.s32.totalorder %v649, %v731
        %vm973 = vcmp.ge.s32.totalorder %v650, %v731
        %vm974 = vcmp.ge.s32.totalorder %v651, %v731
        %vm975 = vcmp.ge.s32.totalorder %v652, %v731
        %vm976 = vcmp.ge.s32.totalorder %v653, %v731
        %vm977 = vcmp.ge.s32.totalorder %v654, %v731
        %vm978 = vcmp.ge.s32.totalorder %v655, %v731
        %vm979 = vcmp.ge.s32.totalorder %v656, %v731
        %vm980 = vcmp.ge.s32.totalorder %v657, %v731
        %vm981 = vcmp.ge.s32.totalorder %v658, %v731
        %vm982 = vcmp.ge.s32.totalorder %v659, %v731
        %vm983 = vcmp.ge.s32.totalorder %v660, %v731
        %vm984 = vcmp.ge.s32.totalorder %v661, %v731
        %vm985 = vcmp.ge.s32.totalorder %v662, %v731
        %vm986 = vcmp.ge.s32.totalorder %v663, %v731
        %vm987 = vcmp.ge.s32.totalorder %v664, %v731
        %vm988 = vcmp.ge.s32.totalorder %v665, %v731
        %vm989 = vcmp.ge.s32.totalorder %v666, %v731
        %vm990 = vcmp.ge.s32.totalorder %v667, %v731
        %vm991 = vcmp.ge.s32.totalorder %v668, %v731
        %vm992 = vcmp.ge.s32.totalorder %v669, %v731
        %vm993 = vcmp.ge.s32.totalorder %v670, %v731
        %vm994 = vcmp.ge.s32.totalorder %v671, %v731
        %vm995 = vcmp.ge.s32.totalorder %v672, %v731
        %vm996 = vcmp.ge.s32.totalorder %v673, %v731
        %vm997 = vcmp.ge.s32.totalorder %v674, %v731
        %vm998 = vcmp.ge.s32.totalorder %v675, %v731
        %vm999 = vcmp.ge.s32.totalorder %v676, %v731
        %vm1000 = vcmp.ge.s32.totalorder %v677, %v731
        %vm1001 = vcmp.ge.s32.totalorder %v678, %v731
        %vm1002 = vcmp.ge.s32.totalorder %v679, %v731
        %vm1003 = vcmp.ge.s32.totalorder %v680, %v731
        %vm1004 = vcmp.ge.s32.totalorder %v681, %v731
        %vm1005 = vcmp.ge.s32.totalorder %v682, %v731
        %vm1006 = vcmp.ge.s32.totalorder %v683, %v731
        %vm1007 = vcmp.ge.s32.totalorder %v684, %v731
        %vm1008 = vcmp.ge.s32.totalorder %v685, %v731
        %vm1009 = vcmp.ge.s32.totalorder %v686, %v731
        %vm1010 = vcmp.ge.s32.totalorder %v687, %v731
        %vm1011 = vcmp.ge.s32.totalorder %v688, %v731
        %vm1012 = vcmp.ge.s32.totalorder %v689, %v731
        %vm1013 = vcmp.ge.s32.totalorder %v690, %v731
        %vm1014 = vcmp.ge.s32.totalorder %v691, %v731
        %vm1015 = vcmp.ge.s32.totalorder %v692, %v731
        %vm1016 = vcmp.ge.s32.totalorder %v693, %v731
        %vm1017 = vcmp.ge.s32.totalorder %v694, %v731
        %vm1018 = vcmp.ge.s32.totalorder %v695, %v731
        %vm1019 = vcmp.ge.s32.totalorder %v696, %v731
        %vm1020 = vcmp.ge.s32.totalorder %v697, %v731
        %vm1021 = vcmp.ge.s32.totalorder %v698, %v731
        %vm1022 = vcmp.ge.s32.totalorder %v699, %v731
        %vm1023 = vcmp.ge.s32.totalorder %v700, %v731
        %vm1024 = vcmp.ge.s32.totalorder %v701, %v731
        %vm1025 = vcmp.ge.s32.totalorder %v702, %v731
        %vm1026 = vcmp.ge.s32.totalorder %v703, %v731
        %vm1027 = vcmp.ge.s32.totalorder %v704, %v731
        %vm1028 = vcmp.ge.s32.totalorder %v705, %v731
        %vm1029 = vcmp.ge.s32.totalorder %v706, %v731
        %vm1030 = vcmp.ge.s32.totalorder %v707, %v731
        %vm1031 = vcmp.ge.s32.totalorder %v708, %v731
        %vm1032 = vcmp.ge.s32.totalorder %v709, %v731
        %vm1033 = vcmp.ge.s32.totalorder %v710, %v731
        %vm1034 = vcmp.ge.s32.totalorder %v711, %v731
        %vm1035 = vcmp.ge.s32.totalorder %v712, %v731
        %vm1036 = vcmp.ge.s32.totalorder %v713, %v731
        %vm1037 = vcmp.ge.s32.totalorder %v714, %v731
        %vm1038 = vcmp.ge.s32.totalorder %v715, %v731
        %vm1039 = vcmp.ge.s32.totalorder %v716, %v731
        %vm1040 = vcmp.ge.s32.totalorder %v717, %v731
        %vm1041 = vcmp.ge.s32.totalorder %v718, %v731
        %vm1042 = vcmp.ge.s32.totalorder %v719, %v731
        %vm1043 = vcmp.ge.s32.totalorder %v720, %v731
        %vm1044 = vcmp.ge.s32.totalorder %v721, %v731
        %vm1045 = vcmp.ge.s32.totalorder %v722, %v731
        %vm1046 = vcmp.ge.s32.totalorder %v723, %v731
        %vm1047 = vcmp.ge.s32.totalorder %v724, %v731
        %vm1048 = vcmp.ge.s32.totalorder %v725, %v731
        %vm1049 = vcmp.ge.s32.totalorder %v726, %v731
        %vm1050 = vcmp.ge.s32.totalorder %v727, %v731
        %vm1051 = vcmp.ge.s32.totalorder %v728, %v731
        %v1052 = vadd.s32 %v731, 20
        %vm1053 = vcmp.lt.s32.totalorder %v409, %v1052
        %vm1054 = vcmp.lt.s32.totalorder %v410, %v1052
        %vm1055 = vcmp.lt.s32.totalorder %v411, %v1052
        %vm1056 = vcmp.lt.s32.totalorder %v412, %v1052
        %vm1057 = vcmp.lt.s32.totalorder %v413, %v1052
        %vm1058 = vcmp.lt.s32.totalorder %v414, %v1052
        %vm1059 = vcmp.lt.s32.totalorder %v415, %v1052
        %vm1060 = vcmp.lt.s32.totalorder %v416, %v1052
        %vm1061 = vcmp.lt.s32.totalorder %v417, %v1052
        %vm1062 = vcmp.lt.s32.totalorder %v418, %v1052
        %vm1063 = vcmp.lt.s32.totalorder %v419, %v1052
        %vm1064 = vcmp.lt.s32.totalorder %v420, %v1052
        %vm1065 = vcmp.lt.s32.totalorder %v421, %v1052
        %vm1066 = vcmp.lt.s32.totalorder %v422, %v1052
        %vm1067 = vcmp.lt.s32.totalorder %v423, %v1052
        %vm1068 = vcmp.lt.s32.totalorder %v424, %v1052
        %vm1069 = vcmp.lt.s32.totalorder %v425, %v1052
        %vm1070 = vcmp.lt.s32.totalorder %v426, %v1052
        %vm1071 = vcmp.lt.s32.totalorder %v427, %v1052
        %vm1072 = vcmp.lt.s32.totalorder %v428, %v1052
        %vm1073 = vcmp.lt.s32.totalorder %v429, %v1052
        %vm1074 = vcmp.lt.s32.totalorder %v430, %v1052
        %vm1075 = vcmp.lt.s32.totalorder %v431, %v1052
        %vm1076 = vcmp.lt.s32.totalorder %v432, %v1052
        %vm1077 = vcmp.lt.s32.totalorder %v433, %v1052
        %vm1078 = vcmp.lt.s32.totalorder %v434, %v1052
        %vm1079 = vcmp.lt.s32.totalorder %v435, %v1052
        %vm1080 = vcmp.lt.s32.totalorder %v436, %v1052
        %vm1081 = vcmp.lt.s32.totalorder %v437, %v1052
        %vm1082 = vcmp.lt.s32.totalorder %v438, %v1052
        %vm1083 = vcmp.lt.s32.totalorder %v439, %v1052
        %vm1084 = vcmp.lt.s32.totalorder %v440, %v1052
        %vm1085 = vcmp.lt.s32.totalorder %v441, %v1052
        %vm1086 = vcmp.lt.s32.totalorder %v442, %v1052
        %vm1087 = vcmp.lt.s32.totalorder %v443, %v1052
        %vm1088 = vcmp.lt.s32.totalorder %v444, %v1052
        %vm1089 = vcmp.lt.s32.totalorder %v445, %v1052
        %vm1090 = vcmp.lt.s32.totalorder %v446, %v1052
        %vm1091 = vcmp.lt.s32.totalorder %v447, %v1052
        %vm1092 = vcmp.lt.s32.totalorder %v448, %v1052
        %vm1093 = vcmp.lt.s32.totalorder %v449, %v1052
        %vm1094 = vcmp.lt.s32.totalorder %v450, %v1052
        %vm1095 = vcmp.lt.s32.totalorder %v451, %v1052
        %vm1096 = vcmp.lt.s32.totalorder %v452, %v1052
        %vm1097 = vcmp.lt.s32.totalorder %v453, %v1052
        %vm1098 = vcmp.lt.s32.totalorder %v454, %v1052
        %vm1099 = vcmp.lt.s32.totalorder %v455, %v1052
        %vm1100 = vcmp.lt.s32.totalorder %v456, %v1052
        %vm1101 = vcmp.lt.s32.totalorder %v457, %v1052
        %vm1102 = vcmp.lt.s32.totalorder %v458, %v1052
        %vm1103 = vcmp.lt.s32.totalorder %v459, %v1052
        %vm1104 = vcmp.lt.s32.totalorder %v460, %v1052
        %vm1105 = vcmp.lt.s32.totalorder %v461, %v1052
        %vm1106 = vcmp.lt.s32.totalorder %v462, %v1052
        %vm1107 = vcmp.lt.s32.totalorder %v463, %v1052
        %vm1108 = vcmp.lt.s32.totalorder %v464, %v1052
        %vm1109 = vcmp.lt.s32.totalorder %v465, %v1052
        %vm1110 = vcmp.lt.s32.totalorder %v466, %v1052
        %vm1111 = vcmp.lt.s32.totalorder %v467, %v1052
        %vm1112 = vcmp.lt.s32.totalorder %v468, %v1052
        %vm1113 = vcmp.lt.s32.totalorder %v469, %v1052
        %vm1114 = vcmp.lt.s32.totalorder %v470, %v1052
        %vm1115 = vcmp.lt.s32.totalorder %v471, %v1052
        %vm1116 = vcmp.lt.s32.totalorder %v472, %v1052
        %vm1117 = vcmp.lt.s32.totalorder %v473, %v1052
        %vm1118 = vcmp.lt.s32.totalorder %v474, %v1052
        %vm1119 = vcmp.lt.s32.totalorder %v475, %v1052
        %vm1120 = vcmp.lt.s32.totalorder %v476, %v1052
        %vm1121 = vcmp.lt.s32.totalorder %v477, %v1052
        %vm1122 = vcmp.lt.s32.totalorder %v478, %v1052
        %vm1123 = vcmp.lt.s32.totalorder %v479, %v1052
        %vm1124 = vcmp.lt.s32.totalorder %v480, %v1052
        %vm1125 = vcmp.lt.s32.totalorder %v481, %v1052
        %vm1126 = vcmp.lt.s32.totalorder %v482, %v1052
        %vm1127 = vcmp.lt.s32.totalorder %v483, %v1052
        %vm1128 = vcmp.lt.s32.totalorder %v484, %v1052
        %vm1129 = vcmp.lt.s32.totalorder %v485, %v1052
        %vm1130 = vcmp.lt.s32.totalorder %v486, %v1052
        %vm1131 = vcmp.lt.s32.totalorder %v487, %v1052
        %vm1132 = vcmp.lt.s32.totalorder %v488, %v1052
        %vm1133 = vcmp.lt.s32.totalorder %v489, %v1052
        %vm1134 = vcmp.lt.s32.totalorder %v490, %v1052
        %vm1135 = vcmp.lt.s32.totalorder %v491, %v1052
        %vm1136 = vcmp.lt.s32.totalorder %v492, %v1052
        %vm1137 = vcmp.lt.s32.totalorder %v493, %v1052
        %vm1138 = vcmp.lt.s32.totalorder %v494, %v1052
        %vm1139 = vcmp.lt.s32.totalorder %v495, %v1052
        %vm1140 = vcmp.lt.s32.totalorder %v496, %v1052
        %vm1141 = vcmp.lt.s32.totalorder %v497, %v1052
        %vm1142 = vcmp.lt.s32.totalorder %v498, %v1052
        %vm1143 = vcmp.lt.s32.totalorder %v499, %v1052
        %vm1144 = vcmp.lt.s32.totalorder %v500, %v1052
        %vm1145 = vcmp.lt.s32.totalorder %v501, %v1052
        %vm1146 = vcmp.lt.s32.totalorder %v502, %v1052
        %vm1147 = vcmp.lt.s32.totalorder %v503, %v1052
        %vm1148 = vcmp.lt.s32.totalorder %v504, %v1052
        %vm1149 = vcmp.lt.s32.totalorder %v505, %v1052
        %vm1150 = vcmp.lt.s32.totalorder %v506, %v1052
        %vm1151 = vcmp.lt.s32.totalorder %v507, %v1052
        %vm1152 = vcmp.lt.s32.totalorder %v508, %v1052
        %vm1153 = vcmp.lt.s32.totalorder %v509, %v1052
        %vm1154 = vcmp.lt.s32.totalorder %v510, %v1052
        %vm1155 = vcmp.lt.s32.totalorder %v511, %v1052
        %vm1156 = vcmp.lt.s32.totalorder %v512, %v1052
        %vm1157 = vcmp.lt.s32.totalorder %v513, %v1052
        %vm1158 = vcmp.lt.s32.totalorder %v514, %v1052
        %vm1159 = vcmp.lt.s32.totalorder %v515, %v1052
        %vm1160 = vcmp.lt.s32.totalorder %v516, %v1052
        %vm1161 = vcmp.lt.s32.totalorder %v517, %v1052
        %vm1162 = vcmp.lt.s32.totalorder %v518, %v1052
        %vm1163 = vcmp.lt.s32.totalorder %v519, %v1052
        %vm1164 = vcmp.lt.s32.totalorder %v520, %v1052
        %vm1165 = vcmp.lt.s32.totalorder %v521, %v1052
        %vm1166 = vcmp.lt.s32.totalorder %v522, %v1052
        %vm1167 = vcmp.lt.s32.totalorder %v523, %v1052
        %vm1168 = vcmp.lt.s32.totalorder %v524, %v1052
        %vm1169 = vcmp.lt.s32.totalorder %v525, %v1052
        %vm1170 = vcmp.lt.s32.totalorder %v526, %v1052
        %vm1171 = vcmp.lt.s32.totalorder %v527, %v1052
        %vm1172 = vcmp.lt.s32.totalorder %v528, %v1052
        %vm1173 = vcmp.lt.s32.totalorder %v529, %v1052
        %vm1174 = vcmp.lt.s32.totalorder %v530, %v1052
        %vm1175 = vcmp.lt.s32.totalorder %v531, %v1052
        %vm1176 = vcmp.lt.s32.totalorder %v532, %v1052
        %vm1177 = vcmp.lt.s32.totalorder %v533, %v1052
        %vm1178 = vcmp.lt.s32.totalorder %v534, %v1052
        %vm1179 = vcmp.lt.s32.totalorder %v535, %v1052
        %vm1180 = vcmp.lt.s32.totalorder %v536, %v1052
        %vm1181 = vcmp.lt.s32.totalorder %v537, %v1052
        %vm1182 = vcmp.lt.s32.totalorder %v538, %v1052
        %vm1183 = vcmp.lt.s32.totalorder %v539, %v1052
        %vm1184 = vcmp.lt.s32.totalorder %v540, %v1052
        %vm1185 = vcmp.lt.s32.totalorder %v541, %v1052
        %vm1186 = vcmp.lt.s32.totalorder %v542, %v1052
        %vm1187 = vcmp.lt.s32.totalorder %v543, %v1052
        %vm1188 = vcmp.lt.s32.totalorder %v544, %v1052
        %vm1189 = vcmp.lt.s32.totalorder %v545, %v1052
        %vm1190 = vcmp.lt.s32.totalorder %v546, %v1052
        %vm1191 = vcmp.lt.s32.totalorder %v547, %v1052
        %vm1192 = vcmp.lt.s32.totalorder %v548, %v1052
        %vm1193 = vcmp.lt.s32.totalorder %v549, %v1052
        %vm1194 = vcmp.lt.s32.totalorder %v550, %v1052
        %vm1195 = vcmp.lt.s32.totalorder %v551, %v1052
        %vm1196 = vcmp.lt.s32.totalorder %v552, %v1052
        %vm1197 = vcmp.lt.s32.totalorder %v553, %v1052
        %vm1198 = vcmp.lt.s32.totalorder %v554, %v1052
        %vm1199 = vcmp.lt.s32.totalorder %v555, %v1052
        %vm1200 = vcmp.lt.s32.totalorder %v556, %v1052
        %vm1201 = vcmp.lt.s32.totalorder %v557, %v1052
        %vm1202 = vcmp.lt.s32.totalorder %v558, %v1052
        %vm1203 = vcmp.lt.s32.totalorder %v559, %v1052
        %vm1204 = vcmp.lt.s32.totalorder %v560, %v1052
        %vm1205 = vcmp.lt.s32.totalorder %v561, %v1052
        %vm1206 = vcmp.lt.s32.totalorder %v562, %v1052
        %vm1207 = vcmp.lt.s32.totalorder %v563, %v1052
        %vm1208 = vcmp.lt.s32.totalorder %v564, %v1052
        %vm1209 = vcmp.lt.s32.totalorder %v565, %v1052
        %vm1210 = vcmp.lt.s32.totalorder %v566, %v1052
        %vm1211 = vcmp.lt.s32.totalorder %v567, %v1052
        %vm1212 = vcmp.lt.s32.totalorder %v568, %v1052
        %vm1213 = vcmp.lt.s32.totalorder %v569, %v1052
        %vm1214 = vcmp.lt.s32.totalorder %v570, %v1052
        %vm1215 = vcmp.lt.s32.totalorder %v571, %v1052
        %vm1216 = vcmp.lt.s32.totalorder %v572, %v1052
        %vm1217 = vcmp.lt.s32.totalorder %v573, %v1052
        %vm1218 = vcmp.lt.s32.totalorder %v574, %v1052
        %vm1219 = vcmp.lt.s32.totalorder %v575, %v1052
        %vm1220 = vcmp.lt.s32.totalorder %v576, %v1052
        %vm1221 = vcmp.lt.s32.totalorder %v577, %v1052
        %vm1222 = vcmp.lt.s32.totalorder %v578, %v1052
        %vm1223 = vcmp.lt.s32.totalorder %v579, %v1052
        %vm1224 = vcmp.lt.s32.totalorder %v580, %v1052
        %vm1225 = vcmp.lt.s32.totalorder %v581, %v1052
        %vm1226 = vcmp.lt.s32.totalorder %v582, %v1052
        %vm1227 = vcmp.lt.s32.totalorder %v583, %v1052
        %vm1228 = vcmp.lt.s32.totalorder %v584, %v1052
        %vm1229 = vcmp.lt.s32.totalorder %v585, %v1052
        %vm1230 = vcmp.lt.s32.totalorder %v586, %v1052
        %vm1231 = vcmp.lt.s32.totalorder %v587, %v1052
        %vm1232 = vcmp.lt.s32.totalorder %v588, %v1052
        %vm1233 = vcmp.lt.s32.totalorder %v589, %v1052
        %vm1234 = vcmp.lt.s32.totalorder %v590, %v1052
        %vm1235 = vcmp.lt.s32.totalorder %v591, %v1052
        %vm1236 = vcmp.lt.s32.totalorder %v592, %v1052
        %vm1237 = vcmp.lt.s32.totalorder %v593, %v1052
        %vm1238 = vcmp.lt.s32.totalorder %v594, %v1052
        %vm1239 = vcmp.lt.s32.totalorder %v595, %v1052
        %vm1240 = vcmp.lt.s32.totalorder %v596, %v1052
        %vm1241 = vcmp.lt.s32.totalorder %v597, %v1052
        %vm1242 = vcmp.lt.s32.totalorder %v598, %v1052
        %vm1243 = vcmp.lt.s32.totalorder %v599, %v1052
        %vm1244 = vcmp.lt.s32.totalorder %v600, %v1052
        %vm1245 = vcmp.lt.s32.totalorder %v601, %v1052
        %vm1246 = vcmp.lt.s32.totalorder %v602, %v1052
        %vm1247 = vcmp.lt.s32.totalorder %v603, %v1052
        %vm1248 = vcmp.lt.s32.totalorder %v604, %v1052
        %vm1249 = vcmp.lt.s32.totalorder %v605, %v1052
        %vm1250 = vcmp.lt.s32.totalorder %v606, %v1052
        %vm1251 = vcmp.lt.s32.totalorder %v607, %v1052
        %vm1252 = vcmp.lt.s32.totalorder %v608, %v1052
        %vm1253 = vcmp.lt.s32.totalorder %v609, %v1052
        %vm1254 = vcmp.lt.s32.totalorder %v610, %v1052
        %vm1255 = vcmp.lt.s32.totalorder %v611, %v1052
        %vm1256 = vcmp.lt.s32.totalorder %v612, %v1052
        %vm1257 = vcmp.lt.s32.totalorder %v613, %v1052
        %vm1258 = vcmp.lt.s32.totalorder %v614, %v1052
        %vm1259 = vcmp.lt.s32.totalorder %v615, %v1052
        %vm1260 = vcmp.lt.s32.totalorder %v616, %v1052
        %vm1261 = vcmp.lt.s32.totalorder %v617, %v1052
        %vm1262 = vcmp.lt.s32.totalorder %v618, %v1052
        %vm1263 = vcmp.lt.s32.totalorder %v619, %v1052
        %vm1264 = vcmp.lt.s32.totalorder %v620, %v1052
        %vm1265 = vcmp.lt.s32.totalorder %v621, %v1052
        %vm1266 = vcmp.lt.s32.totalorder %v622, %v1052
        %vm1267 = vcmp.lt.s32.totalorder %v623, %v1052
        %vm1268 = vcmp.lt.s32.totalorder %v624, %v1052
        %vm1269 = vcmp.lt.s32.totalorder %v625, %v1052
        %vm1270 = vcmp.lt.s32.totalorder %v626, %v1052
        %vm1271 = vcmp.lt.s32.totalorder %v627, %v1052
        %vm1272 = vcmp.lt.s32.totalorder %v628, %v1052
        %vm1273 = vcmp.lt.s32.totalorder %v629, %v1052
        %vm1274 = vcmp.lt.s32.totalorder %v630, %v1052
        %vm1275 = vcmp.lt.s32.totalorder %v631, %v1052
        %vm1276 = vcmp.lt.s32.totalorder %v632, %v1052
        %vm1277 = vcmp.lt.s32.totalorder %v633, %v1052
        %vm1278 = vcmp.lt.s32.totalorder %v634, %v1052
        %vm1279 = vcmp.lt.s32.totalorder %v635, %v1052
        %vm1280 = vcmp.lt.s32.totalorder %v636, %v1052
        %vm1281 = vcmp.lt.s32.totalorder %v637, %v1052
        %vm1282 = vcmp.lt.s32.totalorder %v638, %v1052
        %vm1283 = vcmp.lt.s32.totalorder %v639, %v1052
        %vm1284 = vcmp.lt.s32.totalorder %v640, %v1052
        %vm1285 = vcmp.lt.s32.totalorder %v641, %v1052
        %vm1286 = vcmp.lt.s32.totalorder %v642, %v1052
        %vm1287 = vcmp.lt.s32.totalorder %v643, %v1052
        %vm1288 = vcmp.lt.s32.totalorder %v644, %v1052
        %vm1289 = vcmp.lt.s32.totalorder %v645, %v1052
        %vm1290 = vcmp.lt.s32.totalorder %v646, %v1052
        %vm1291 = vcmp.lt.s32.totalorder %v647, %v1052
        %vm1292 = vcmp.lt.s32.totalorder %v648, %v1052
        %vm1293 = vcmp.lt.s32.totalorder %v649, %v1052
        %vm1294 = vcmp.lt.s32.totalorder %v650, %v1052
        %vm1295 = vcmp.lt.s32.totalorder %v651, %v1052
        %vm1296 = vcmp.lt.s32.totalorder %v652, %v1052
        %vm1297 = vcmp.lt.s32.totalorder %v653, %v1052
        %vm1298 = vcmp.lt.s32.totalorder %v654, %v1052
        %vm1299 = vcmp.lt.s32.totalorder %v655, %v1052
        %vm1300 = vcmp.lt.s32.totalorder %v656, %v1052
        %vm1301 = vcmp.lt.s32.totalorder %v657, %v1052
        %vm1302 = vcmp.lt.s32.totalorder %v658, %v1052
        %vm1303 = vcmp.lt.s32.totalorder %v659, %v1052
        %vm1304 = vcmp.lt.s32.totalorder %v660, %v1052
        %vm1305 = vcmp.lt.s32.totalorder %v661, %v1052
        %vm1306 = vcmp.lt.s32.totalorder %v662, %v1052
        %vm1307 = vcmp.lt.s32.totalorder %v663, %v1052
        %vm1308 = vcmp.lt.s32.totalorder %v664, %v1052
        %vm1309 = vcmp.lt.s32.totalorder %v665, %v1052
        %vm1310 = vcmp.lt.s32.totalorder %v666, %v1052
        %vm1311 = vcmp.lt.s32.totalorder %v667, %v1052
        %vm1312 = vcmp.lt.s32.totalorder %v668, %v1052
        %vm1313 = vcmp.lt.s32.totalorder %v669, %v1052
        %vm1314 = vcmp.lt.s32.totalorder %v670, %v1052
        %vm1315 = vcmp.lt.s32.totalorder %v671, %v1052
        %vm1316 = vcmp.lt.s32.totalorder %v672, %v1052
        %vm1317 = vcmp.lt.s32.totalorder %v673, %v1052
        %vm1318 = vcmp.lt.s32.totalorder %v674, %v1052
        %vm1319 = vcmp.lt.s32.totalorder %v675, %v1052
        %vm1320 = vcmp.lt.s32.totalorder %v676, %v1052
        %vm1321 = vcmp.lt.s32.totalorder %v677, %v1052
        %vm1322 = vcmp.lt.s32.totalorder %v678, %v1052
        %vm1323 = vcmp.lt.s32.totalorder %v679, %v1052
        %vm1324 = vcmp.lt.s32.totalorder %v680, %v1052
        %vm1325 = vcmp.lt.s32.totalorder %v681, %v1052
        %vm1326 = vcmp.lt.s32.totalorder %v682, %v1052
        %vm1327 = vcmp.lt.s32.totalorder %v683, %v1052
        %vm1328 = vcmp.lt.s32.totalorder %v684, %v1052
        %vm1329 = vcmp.lt.s32.totalorder %v685, %v1052
        %vm1330 = vcmp.lt.s32.totalorder %v686, %v1052
        %vm1331 = vcmp.lt.s32.totalorder %v687, %v1052
        %vm1332 = vcmp.lt.s32.totalorder %v688, %v1052
        %vm1333 = vcmp.lt.s32.totalorder %v689, %v1052
        %vm1334 = vcmp.lt.s32.totalorder %v690, %v1052
        %vm1335 = vcmp.lt.s32.totalorder %v691, %v1052
        %vm1336 = vcmp.lt.s32.totalorder %v692, %v1052
        %vm1337 = vcmp.lt.s32.totalorder %v693, %v1052
        %vm1338 = vcmp.lt.s32.totalorder %v694, %v1052
        %vm1339 = vcmp.lt.s32.totalorder %v695, %v1052
        %vm1340 = vcmp.lt.s32.totalorder %v696, %v1052
        %vm1341 = vcmp.lt.s32.totalorder %v697, %v1052
        %vm1342 = vcmp.lt.s32.totalorder %v698, %v1052
        %vm1343 = vcmp.lt.s32.totalorder %v699, %v1052
        %vm1344 = vcmp.lt.s32.totalorder %v700, %v1052
        %vm1345 = vcmp.lt.s32.totalorder %v701, %v1052
        %vm1346 = vcmp.lt.s32.totalorder %v702, %v1052
        %vm1347 = vcmp.lt.s32.totalorder %v703, %v1052
        %vm1348 = vcmp.lt.s32.totalorder %v704, %v1052
        %vm1349 = vcmp.lt.s32.totalorder %v705, %v1052
        %vm1350 = vcmp.lt.s32.totalorder %v706, %v1052
        %vm1351 = vcmp.lt.s32.totalorder %v707, %v1052
        %vm1352 = vcmp.lt.s32.totalorder %v708, %v1052
        %vm1353 = vcmp.lt.s32.totalorder %v709, %v1052
        %vm1354 = vcmp.lt.s32.totalorder %v710, %v1052
        %vm1355 = vcmp.lt.s32.totalorder %v711, %v1052
        %vm1356 = vcmp.lt.s32.totalorder %v712, %v1052
        %vm1357 = vcmp.lt.s32.totalorder %v713, %v1052
        %vm1358 = vcmp.lt.s32.totalorder %v714, %v1052
        %vm1359 = vcmp.lt.s32.totalorder %v715, %v1052
        %vm1360 = vcmp.lt.s32.totalorder %v716, %v1052
        %vm1361 = vcmp.lt.s32.totalorder %v717, %v1052
        %vm1362 = vcmp.lt.s32.totalorder %v718, %v1052
        %vm1363 = vcmp.lt.s32.totalorder %v719, %v1052
        %vm1364 = vcmp.lt.s32.totalorder %v720, %v1052
        %vm1365 = vcmp.lt.s32.totalorder %v721, %v1052
        %vm1366 = vcmp.lt.s32.totalorder %v722, %v1052
        %vm1367 = vcmp.lt.s32.totalorder %v723, %v1052
        %vm1368 = vcmp.lt.s32.totalorder %v724, %v1052
        %vm1369 = vcmp.lt.s32.totalorder %v725, %v1052
        %vm1370 = vcmp.lt.s32.totalorder %v726, %v1052
        %vm1371 = vcmp.lt.s32.totalorder %v727, %v1052
        %vm1372 = vcmp.lt.s32.totalorder %v728, %v1052
        %vm1373 = vmand %vm732, %vm1053
        %vm1374 = vmand %vm733, %vm1054
        %vm1375 = vmand %vm734, %vm1055
        %vm1376 = vmand %vm735, %vm1056
        %vm1377 = vmand %vm736, %vm1057
        %vm1378 = vmand %vm737, %vm1058
        %vm1379 = vmand %vm738, %vm1059
        %vm1380 = vmand %vm739, %vm1060
        %vm1381 = vmand %vm740, %vm1061
        %vm1382 = vmand %vm741, %vm1062
        %vm1383 = vmand %vm742, %vm1063
        %vm1384 = vmand %vm743, %vm1064
        %vm1385 = vmand %vm744, %vm1065
        %vm1386 = vmand %vm745, %vm1066
        %vm1387 = vmand %vm746, %vm1067
        %vm1388 = vmand %vm747, %vm1068
        %vm1389 = vmand %vm748, %vm1069
        %vm1390 = vmand %vm749, %vm1070
        %vm1391 = vmand %vm750, %vm1071
        %vm1392 = vmand %vm751, %vm1072
        %vm1393 = vmand %vm752, %vm1073
        %vm1394 = vmand %vm753, %vm1074
        %vm1395 = vmand %vm754, %vm1075
        %vm1396 = vmand %vm755, %vm1076
        %vm1397 = vmand %vm756, %vm1077
        %vm1398 = vmand %vm757, %vm1078
        %vm1399 = vmand %vm758, %vm1079
        %vm1400 = vmand %vm759, %vm1080
        %vm1401 = vmand %vm760, %vm1081
        %vm1402 = vmand %vm761, %vm1082
        %vm1403 = vmand %vm762, %vm1083
        %vm1404 = vmand %vm763, %vm1084
        %vm1405 = vmand %vm764, %vm1085
        %vm1406 = vmand %vm765, %vm1086
        %vm1407 = vmand %vm766, %vm1087
        %vm1408 = vmand %vm767, %vm1088
        %vm1409 = vmand %vm768, %vm1089
        %vm1410 = vmand %vm769, %vm1090
        %vm1411 = vmand %vm770, %vm1091
        %vm1412 = vmand %vm771, %vm1092
        %vm1413 = vmand %vm772, %vm1093
        %vm1414 = vmand %vm773, %vm1094
        %vm1415 = vmand %vm774, %vm1095
        %vm1416 = vmand %vm775, %vm1096
        %vm1417 = vmand %vm776, %vm1097
        %vm1418 = vmand %vm777, %vm1098
        %vm1419 = vmand %vm778, %vm1099
        %vm1420 = vmand %vm779, %vm1100
        %vm1421 = vmand %vm780, %vm1101
        %vm1422 = vmand %vm781, %vm1102
        %vm1423 = vmand %vm782, %vm1103
        %vm1424 = vmand %vm783, %vm1104
        %vm1425 = vmand %vm784, %vm1105
        %vm1426 = vmand %vm785, %vm1106
        %vm1427 = vmand %vm786, %vm1107
        %vm1428 = vmand %vm787, %vm1108
        %vm1429 = vmand %vm788, %vm1109
        %vm1430 = vmand %vm789, %vm1110
        %vm1431 = vmand %vm790, %vm1111
        %vm1432 = vmand %vm791, %vm1112
        %vm1433 = vmand %vm792, %vm1113
        %vm1434 = vmand %vm793, %vm1114
        %vm1435 = vmand %vm794, %vm1115
        %vm1436 = vmand %vm795, %vm1116
        %vm1437 = vmand %vm796, %vm1117
        %vm1438 = vmand %vm797, %vm1118
        %vm1439 = vmand %vm798, %vm1119
        %vm1440 = vmand %vm799, %vm1120
        %vm1441 = vmand %vm800, %vm1121
        %vm1442 = vmand %vm801, %vm1122
        %vm1443 = vmand %vm802, %vm1123
        %vm1444 = vmand %vm803, %vm1124
        %vm1445 = vmand %vm804, %vm1125
        %vm1446 = vmand %vm805, %vm1126
        %vm1447 = vmand %vm806, %vm1127
        %vm1448 = vmand %vm807, %vm1128
        %vm1449 = vmand %vm808, %vm1129
        %vm1450 = vmand %vm809, %vm1130
        %vm1451 = vmand %vm810, %vm1131
        %vm1452 = vmand %vm811, %vm1132
        %vm1453 = vmand %vm812, %vm1133
        %vm1454 = vmand %vm813, %vm1134
        %vm1455 = vmand %vm814, %vm1135
        %vm1456 = vmand %vm815, %vm1136
        %vm1457 = vmand %vm816, %vm1137
        %vm1458 = vmand %vm817, %vm1138
        %vm1459 = vmand %vm818, %vm1139
        %vm1460 = vmand %vm819, %vm1140
        %vm1461 = vmand %vm820, %vm1141
        %vm1462 = vmand %vm821, %vm1142
        %vm1463 = vmand %vm822, %vm1143
        %vm1464 = vmand %vm823, %vm1144
        %vm1465 = vmand %vm824, %vm1145
        %vm1466 = vmand %vm825, %vm1146
        %vm1467 = vmand %vm826, %vm1147
        %vm1468 = vmand %vm827, %vm1148
        %vm1469 = vmand %vm828, %vm1149
        %vm1470 = vmand %vm829, %vm1150
        %vm1471 = vmand %vm830, %vm1151
        %vm1472 = vmand %vm831, %vm1152
        %vm1473 = vmand %vm832, %vm1153
        %vm1474 = vmand %vm833, %vm1154
        %vm1475 = vmand %vm834, %vm1155
        %vm1476 = vmand %vm835, %vm1156
        %vm1477 = vmand %vm836, %vm1157
        %vm1478 = vmand %vm837, %vm1158
        %vm1479 = vmand %vm838, %vm1159
        %vm1480 = vmand %vm839, %vm1160
        %vm1481 = vmand %vm840, %vm1161
        %vm1482 = vmand %vm841, %vm1162
        %vm1483 = vmand %vm842, %vm1163
        %vm1484 = vmand %vm843, %vm1164
        %vm1485 = vmand %vm844, %vm1165
        %vm1486 = vmand %vm845, %vm1166
        %vm1487 = vmand %vm846, %vm1167
        %vm1488 = vmand %vm847, %vm1168
        %vm1489 = vmand %vm848, %vm1169
        %vm1490 = vmand %vm849, %vm1170
        %vm1491 = vmand %vm850, %vm1171
        %vm1492 = vmand %vm851, %vm1172
        %vm1493 = vmand %vm852, %vm1173
        %vm1494 = vmand %vm853, %vm1174
        %vm1495 = vmand %vm854, %vm1175
        %vm1496 = vmand %vm855, %vm1176
        %vm1497 = vmand %vm856, %vm1177
        %vm1498 = vmand %vm857, %vm1178
        %vm1499 = vmand %vm858, %vm1179
        %vm1500 = vmand %vm859, %vm1180
        %vm1501 = vmand %vm860, %vm1181
        %vm1502 = vmand %vm861, %vm1182
        %vm1503 = vmand %vm862, %vm1183
        %vm1504 = vmand %vm863, %vm1184
        %vm1505 = vmand %vm864, %vm1185
        %vm1506 = vmand %vm865, %vm1186
        %vm1507 = vmand %vm866, %vm1187
        %vm1508 = vmand %vm867, %vm1188
        %vm1509 = vmand %vm868, %vm1189
        %vm1510 = vmand %vm869, %vm1190
        %vm1511 = vmand %vm870, %vm1191
        %vm1512 = vmand %vm871, %vm1192
        %vm1513 = vmand %vm872, %vm1193
        %vm1514 = vmand %vm873, %vm1194
        %vm1515 = vmand %vm874, %vm1195
        %vm1516 = vmand %vm875, %vm1196
        %vm1517 = vmand %vm876, %vm1197
        %vm1518 = vmand %vm877, %vm1198
        %vm1519 = vmand %vm878, %vm1199
        %vm1520 = vmand %vm879, %vm1200
        %vm1521 = vmand %vm880, %vm1201
        %vm1522 = vmand %vm881, %vm1202
        %vm1523 = vmand %vm882, %vm1203
        %vm1524 = vmand %vm883, %vm1204
        %vm1525 = vmand %vm884, %vm1205
        %vm1526 = vmand %vm885, %vm1206
        %vm1527 = vmand %vm886, %vm1207
        %vm1528 = vmand %vm887, %vm1208
        %vm1529 = vmand %vm888, %vm1209
        %vm1530 = vmand %vm889, %vm1210
        %vm1531 = vmand %vm890, %vm1211
        %vm1532 = vmand %vm891, %vm1212
        %vm1533 = vmand %vm892, %vm1213
        %vm1534 = vmand %vm893, %vm1214
        %vm1535 = vmand %vm894, %vm1215
        %vm1536 = vmand %vm895, %vm1216
        %vm1537 = vmand %vm896, %vm1217
        %vm1538 = vmand %vm897, %vm1218
        %vm1539 = vmand %vm898, %vm1219
        %vm1540 = vmand %vm899, %vm1220
        %vm1541 = vmand %vm900, %vm1221
        %vm1542 = vmand %vm901, %vm1222
        %vm1543 = vmand %vm902, %vm1223
        %vm1544 = vmand %vm903, %vm1224
        %vm1545 = vmand %vm904, %vm1225
        %vm1546 = vmand %vm905, %vm1226
        %vm1547 = vmand %vm906, %vm1227
        %vm1548 = vmand %vm907, %vm1228
        %vm1549 = vmand %vm908, %vm1229
        %vm1550 = vmand %vm909, %vm1230
        %vm1551 = vmand %vm910, %vm1231
        %vm1552 = vmand %vm911, %vm1232
        %vm1553 = vmand %vm912, %vm1233
        %vm1554 = vmand %vm913, %vm1234
        %vm1555 = vmand %vm914, %vm1235
        %vm1556 = vmand %vm915, %vm1236
        %vm1557 = vmand %vm916, %vm1237
        %vm1558 = vmand %vm917, %vm1238
        %vm1559 = vmand %vm918, %vm1239
        %vm1560 = vmand %vm919, %vm1240
        %vm1561 = vmand %vm920, %vm1241
        %vm1562 = vmand %vm921, %vm1242
        %vm1563 = vmand %vm922, %vm1243
        %vm1564 = vmand %vm923, %vm1244
        %vm1565 = vmand %vm924, %vm1245
        %vm1566 = vmand %vm925, %vm1246
        %vm1567 = vmand %vm926, %vm1247
        %vm1568 = vmand %vm927, %vm1248
        %vm1569 = vmand %vm928, %vm1249
        %vm1570 = vmand %vm929, %vm1250
        %vm1571 = vmand %vm930, %vm1251
        %vm1572 = vmand %vm931, %vm1252
        %vm1573 = vmand %vm932, %vm1253
        %vm1574 = vmand %vm933, %vm1254
        %vm1575 = vmand %vm934, %vm1255
        %vm1576 = vmand %vm935, %vm1256
        %vm1577 = vmand %vm936, %vm1257
        %vm1578 = vmand %vm937, %vm1258
        %vm1579 = vmand %vm938, %vm1259
        %vm1580 = vmand %vm939, %vm1260
        %vm1581 = vmand %vm940, %vm1261
        %vm1582 = vmand %vm941, %vm1262
        %vm1583 = vmand %vm942, %vm1263
        %vm1584 = vmand %vm943, %vm1264
        %vm1585 = vmand %vm944, %vm1265
        %vm1586 = vmand %vm945, %vm1266
        %vm1587 = vmand %vm946, %vm1267
        %vm1588 = vmand %vm947, %vm1268
        %vm1589 = vmand %vm948, %vm1269
        %vm1590 = vmand %vm949, %vm1270
        %vm1591 = vmand %vm950, %vm1271
        %vm1592 = vmand %vm951, %vm1272
        %vm1593 = vmand %vm952, %vm1273
        %vm1594 = vmand %vm953, %vm1274
        %vm1595 = vmand %vm954, %vm1275
        %vm1596 = vmand %vm955, %vm1276
        %vm1597 = vmand %vm956, %vm1277
        %vm1598 = vmand %vm957, %vm1278
        %vm1599 = vmand %vm958, %vm1279
        %vm1600 = vmand %vm959, %vm1280
        %vm1601 = vmand %vm960, %vm1281
        %vm1602 = vmand %vm961, %vm1282
        %vm1603 = vmand %vm962, %vm1283
        %vm1604 = vmand %vm963, %vm1284
        %vm1605 = vmand %vm964, %vm1285
        %vm1606 = vmand %vm965, %vm1286
        %vm1607 = vmand %vm966, %vm1287
        %vm1608 = vmand %vm967, %vm1288
        %vm1609 = vmand %vm968, %vm1289
        %vm1610 = vmand %vm969, %vm1290
        %vm1611 = vmand %vm970, %vm1291
        %vm1612 = vmand %vm971, %vm1292
        %vm1613 = vmand %vm972, %vm1293
        %vm1614 = vmand %vm973, %vm1294
        %vm1615 = vmand %vm974, %vm1295
        %vm1616 = vmand %vm975, %vm1296
        %vm1617 = vmand %vm976, %vm1297
        %vm1618 = vmand %vm977, %vm1298
        %vm1619 = vmand %vm978, %vm1299
        %vm1620 = vmand %vm979, %vm1300
        %vm1621 = vmand %vm980, %vm1301
        %vm1622 = vmand %vm981, %vm1302
        %vm1623 = vmand %vm982, %vm1303
        %vm1624 = vmand %vm983, %vm1304
        %vm1625 = vmand %vm984, %vm1305
        %vm1626 = vmand %vm985, %vm1306
        %vm1627 = vmand %vm986, %vm1307
        %vm1628 = vmand %vm987, %vm1308
        %vm1629 = vmand %vm988, %vm1309
        %vm1630 = vmand %vm989, %vm1310
        %vm1631 = vmand %vm990, %vm1311
        %vm1632 = vmand %vm991, %vm1312
        %vm1633 = vmand %vm992, %vm1313
        %vm1634 = vmand %vm993, %vm1314
        %vm1635 = vmand %vm994, %vm1315
        %vm1636 = vmand %vm995, %vm1316
        %vm1637 = vmand %vm996, %vm1317
        %vm1638 = vmand %vm997, %vm1318
        %vm1639 = vmand %vm998, %vm1319
        %vm1640 = vmand %vm999, %vm1320
        %vm1641 = vmand %vm1000, %vm1321
        %vm1642 = vmand %vm1001, %vm1322
        %vm1643 = vmand %vm1002, %vm1323
        %vm1644 = vmand %vm1003, %vm1324
        %vm1645 = vmand %vm1004, %vm1325
        %vm1646 = vmand %vm1005, %vm1326
        %vm1647 = vmand %vm1006, %vm1327
        %vm1648 = vmand %vm1007, %vm1328
        %vm1649 = vmand %vm1008, %vm1329
        %vm1650 = vmand %vm1009, %vm1330
        %vm1651 = vmand %vm1010, %vm1331
        %vm1652 = vmand %vm1011, %vm1332
        %vm1653 = vmand %vm1012, %vm1333
        %vm1654 = vmand %vm1013, %vm1334
        %vm1655 = vmand %vm1014, %vm1335
        %vm1656 = vmand %vm1015, %vm1336
        %vm1657 = vmand %vm1016, %vm1337
        %vm1658 = vmand %vm1017, %vm1338
        %vm1659 = vmand %vm1018, %vm1339
        %vm1660 = vmand %vm1019, %vm1340
        %vm1661 = vmand %vm1020, %vm1341
        %vm1662 = vmand %vm1021, %vm1342
        %vm1663 = vmand %vm1022, %vm1343
        %vm1664 = vmand %vm1023, %vm1344
        %vm1665 = vmand %vm1024, %vm1345
        %vm1666 = vmand %vm1025, %vm1346
        %vm1667 = vmand %vm1026, %vm1347
        %vm1668 = vmand %vm1027, %vm1348
        %vm1669 = vmand %vm1028, %vm1349
        %vm1670 = vmand %vm1029, %vm1350
        %vm1671 = vmand %vm1030, %vm1351
        %vm1672 = vmand %vm1031, %vm1352
        %vm1673 = vmand %vm1032, %vm1353
        %vm1674 = vmand %vm1033, %vm1354
        %vm1675 = vmand %vm1034, %vm1355
        %vm1676 = vmand %vm1035, %vm1356
        %vm1677 = vmand %vm1036, %vm1357
        %vm1678 = vmand %vm1037, %vm1358
        %vm1679 = vmand %vm1038, %vm1359
        %vm1680 = vmand %vm1039, %vm1360
        %vm1681 = vmand %vm1040, %vm1361
        %vm1682 = vmand %vm1041, %vm1362
        %vm1683 = vmand %vm1042, %vm1363
        %vm1684 = vmand %vm1043, %vm1364
        %vm1685 = vmand %vm1044, %vm1365
        %vm1686 = vmand %vm1045, %vm1366
        %vm1687 = vmand %vm1046, %vm1367
        %vm1688 = vmand %vm1047, %vm1368
        %vm1689 = vmand %vm1048, %vm1369
        %vm1690 = vmand %vm1049, %vm1370
        %vm1691 = vmand %vm1050, %vm1371
        %vm1692 = vmand %vm1051, %vm1372
        %v1693 = vsel %vm1373, 1, 0
        %v1694 = vsel %vm1374, 1, 0
        %v1695 = vsel %vm1375, 1, 0
        %v1696 = vsel %vm1376, 1, 0
        %v1697 = vsel %vm1377, 1, 0
        %v1698 = vsel %vm1378, 1, 0
        %v1699 = vsel %vm1379, 1, 0
        %v1700 = vsel %vm1380, 1, 0
        %v1701 = vsel %vm1381, 1, 0
        %v1702 = vsel %vm1382, 1, 0
        %v1703 = vsel %vm1383, 1, 0
        %v1704 = vsel %vm1384, 1, 0
        %v1705 = vsel %vm1385, 1, 0
        %v1706 = vsel %vm1386, 1, 0
        %v1707 = vsel %vm1387, 1, 0
        %v1708 = vsel %vm1388, 1, 0
        %v1709 = vsel %vm1389, 1, 0
        %v1710 = vsel %vm1390, 1, 0
        %v1711 = vsel %vm1391, 1, 0
        %v1712 = vsel %vm1392, 1, 0
        %v1713 = vsel %vm1393, 1, 0
        %v1714 = vsel %vm1394, 1, 0
        %v1715 = vsel %vm1395, 1, 0
        %v1716 = vsel %vm1396, 1, 0
        %v1717 = vsel %vm1397, 1, 0
        %v1718 = vsel %vm1398, 1, 0
        %v1719 = vsel %vm1399, 1, 0
        %v1720 = vsel %vm1400, 1, 0
        %v1721 = vsel %vm1401, 1, 0
        %v1722 = vsel %vm1402, 1, 0
        %v1723 = vsel %vm1403, 1, 0
        %v1724 = vsel %vm1404, 1, 0
        %v1725 = vsel %vm1405, 1, 0
        %v1726 = vsel %vm1406, 1, 0
        %v1727 = vsel %vm1407, 1, 0
        %v1728 = vsel %vm1408, 1, 0
        %v1729 = vsel %vm1409, 1, 0
        %v1730 = vsel %vm1410, 1, 0
        %v1731 = vsel %vm1411, 1, 0
        %v1732 = vsel %vm1412, 1, 0
        %v1733 = vsel %vm1413, 1, 0
        %v1734 = vsel %vm1414, 1, 0
        %v1735 = vsel %vm1415, 1, 0
        %v1736 = vsel %vm1416, 1, 0
        %v1737 = vsel %vm1417, 1, 0
        %v1738 = vsel %vm1418, 1, 0
        %v1739 = vsel %vm1419, 1, 0
        %v1740 = vsel %vm1420, 1, 0
        %v1741 = vsel %vm1421, 1, 0
        %v1742 = vsel %vm1422, 1, 0
        %v1743 = vsel %vm1423, 1, 0
        %v1744 = vsel %vm1424, 1, 0
        %v1745 = vsel %vm1425, 1, 0
        %v1746 = vsel %vm1426, 1, 0
        %v1747 = vsel %vm1427, 1, 0
        %v1748 = vsel %vm1428, 1, 0
        %v1749 = vsel %vm1429, 1, 0
        %v1750 = vsel %vm1430, 1, 0
        %v1751 = vsel %vm1431, 1, 0
        %v1752 = vsel %vm1432, 1, 0
        %v1753 = vsel %vm1433, 1, 0
        %v1754 = vsel %vm1434, 1, 0
        %v1755 = vsel %vm1435, 1, 0
        %v1756 = vsel %vm1436, 1, 0
        %v1757 = vsel %vm1437, 1, 0
        %v1758 = vsel %vm1438, 1, 0
        %v1759 = vsel %vm1439, 1, 0
        %v1760 = vsel %vm1440, 1, 0
        %v1761 = vsel %vm1441, 1, 0
        %v1762 = vsel %vm1442, 1, 0
        %v1763 = vsel %vm1443, 1, 0
        %v1764 = vsel %vm1444, 1, 0
        %v1765 = vsel %vm1445, 1, 0
        %v1766 = vsel %vm1446, 1, 0
        %v1767 = vsel %vm1447, 1, 0
        %v1768 = vsel %vm1448, 1, 0
        %v1769 = vsel %vm1449, 1, 0
        %v1770 = vsel %vm1450, 1, 0
        %v1771 = vsel %vm1451, 1, 0
        %v1772 = vsel %vm1452, 1, 0
        %v1773 = vsel %vm1453, 1, 0
        %v1774 = vsel %vm1454, 1, 0
        %v1775 = vsel %vm1455, 1, 0
        %v1776 = vsel %vm1456, 1, 0
        %v1777 = vsel %vm1457, 1, 0
        %v1778 = vsel %vm1458, 1, 0
        %v1779 = vsel %vm1459, 1, 0
        %v1780 = vsel %vm1460, 1, 0
        %v1781 = vsel %vm1461, 1, 0
        %v1782 = vsel %vm1462, 1, 0
        %v1783 = vsel %vm1463, 1, 0
        %v1784 = vsel %vm1464, 1, 0
        %v1785 = vsel %vm1465, 1, 0
        %v1786 = vsel %vm1466, 1, 0
        %v1787 = vsel %vm1467, 1, 0
        %v1788 = vsel %vm1468, 1, 0
        %v1789 = vsel %vm1469, 1, 0
        %v1790 = vsel %vm1470, 1, 0
        %v1791 = vsel %vm1471, 1, 0
        %v1792 = vsel %vm1472, 1, 0
        %v1793 = vsel %vm1473, 1, 0
        %v1794 = vsel %vm1474, 1, 0
        %v1795 = vsel %vm1475, 1, 0
        %v1796 = vsel %vm1476, 1, 0
        %v1797 = vsel %vm1477, 1, 0
        %v1798 = vsel %vm1478, 1, 0
        %v1799 = vsel %vm1479, 1, 0
        %v1800 = vsel %vm1480, 1, 0
        %v1801 = vsel %vm1481, 1, 0
        %v1802 = vsel %vm1482, 1, 0
        %v1803 = vsel %vm1483, 1, 0
        %v1804 = vsel %vm1484, 1, 0
        %v1805 = vsel %vm1485, 1, 0
        %v1806 = vsel %vm1486, 1, 0
        %v1807 = vsel %vm1487, 1, 0
        %v1808 = vsel %vm1488, 1, 0
        %v1809 = vsel %vm1489, 1, 0
        %v1810 = vsel %vm1490, 1, 0
        %v1811 = vsel %vm1491, 1, 0
        %v1812 = vsel %vm1492, 1, 0
        %v1813 = vsel %vm1493, 1, 0
        %v1814 = vsel %vm1494, 1, 0
        %v1815 = vsel %vm1495, 1, 0
        %v1816 = vsel %vm1496, 1, 0
        %v1817 = vsel %vm1497, 1, 0
        %v1818 = vsel %vm1498, 1, 0
        %v1819 = vsel %vm1499, 1, 0
        %v1820 = vsel %vm1500, 1, 0
        %v1821 = vsel %vm1501, 1, 0
        %v1822 = vsel %vm1502, 1, 0
        %v1823 = vsel %vm1503, 1, 0
        %v1824 = vsel %vm1504, 1, 0
        %v1825 = vsel %vm1505, 1, 0
        %v1826 = vsel %vm1506, 1, 0
        %v1827 = vsel %vm1507, 1, 0
        %v1828 = vsel %vm1508, 1, 0
        %v1829 = vsel %vm1509, 1, 0
        %v1830 = vsel %vm1510, 1, 0
        %v1831 = vsel %vm1511, 1, 0
        %v1832 = vsel %vm1512, 1, 0
        %v1833 = vsel %vm1513, 1, 0
        %v1834 = vsel %vm1514, 1, 0
        %v1835 = vsel %vm1515, 1, 0
        %v1836 = vsel %vm1516, 1, 0
        %v1837 = vsel %vm1517, 1, 0
        %v1838 = vsel %vm1518, 1, 0
        %v1839 = vsel %vm1519, 1, 0
        %v1840 = vsel %vm1520, 1, 0
        %v1841 = vsel %vm1521, 1, 0
        %v1842 = vsel %vm1522, 1, 0
        %v1843 = vsel %vm1523, 1, 0
        %v1844 = vsel %vm1524, 1, 0
        %v1845 = vsel %vm1525, 1, 0
        %v1846 = vsel %vm1526, 1, 0
        %v1847 = vsel %vm1527, 1, 0
        %v1848 = vsel %vm1528, 1, 0
        %v1849 = vsel %vm1529, 1, 0
        %v1850 = vsel %vm1530, 1, 0
        %v1851 = vsel %vm1531, 1, 0
        %v1852 = vsel %vm1532, 1, 0
        %v1853 = vsel %vm1533, 1, 0
        %v1854 = vsel %vm1534, 1, 0
        %v1855 = vsel %vm1535, 1, 0
        %v1856 = vsel %vm1536, 1, 0
        %v1857 = vsel %vm1537, 1, 0
        %v1858 = vsel %vm1538, 1, 0
        %v1859 = vsel %vm1539, 1, 0
        %v1860 = vsel %vm1540, 1, 0
        %v1861 = vsel %vm1541, 1, 0
        %v1862 = vsel %vm1542, 1, 0
        %v1863 = vsel %vm1543, 1, 0
        %v1864 = vsel %vm1544, 1, 0
        %v1865 = vsel %vm1545, 1, 0
        %v1866 = vsel %vm1546, 1, 0
        %v1867 = vsel %vm1547, 1, 0
        %v1868 = vsel %vm1548, 1, 0
        %v1869 = vsel %vm1549, 1, 0
        %v1870 = vsel %vm1550, 1, 0
        %v1871 = vsel %vm1551, 1, 0
        %v1872 = vsel %vm1552, 1, 0
        %v1873 = vsel %vm1553, 1, 0
        %v1874 = vsel %vm1554, 1, 0
        %v1875 = vsel %vm1555, 1, 0
        %v1876 = vsel %vm1556, 1, 0
        %v1877 = vsel %vm1557, 1, 0
        %v1878 = vsel %vm1558, 1, 0
        %v1879 = vsel %vm1559, 1, 0
        %v1880 = vsel %vm1560, 1, 0
        %v1881 = vsel %vm1561, 1, 0
        %v1882 = vsel %vm1562, 1, 0
        %v1883 = vsel %vm1563, 1, 0
        %v1884 = vsel %vm1564, 1, 0
        %v1885 = vsel %vm1565, 1, 0
        %v1886 = vsel %vm1566, 1, 0
        %v1887 = vsel %vm1567, 1, 0
        %v1888 = vsel %vm1568, 1, 0
        %v1889 = vsel %vm1569, 1, 0
        %v1890 = vsel %vm1570, 1, 0
        %v1891 = vsel %vm1571, 1, 0
        %v1892 = vsel %vm1572, 1, 0
        %v1893 = vsel %vm1573, 1, 0
        %v1894 = vsel %vm1574, 1, 0
        %v1895 = vsel %vm1575, 1, 0
        %v1896 = vsel %vm1576, 1, 0
        %v1897 = vsel %vm1577, 1, 0
        %v1898 = vsel %vm1578, 1, 0
        %v1899 = vsel %vm1579, 1, 0
        %v1900 = vsel %vm1580, 1, 0
        %v1901 = vsel %vm1581, 1, 0
        %v1902 = vsel %vm1582, 1, 0
        %v1903 = vsel %vm1583, 1, 0
        %v1904 = vsel %vm1584, 1, 0
        %v1905 = vsel %vm1585, 1, 0
        %v1906 = vsel %vm1586, 1, 0
        %v1907 = vsel %vm1587, 1, 0
        %v1908 = vsel %vm1588, 1, 0
        %v1909 = vsel %vm1589, 1, 0
        %v1910 = vsel %vm1590, 1, 0
        %v1911 = vsel %vm1591, 1, 0
        %v1912 = vsel %vm1592, 1, 0
        %v1913 = vsel %vm1593, 1, 0
        %v1914 = vsel %vm1594, 1, 0
        %v1915 = vsel %vm1595, 1, 0
        %v1916 = vsel %vm1596, 1, 0
        %v1917 = vsel %vm1597, 1, 0
        %v1918 = vsel %vm1598, 1, 0
        %v1919 = vsel %vm1599, 1, 0
        %v1920 = vsel %vm1600, 1, 0
        %v1921 = vsel %vm1601, 1, 0
        %v1922 = vsel %vm1602, 1, 0
        %v1923 = vsel %vm1603, 1, 0
        %v1924 = vsel %vm1604, 1, 0
        %v1925 = vsel %vm1605, 1, 0
        %v1926 = vsel %vm1606, 1, 0
        %v1927 = vsel %vm1607, 1, 0
        %v1928 = vsel %vm1608, 1, 0
        %v1929 = vsel %vm1609, 1, 0
        %v1930 = vsel %vm1610, 1, 0
        %v1931 = vsel %vm1611, 1, 0
        %v1932 = vsel %vm1612, 1, 0
        %v1933 = vsel %vm1613, 1, 0
        %v1934 = vsel %vm1614, 1, 0
        %v1935 = vsel %vm1615, 1, 0
        %v1936 = vsel %vm1616, 1, 0
        %v1937 = vsel %vm1617, 1, 0
        %v1938 = vsel %vm1618, 1, 0
        %v1939 = vsel %vm1619, 1, 0
        %v1940 = vsel %vm1620, 1, 0
        %v1941 = vsel %vm1621, 1, 0
        %v1942 = vsel %vm1622, 1, 0
        %v1943 = vsel %vm1623, 1, 0
        %v1944 = vsel %vm1624, 1, 0
        %v1945 = vsel %vm1625, 1, 0
        %v1946 = vsel %vm1626, 1, 0
        %v1947 = vsel %vm1627, 1, 0
        %v1948 = vsel %vm1628, 1, 0
        %v1949 = vsel %vm1629, 1, 0
        %v1950 = vsel %vm1630, 1, 0
        %v1951 = vsel %vm1631, 1, 0
        %v1952 = vsel %vm1632, 1, 0
        %v1953 = vsel %vm1633, 1, 0
        %v1954 = vsel %vm1634, 1, 0
        %v1955 = vsel %vm1635, 1, 0
        %v1956 = vsel %vm1636, 1, 0
        %v1957 = vsel %vm1637, 1, 0
        %v1958 = vsel %vm1638, 1, 0
        %v1959 = vsel %vm1639, 1, 0
        %v1960 = vsel %vm1640, 1, 0
        %v1961 = vsel %vm1641, 1, 0
        %v1962 = vsel %vm1642, 1, 0
        %v1963 = vsel %vm1643, 1, 0
        %v1964 = vsel %vm1644, 1, 0
        %v1965 = vsel %vm1645, 1, 0
        %v1966 = vsel %vm1646, 1, 0
        %v1967 = vsel %vm1647, 1, 0
        %v1968 = vsel %vm1648, 1, 0
        %v1969 = vsel %vm1649, 1, 0
        %v1970 = vsel %vm1650, 1, 0
        %v1971 = vsel %vm1651, 1, 0
        %v1972 = vsel %vm1652, 1, 0
        %v1973 = vsel %vm1653, 1, 0
        %v1974 = vsel %vm1654, 1, 0
        %v1975 = vsel %vm1655, 1, 0
        %v1976 = vsel %vm1656, 1, 0
        %v1977 = vsel %vm1657, 1, 0
        %v1978 = vsel %vm1658, 1, 0
        %v1979 = vsel %vm1659, 1, 0
        %v1980 = vsel %vm1660, 1, 0
        %v1981 = vsel %vm1661, 1, 0
        %v1982 = vsel %vm1662, 1, 0
        %v1983 = vsel %vm1663, 1, 0
        %v1984 = vsel %vm1664, 1, 0
        %v1985 = vsel %vm1665, 1, 0
        %v1986 = vsel %vm1666, 1, 0
        %v1987 = vsel %vm1667, 1, 0
        %v1988 = vsel %vm1668, 1, 0
        %v1989 = vsel %vm1669, 1, 0
        %v1990 = vsel %vm1670, 1, 0
        %v1991 = vsel %vm1671, 1, 0
        %v1992 = vsel %vm1672, 1, 0
        %v1993 = vsel %vm1673, 1, 0
        %v1994 = vsel %vm1674, 1, 0
        %v1995 = vsel %vm1675, 1, 0
        %v1996 = vsel %vm1676, 1, 0
        %v1997 = vsel %vm1677, 1, 0
        %v1998 = vsel %vm1678, 1, 0
        %v1999 = vsel %vm1679, 1, 0
        %v2000 = vsel %vm1680, 1, 0
        %v2001 = vsel %vm1681, 1, 0
        %v2002 = vsel %vm1682, 1, 0
        %v2003 = vsel %vm1683, 1, 0
        %v2004 = vsel %vm1684, 1, 0
        %v2005 = vsel %vm1685, 1, 0
        %v2006 = vsel %vm1686, 1, 0
        %v2007 = vsel %vm1687, 1, 0
        %v2008 = vsel %vm1688, 1, 0
        %v2009 = vsel %vm1689, 1, 0
        %v2010 = vsel %vm1690, 1, 0
        %v2011 = vsel %vm1691, 1, 0
        %v2012 = vsel %vm1692, 1, 0
        %v2013 = vcvt.s32.f32 %v1693
        %v2014 = vcvt.s32.f32 %v1694
        %v2015 = vcvt.s32.f32 %v1695
        %v2016 = vcvt.s32.f32 %v1696
        %v2017 = vcvt.s32.f32 %v1697
        %v2018 = vcvt.s32.f32 %v1698
        %v2019 = vcvt.s32.f32 %v1699
        %v2020 = vcvt.s32.f32 %v1700
        %v2021 = vcvt.s32.f32 %v1701
        %v2022 = vcvt.s32.f32 %v1702
        %v2023 = vcvt.s32.f32 %v1703
        %v2024 = vcvt.s32.f32 %v1704
        %v2025 = vcvt.s32.f32 %v1705
        %v2026 = vcvt.s32.f32 %v1706
        %v2027 = vcvt.s32.f32 %v1707
        %v2028 = vcvt.s32.f32 %v1708
        %v2029 = vcvt.s32.f32 %v1709
        %v2030 = vcvt.s32.f32 %v1710
        %v2031 = vcvt.s32.f32 %v1711
        %v2032 = vcvt.s32.f32 %v1712
        %v2033 = vcvt.s32.f32 %v1713
        %v2034 = vcvt.s32.f32 %v1714
        %v2035 = vcvt.s32.f32 %v1715
        %v2036 = vcvt.s32.f32 %v1716
        %v2037 = vcvt.s32.f32 %v1717
        %v2038 = vcvt.s32.f32 %v1718
        %v2039 = vcvt.s32.f32 %v1719
        %v2040 = vcvt.s32.f32 %v1720
        %v2041 = vcvt.s32.f32 %v1721
        %v2042 = vcvt.s32.f32 %v1722
        %v2043 = vcvt.s32.f32 %v1723
        %v2044 = vcvt.s32.f32 %v1724
        %v2045 = vcvt.s32.f32 %v1725
        %v2046 = vcvt.s32.f32 %v1726
        %v2047 = vcvt.s32.f32 %v1727
        %v2048 = vcvt.s32.f32 %v1728
        %v2049 = vcvt.s32.f32 %v1729
        %v2050 = vcvt.s32.f32 %v1730
        %v2051 = vcvt.s32.f32 %v1731
        %v2052 = vcvt.s32.f32 %v1732
        %v2053 = vcvt.s32.f32 %v1733
        %v2054 = vcvt.s32.f32 %v1734
        %v2055 = vcvt.s32.f32 %v1735
        %v2056 = vcvt.s32.f32 %v1736
        %v2057 = vcvt.s32.f32 %v1737
        %v2058 = vcvt.s32.f32 %v1738
        %v2059 = vcvt.s32.f32 %v1739
        %v2060 = vcvt.s32.f32 %v1740
        %v2061 = vcvt.s32.f32 %v1741
        %v2062 = vcvt.s32.f32 %v1742
        %v2063 = vcvt.s32.f32 %v1743
        %v2064 = vcvt.s32.f32 %v1744
        %v2065 = vcvt.s32.f32 %v1745
        %v2066 = vcvt.s32.f32 %v1746
        %v2067 = vcvt.s32.f32 %v1747
        %v2068 = vcvt.s32.f32 %v1748
        %v2069 = vcvt.s32.f32 %v1749
        %v2070 = vcvt.s32.f32 %v1750
        %v2071 = vcvt.s32.f32 %v1751
        %v2072 = vcvt.s32.f32 %v1752
        %v2073 = vcvt.s32.f32 %v1753
        %v2074 = vcvt.s32.f32 %v1754
        %v2075 = vcvt.s32.f32 %v1755
        %v2076 = vcvt.s32.f32 %v1756
        %v2077 = vcvt.s32.f32 %v1757
        %v2078 = vcvt.s32.f32 %v1758
        %v2079 = vcvt.s32.f32 %v1759
        %v2080 = vcvt.s32.f32 %v1760
        %v2081 = vcvt.s32.f32 %v1761
        %v2082 = vcvt.s32.f32 %v1762
        %v2083 = vcvt.s32.f32 %v1763
        %v2084 = vcvt.s32.f32 %v1764
        %v2085 = vcvt.s32.f32 %v1765
        %v2086 = vcvt.s32.f32 %v1766
        %v2087 = vcvt.s32.f32 %v1767
        %v2088 = vcvt.s32.f32 %v1768
        %v2089 = vcvt.s32.f32 %v1769
        %v2090 = vcvt.s32.f32 %v1770
        %v2091 = vcvt.s32.f32 %v1771
        %v2092 = vcvt.s32.f32 %v1772
        %v2093 = vcvt.s32.f32 %v1773
        %v2094 = vcvt.s32.f32 %v1774
        %v2095 = vcvt.s32.f32 %v1775
        %v2096 = vcvt.s32.f32 %v1776
        %v2097 = vcvt.s32.f32 %v1777
        %v2098 = vcvt.s32.f32 %v1778
        %v2099 = vcvt.s32.f32 %v1779
        %v2100 = vcvt.s32.f32 %v1780
        %v2101 = vcvt.s32.f32 %v1781
        %v2102 = vcvt.s32.f32 %v1782
        %v2103 = vcvt.s32.f32 %v1783
        %v2104 = vcvt.s32.f32 %v1784
        %v2105 = vcvt.s32.f32 %v1785
        %v2106 = vcvt.s32.f32 %v1786
        %v2107 = vcvt.s32.f32 %v1787
        %v2108 = vcvt.s32.f32 %v1788
        %v2109 = vcvt.s32.f32 %v1789
        %v2110 = vcvt.s32.f32 %v1790
        %v2111 = vcvt.s32.f32 %v1791
        %v2112 = vcvt.s32.f32 %v1792
        %v2113 = vcvt.s32.f32 %v1793
        %v2114 = vcvt.s32.f32 %v1794
        %v2115 = vcvt.s32.f32 %v1795
        %v2116 = vcvt.s32.f32 %v1796
        %v2117 = vcvt.s32.f32 %v1797
        %v2118 = vcvt.s32.f32 %v1798
        %v2119 = vcvt.s32.f32 %v1799
        %v2120 = vcvt.s32.f32 %v1800
        %v2121 = vcvt.s32.f32 %v1801
        %v2122 = vcvt.s32.f32 %v1802
        %v2123 = vcvt.s32.f32 %v1803
        %v2124 = vcvt.s32.f32 %v1804
        %v2125 = vcvt.s32.f32 %v1805
        %v2126 = vcvt.s32.f32 %v1806
        %v2127 = vcvt.s32.f32 %v1807
        %v2128 = vcvt.s32.f32 %v1808
        %v2129 = vcvt.s32.f32 %v1809
        %v2130 = vcvt.s32.f32 %v1810
        %v2131 = vcvt.s32.f32 %v1811
        %v2132 = vcvt.s32.f32 %v1812
        %v2133 = vcvt.s32.f32 %v1813
        %v2134 = vcvt.s32.f32 %v1814
        %v2135 = vcvt.s32.f32 %v1815
        %v2136 = vcvt.s32.f32 %v1816
        %v2137 = vcvt.s32.f32 %v1817
        %v2138 = vcvt.s32.f32 %v1818
        %v2139 = vcvt.s32.f32 %v1819
        %v2140 = vcvt.s32.f32 %v1820
        %v2141 = vcvt.s32.f32 %v1821
        %v2142 = vcvt.s32.f32 %v1822
        %v2143 = vcvt.s32.f32 %v1823
        %v2144 = vcvt.s32.f32 %v1824
        %v2145 = vcvt.s32.f32 %v1825
        %v2146 = vcvt.s32.f32 %v1826
        %v2147 = vcvt.s32.f32 %v1827
        %v2148 = vcvt.s32.f32 %v1828
        %v2149 = vcvt.s32.f32 %v1829
        %v2150 = vcvt.s32.f32 %v1830
        %v2151 = vcvt.s32.f32 %v1831
        %v2152 = vcvt.s32.f32 %v1832
        %v2153 = vcvt.s32.f32 %v1833
        %v2154 = vcvt.s32.f32 %v1834
        %v2155 = vcvt.s32.f32 %v1835
        %v2156 = vcvt.s32.f32 %v1836
        %v2157 = vcvt.s32.f32 %v1837
        %v2158 = vcvt.s32.f32 %v1838
        %v2159 = vcvt.s32.f32 %v1839
        %v2160 = vcvt.s32.f32 %v1840
        %v2161 = vcvt.s32.f32 %v1841
        %v2162 = vcvt.s32.f32 %v1842
        %v2163 = vcvt.s32.f32 %v1843
        %v2164 = vcvt.s32.f32 %v1844
        %v2165 = vcvt.s32.f32 %v1845
        %v2166 = vcvt.s32.f32 %v1846
        %v2167 = vcvt.s32.f32 %v1847
        %v2168 = vcvt.s32.f32 %v1848
        %v2169 = vcvt.s32.f32 %v1849
        %v2170 = vcvt.s32.f32 %v1850
        %v2171 = vcvt.s32.f32 %v1851
        %v2172 = vcvt.s32.f32 %v1852
        %v2173 = vcvt.s32.f32 %v1853
        %v2174 = vcvt.s32.f32 %v1854
        %v2175 = vcvt.s32.f32 %v1855
        %v2176 = vcvt.s32.f32 %v1856
        %v2177 = vcvt.s32.f32 %v1857
        %v2178 = vcvt.s32.f32 %v1858
        %v2179 = vcvt.s32.f32 %v1859
        %v2180 = vcvt.s32.f32 %v1860
        %v2181 = vcvt.s32.f32 %v1861
        %v2182 = vcvt.s32.f32 %v1862
        %v2183 = vcvt.s32.f32 %v1863
        %v2184 = vcvt.s32.f32 %v1864
        %v2185 = vcvt.s32.f32 %v1865
        %v2186 = vcvt.s32.f32 %v1866
        %v2187 = vcvt.s32.f32 %v1867
        %v2188 = vcvt.s32.f32 %v1868
        %v2189 = vcvt.s32.f32 %v1869
        %v2190 = vcvt.s32.f32 %v1870
        %v2191 = vcvt.s32.f32 %v1871
        %v2192 = vcvt.s32.f32 %v1872
        %v2193 = vcvt.s32.f32 %v1873
        %v2194 = vcvt.s32.f32 %v1874
        %v2195 = vcvt.s32.f32 %v1875
        %v2196 = vcvt.s32.f32 %v1876
        %v2197 = vcvt.s32.f32 %v1877
        %v2198 = vcvt.s32.f32 %v1878
        %v2199 = vcvt.s32.f32 %v1879
        %v2200 = vcvt.s32.f32 %v1880
        %v2201 = vcvt.s32.f32 %v1881
        %v2202 = vcvt.s32.f32 %v1882
        %v2203 = vcvt.s32.f32 %v1883
        %v2204 = vcvt.s32.f32 %v1884
        %v2205 = vcvt.s32.f32 %v1885
        %v2206 = vcvt.s32.f32 %v1886
        %v2207 = vcvt.s32.f32 %v1887
        %v2208 = vcvt.s32.f32 %v1888
        %v2209 = vcvt.s32.f32 %v1889
        %v2210 = vcvt.s32.f32 %v1890
        %v2211 = vcvt.s32.f32 %v1891
        %v2212 = vcvt.s32.f32 %v1892
        %v2213 = vcvt.s32.f32 %v1893
        %v2214 = vcvt.s32.f32 %v1894
        %v2215 = vcvt.s32.f32 %v1895
        %v2216 = vcvt.s32.f32 %v1896
        %v2217 = vcvt.s32.f32 %v1897
        %v2218 = vcvt.s32.f32 %v1898
        %v2219 = vcvt.s32.f32 %v1899
        %v2220 = vcvt.s32.f32 %v1900
        %v2221 = vcvt.s32.f32 %v1901
        %v2222 = vcvt.s32.f32 %v1902
        %v2223 = vcvt.s32.f32 %v1903
        %v2224 = vcvt.s32.f32 %v1904
        %v2225 = vcvt.s32.f32 %v1905
        %v2226 = vcvt.s32.f32 %v1906
        %v2227 = vcvt.s32.f32 %v1907
        %v2228 = vcvt.s32.f32 %v1908
        %v2229 = vcvt.s32.f32 %v1909
        %v2230 = vcvt.s32.f32 %v1910
        %v2231 = vcvt.s32.f32 %v1911
        %v2232 = vcvt.s32.f32 %v1912
        %v2233 = vcvt.s32.f32 %v1913
        %v2234 = vcvt.s32.f32 %v1914
        %v2235 = vcvt.s32.f32 %v1915
        %v2236 = vcvt.s32.f32 %v1916
        %v2237 = vcvt.s32.f32 %v1917
        %v2238 = vcvt.s32.f32 %v1918
        %v2239 = vcvt.s32.f32 %v1919
        %v2240 = vcvt.s32.f32 %v1920
        %v2241 = vcvt.s32.f32 %v1921
        %v2242 = vcvt.s32.f32 %v1922
        %v2243 = vcvt.s32.f32 %v1923
        %v2244 = vcvt.s32.f32 %v1924
        %v2245 = vcvt.s32.f32 %v1925
        %v2246 = vcvt.s32.f32 %v1926
        %v2247 = vcvt.s32.f32 %v1927
        %v2248 = vcvt.s32.f32 %v1928
        %v2249 = vcvt.s32.f32 %v1929
        %v2250 = vcvt.s32.f32 %v1930
        %v2251 = vcvt.s32.f32 %v1931
        %v2252 = vcvt.s32.f32 %v1932
        %v2253 = vcvt.s32.f32 %v1933
        %v2254 = vcvt.s32.f32 %v1934
        %v2255 = vcvt.s32.f32 %v1935
        %v2256 = vcvt.s32.f32 %v1936
        %v2257 = vcvt.s32.f32 %v1937
        %v2258 = vcvt.s32.f32 %v1938
        %v2259 = vcvt.s32.f32 %v1939
        %v2260 = vcvt.s32.f32 %v1940
        %v2261 = vcvt.s32.f32 %v1941
        %v2262 = vcvt.s32.f32 %v1942
        %v2263 = vcvt.s32.f32 %v1943
        %v2264 = vcvt.s32.f32 %v1944
        %v2265 = vcvt.s32.f32 %v1945
        %v2266 = vcvt.s32.f32 %v1946
        %v2267 = vcvt.s32.f32 %v1947
        %v2268 = vcvt.s32.f32 %v1948
        %v2269 = vcvt.s32.f32 %v1949
        %v2270 = vcvt.s32.f32 %v1950
        %v2271 = vcvt.s32.f32 %v1951
        %v2272 = vcvt.s32.f32 %v1952
        %v2273 = vcvt.s32.f32 %v1953
        %v2274 = vcvt.s32.f32 %v1954
        %v2275 = vcvt.s32.f32 %v1955
        %v2276 = vcvt.s32.f32 %v1956
        %v2277 = vcvt.s32.f32 %v1957
        %v2278 = vcvt.s32.f32 %v1958
        %v2279 = vcvt.s32.f32 %v1959
        %v2280 = vcvt.s32.f32 %v1960
        %v2281 = vcvt.s32.f32 %v1961
        %v2282 = vcvt.s32.f32 %v1962
        %v2283 = vcvt.s32.f32 %v1963
        %v2284 = vcvt.s32.f32 %v1964
        %v2285 = vcvt.s32.f32 %v1965
        %v2286 = vcvt.s32.f32 %v1966
        %v2287 = vcvt.s32.f32 %v1967
        %v2288 = vcvt.s32.f32 %v1968
        %v2289 = vcvt.s32.f32 %v1969
        %v2290 = vcvt.s32.f32 %v1970
        %v2291 = vcvt.s32.f32 %v1971
        %v2292 = vcvt.s32.f32 %v1972
        %v2293 = vcvt.s32.f32 %v1973
        %v2294 = vcvt.s32.f32 %v1974
        %v2295 = vcvt.s32.f32 %v1975
        %v2296 = vcvt.s32.f32 %v1976
        %v2297 = vcvt.s32.f32 %v1977
        %v2298 = vcvt.s32.f32 %v1978
        %v2299 = vcvt.s32.f32 %v1979
        %v2300 = vcvt.s32.f32 %v1980
        %v2301 = vcvt.s32.f32 %v1981
        %v2302 = vcvt.s32.f32 %v1982
        %v2303 = vcvt.s32.f32 %v1983
        %v2304 = vcvt.s32.f32 %v1984
        %v2305 = vcvt.s32.f32 %v1985
        %v2306 = vcvt.s32.f32 %v1986
        %v2307 = vcvt.s32.f32 %v1987
        %v2308 = vcvt.s32.f32 %v1988
        %v2309 = vcvt.s32.f32 %v1989
        %v2310 = vcvt.s32.f32 %v1990
        %v2311 = vcvt.s32.f32 %v1991
        %v2312 = vcvt.s32.f32 %v1992
        %v2313 = vcvt.s32.f32 %v1993
        %v2314 = vcvt.s32.f32 %v1994
        %v2315 = vcvt.s32.f32 %v1995
        %v2316 = vcvt.s32.f32 %v1996
        %v2317 = vcvt.s32.f32 %v1997
        %v2318 = vcvt.s32.f32 %v1998
        %v2319 = vcvt.s32.f32 %v1999
        %v2320 = vcvt.s32.f32 %v2000
        %v2321 = vcvt.s32.f32 %v2001
        %v2322 = vcvt.s32.f32 %v2002
        %v2323 = vcvt.s32.f32 %v2003
        %v2324 = vcvt.s32.f32 %v2004
        %v2325 = vcvt.s32.f32 %v2005
        %v2326 = vcvt.s32.f32 %v2006
        %v2327 = vcvt.s32.f32 %v2007
        %v2328 = vcvt.s32.f32 %v2008
        %v2329 = vcvt.s32.f32 %v2009
        %v2330 = vcvt.s32.f32 %v2010
        %v2331 = vcvt.s32.f32 %v2011
        %v2332 = vcvt.s32.f32 %v2012
        %s2333 = sld [smem:[#allocation2]]
        %v2334 = vstv %s2333
        %2335 = vmatprep.subr.mxu0 0.0
        %2336 = vmatpush1.msra.mxu0 %v2013
        %2337 = vmatprep.subr.mxu0 0.0
        %2338 = vmatpush1.msra.mxu0 %v2014
        %2339 = vmatprep.subr.mxu0 0.0
        %2340 = vmatpush1.msra.mxu0 %v2015
        %2341 = vmatprep.subr.mxu0 0.0
        %2342 = vmatpush1.msra.mxu0 %v2016
        %2343 = vmatprep.subr.mxu0 0.0
        %2344 = vmatpush1.msra.mxu0 %v2017
        %2345 = vmatprep.subr.mxu0 0.0
        %2346 = vmatpush1.msra.mxu0 %v2018
        %2347 = vmatprep.subr.mxu0 0.0
        %2348 = vmatpush1.msra.mxu0 %v2019
        %2349 = vmatprep.subr.mxu0 0.0
        %2350 = vmatpush1.msra.mxu0 %v2020
        %2351 = vmatprep.subr.mxu0 0.0
        %2352 = vmatpush1.msra.mxu0 %v2021
        %2353 = vmatprep.subr.mxu0 0.0
        %2354 = vmatpush1.msra.mxu0 %v2022
        %2355 = vmatprep.subr.mxu0 0.0
        %2356 = vmatpush1.msra.mxu0 %v2023
        %2357 = vmatprep.subr.mxu0 0.0
        %2358 = vmatpush1.msra.mxu0 %v2024
        %2359 = vmatprep.subr.mxu0 0.0
        %2360 = vmatpush1.msra.mxu0 %v2025
        %2361 = vmatprep.subr.mxu0 0.0
        %2362 = vmatpush1.msra.mxu0 %v2026
        %2363 = vmatprep.subr.mxu0 0.0
        %2364 = vmatpush1.msra.mxu0 %v2027
        %2365 = vmatprep.subr.mxu0 0.0
        %2366 = vmatpush1.msra.mxu0 %v2028
        %2367 = vmatprep.subr.mxu0 0.0
        %2368 = vmatpush1.msra.mxu0 %v2029
        %2369 = vmatprep.subr.mxu0 0.0
        %2370 = vmatpush1.msra.mxu0 %v2030
        %2371 = vmatprep.subr.mxu0 0.0
        %2372 = vmatpush1.msra.mxu0 %v2031
        %2373 = vmatprep.subr.mxu0 0.0
        %2374 = vmatpush1.msra.mxu0 %v2032
        %2375 = vmatprep.subr.mxu0 0.0
        %2376 = vmatpush1.msra.mxu0 %v2033
        %2377 = vmatprep.subr.mxu0 0.0
        %2378 = vmatpush1.msra.mxu0 %v2034
        %2379 = vmatprep.subr.mxu0 0.0
        %2380 = vmatpush1.msra.mxu0 %v2035
        %2381 = vmatprep.subr.mxu0 0.0
        %2382 = vmatpush1.msra.mxu0 %v2036
        %2383 = vmatprep.subr.mxu0 0.0
        %2384 = vmatpush1.msra.mxu0 %v2037
        %2385 = vmatprep.subr.mxu0 0.0
        %2386 = vmatpush1.msra.mxu0 %v2038
        %2387 = vmatprep.subr.mxu0 0.0
        %2388 = vmatpush1.msra.mxu0 %v2039
        %2389 = vmatprep.subr.mxu0 0.0
        %2390 = vmatpush1.msra.mxu0 %v2040
        %2391 = vmatprep.subr.mxu0 0.0
        %2392 = vmatpush1.msra.mxu0 %v2041
        %2393 = vmatprep.subr.mxu0 0.0
        %2394 = vmatpush1.msra.mxu0 %v2042
        %2395 = vmatprep.subr.mxu0 0.0
        %2396 = vmatpush1.msra.mxu0 %v2043
        %2397 = vmatprep.subr.mxu0 0.0
        %2398 = vmatpush1.msra.mxu0 %v2044
        %2399 = vmatprep.mubr.f32.mxu0 %v369
        %2400 = vmatmul.mubr.f32.gmra.mrb[0].mxu0 %v368
        %v2401 = vpop.f32.mrb[0].mxu0
        %v2402 = vadd.f32 %v2334, %v2401
        %v2403 = vpop.f32.mrb[0].mxu0
        %2404 = vmatprep.mubr.f32.mxu0 %v389
        %2405 = vmatmul.mubr.f32.gmra.mrb[0].mxu0 %v388
        %v2406 = vpop.f32.mrb[0].mxu0
        %v2407 = vadd.f32 %v2334, %v2406
        %v2408 = vpop.f32.mrb[0].mxu0
        %2409 = vdwg.mxu0
        %2410 = vmatprep.subr.mxu0 0.0
        %2411 = vmatpush1.msra.mxu0 %v2045
        %2412 = vmatprep.subr.mxu0 0.0
        %2413 = vmatpush1.msra.mxu0 %v2046
        %2414 = vmatprep.subr.mxu0 0.0
        %2415 = vmatpush1.msra.mxu0 %v2047
        %2416 = vmatprep.subr.mxu0 0.0
        %2417 = vmatpush1.msra.mxu0 %v2048
        %2418 = vmatprep.subr.mxu0 0.0
        %2419 = vmatpush1.msra.mxu0 %v2049
        %2420 = vmatprep.subr.mxu0 0.0
        %2421 = vmatpush1.msra.mxu0 %v2050
        %2422 = vmatprep.subr.mxu0 0.0
        %2423 = vmatpush1.msra.mxu0 %v2051
        %2424 = vmatprep.subr.mxu0 0.0
        %2425 = vmatpush1.msra.mxu0 %v2052
        %2426 = vmatprep.subr.mxu0 0.0
        %2427 = vmatpush1.msra.mxu0 %v2053
        %2428 = vmatprep.subr.mxu0 0.0
        %2429 = vmatpush1.msra.mxu0 %v2054
        %2430 = vmatprep.subr.mxu0 0.0
        %2431 = vmatpush1.msra.mxu0 %v2055
        %2432 = vmatprep.subr.mxu0 0.0
        %2433 = vmatpush1.msra.mxu0 %v2056
        %2434 = vmatprep.subr.mxu0 0.0
        %2435 = vmatpush1.msra.mxu0 %v2057
        %2436 = vmatprep.subr.mxu0 0.0
        %2437 = vmatpush1.msra.mxu0 %v2058
        %2438 = vmatprep.subr.mxu0 0.0
        %2439 = vmatpush1.msra.mxu0 %v2059
        %2440 = vmatprep.subr.mxu0 0.0
        %2441 = vmatpush1.msra.mxu0 %v2060
        %2442 = vmatprep.subr.mxu0 0.0
        %2443 = vmatpush1.msra.mxu0 %v2061
        %2444 = vmatprep.subr.mxu0 0.0
        %2445 = vmatpush1.msra.mxu0 %v2062
        %2446 = vmatprep.subr.mxu0 0.0
        %2447 = vmatpush1.msra.mxu0 %v2063
        %2448 = vmatprep.subr.mxu0 0.0
        %2449 = vmatpush1.msra.mxu0 %v2064
        %2450 = vmatprep.subr.mxu0 0.0
        %2451 = vmatpush1.msra.mxu0 %v2065
        %2452 = vmatprep.subr.mxu0 0.0
        %2453 = vmatpush1.msra.mxu0 %v2066
        %2454 = vmatprep.subr.mxu0 0.0
        %2455 = vmatpush1.msra.mxu0 %v2067
        %2456 = vmatprep.subr.mxu0 0.0
        %2457 = vmatpush1.msra.mxu0 %v2068
        %2458 = vmatprep.subr.mxu0 0.0
        %2459 = vmatpush1.msra.mxu0 %v2069
        %2460 = vmatprep.subr.mxu0 0.0
        %2461 = vmatpush1.msra.mxu0 %v2070
        %2462 = vmatprep.subr.mxu0 0.0
        %2463 = vmatpush1.msra.mxu0 %v2071
        %2464 = vmatprep.subr.mxu0 0.0
        %2465 = vmatpush1.msra.mxu0 %v2072
        %2466 = vmatprep.subr.mxu0 0.0
        %2467 = vmatpush1.msra.mxu0 %v2073
        %2468 = vmatprep.subr.mxu0 0.0
        %2469 = vmatpush1.msra.mxu0 %v2074
        %2470 = vmatprep.subr.mxu0 0.0
        %2471 = vmatpush1.msra.mxu0 %v2075
        %2472 = vmatprep.subr.mxu0 0.0
        %2473 = vmatpush1.msra.mxu0 %v2076
        %2474 = vmatprep.mubr.f32.mxu0 %v371
        %2475 = vmatmul.mubr.f32.gmra.mrb[0].mxu0 %v370
        %v2476 = vpop.f32.mrb[0].mxu0
        %v2477 = vadd.f32 %v2402, %v2476
        %v2478 = vpop.f32.mrb[0].mxu0
        %2479 = vmatprep.mubr.f32.mxu0 %v391
        %2480 = vmatmul.mubr.f32.gmra.mrb[0].mxu0 %v390
        %v2481 = vpop.f32.mrb[0].mxu0
        %v2482 = vadd.f32 %v2407, %v2481
        %v2483 = vpop.f32.mrb[0].mxu0
        %2484 = vdwg.mxu0
        %2485 = vmatprep.subr.mxu0 0.0
        %2486 = vmatpush1.msra.mxu0 %v2077
        %2487 = vmatprep.subr.mxu0 0.0
        %2488 = vmatpush1.msra.mxu0 %v2078
        %2489 = vmatprep.subr.mxu0 0.0
        %2490 = vmatpush1.msra.mxu0 %v2079
        %2491 = vmatprep.subr.mxu0 0.0
        %2492 = vmatpush1.msra.mxu0 %v2080
        %2493 = vmatprep.subr.mxu0 0.0
        %2494 = vmatpush1.msra.mxu0 %v2081
        %2495 = vmatprep.subr.mxu0 0.0
        %2496 = vmatpush1.msra.mxu0 %v2082
        %2497 = vmatprep.subr.mxu0 0.0
        %2498 = vmatpush1.msra.mxu0 %v2083
        %2499 = vmatprep.subr.mxu0 0.0
        %2500 = vmatpush1.msra.mxu0 %v2084
        %2501 = vmatprep.subr.mxu0 0.0
        %2502 = vmatpush1.msra.mxu0 %v2085
        %2503 = vmatprep.subr.mxu0 0.0
        %2504 = vmatpush1.msra.mxu0 %v2086
        %2505 = vmatprep.subr.mxu0 0.0
        %2506 = vmatpush1.msra.mxu0 %v2087
        %2507 = vmatprep.subr.mxu0 0.0
        %2508 = vmatpush1.msra.mxu0 %v2088
        %2509 = vmatprep.subr.mxu0 0.0
        %2510 = vmatpush1.msra.mxu0 %v2089
        %2511 = vmatprep.subr.mxu0 0.0
        %2512 = vmatpush1.msra.mxu0 %v2090
        %2513 = vmatprep.subr.mxu0 0.0
        %2514 = vmatpush1.msra.mxu0 %v2091
        %2515 = vmatprep.subr.mxu0 0.0
        %2516 = vmatpush1.msra.mxu0 %v2092
        %2517 = vmatprep.subr.mxu0 0.0
        %2518 = vmatpush1.msra.mxu0 %v2093
        %2519 = vmatprep.subr.mxu0 0.0
        %2520 = vmatpush1.msra.mxu0 %v2094
        %2521 = vmatprep.subr.mxu0 0.0
        %2522 = vmatpush1.msra.mxu0 %v2095
        %2523 = vmatprep.subr.mxu0 0.0
        %2524 = vmatpush1.msra.mxu0 %v2096
        %2525 = vmatprep.subr.mxu0 0.0
        %2526 = vmatpush1.msra.mxu0 %v2097
        %2527 = vmatprep.subr.mxu0 0.0
        %2528 = vmatpush1.msra.mxu0 %v2098
        %2529 = vmatprep.subr.mxu0 0.0
        %2530 = vmatpush1.msra.mxu0 %v2099
        %2531 = vmatprep.subr.mxu0 0.0
        %2532 = vmatpush1.msra.mxu0 %v2100
        %2533 = vmatprep.subr.mxu0 0.0
        %2534 = vmatpush1.msra.mxu0 %v2101
        %2535 = vmatprep.subr.mxu0 0.0
        %2536 = vmatpush1.msra.mxu0 %v2102
        %2537 = vmatprep.subr.mxu0 0.0
        %2538 = vmatpush1.msra.mxu0 %v2103
        %2539 = vmatprep.subr.mxu0 0.0
        %2540 = vmatpush1.msra.mxu0 %v2104
        %2541 = vmatprep.subr.mxu0 0.0
        %2542 = vmatpush1.msra.mxu0 %v2105
        %2543 = vmatprep.subr.mxu0 0.0
        %2544 = vmatpush1.msra.mxu0 %v2106
        %2545 = vmatprep.subr.mxu0 0.0
        %2546 = vmatpush1.msra.mxu0 %v2107
        %2547 = vmatprep.subr.mxu0 0.0
        %2548 = vmatpush1.msra.mxu0 %v2108
        %2549 = vmatprep.mubr.f32.mxu0 %v373
        %2550 = vmatmul.mubr.f32.gmra.mrb[0].mxu0 %v372
        %v2551 = vpop.f32.mrb[0].mxu0
        %v2552 = vadd.f32 %v2477, %v2551
        %v2553 = vpop.f32.mrb[0].mxu0
        %2554 = vmatprep.mubr.f32.mxu0 %v393
        %2555 = vmatmul.mubr.f32.gmra.mrb[0].mxu0 %v392
        %v2556 = vpop.f32.mrb[0].mxu0
        %v2557 = vadd.f32 %v2482, %v2556
        %v2558 = vpop.f32.mrb[0].mxu0
        %2559 = vdwg.mxu0
        %2560 = vmatprep.subr.mxu0 0.0
        %2561 = vmatpush1.msra.mxu0 %v2109
        %2562 = vmatprep.subr.mxu0 0.0
        %2563 = vmatpush1.msra.mxu0 %v2110
        %2564 = vmatprep.subr.mxu0 0.0
        %2565 = vmatpush1.msra.mxu0 %v2111
        %2566 = vmatprep.subr.mxu0 0.0
        %2567 = vmatpush1.msra.mxu0 %v2112
        %2568 = vmatprep.subr.mxu0 0.0
        %2569 = vmatpush1.msra.mxu0 %v2113
        %2570 = vmatprep.subr.mxu0 0.0
        %2571 = vmatpush1.msra.mxu0 %v2114
        %2572 = vmatprep.subr.mxu0 0.0
        %2573 = vmatpush1.msra.mxu0 %v2115
        %2574 = vmatprep.subr.mxu0 0.0
        %2575 = vmatpush1.msra.mxu0 %v2116
        %2576 = vmatprep.subr.mxu0 0.0
        %2577 = vmatpush1.msra.mxu0 %v2117
        %2578 = vmatprep.subr.mxu0 0.0
        %2579 = vmatpush1.msra.mxu0 %v2118
        %2580 = vmatprep.subr.mxu0 0.0
        %2581 = vmatpush1.msra.mxu0 %v2119
        %2582 = vmatprep.subr.mxu0 0.0
        %2583 = vmatpush1.msra.mxu0 %v2120
        %2584 = vmatprep.subr.mxu0 0.0
        %2585 = vmatpush1.msra.mxu0 %v2121
        %2586 = vmatprep.subr.mxu0 0.0
        %2587 = vmatpush1.msra.mxu0 %v2122
        %2588 = vmatprep.subr.mxu0 0.0
        %2589 = vmatpush1.msra.mxu0 %v2123
        %2590 = vmatprep.subr.mxu0 0.0
        %2591 = vmatpush1.msra.mxu0 %v2124
        %2592 = vmatprep.subr.mxu0 0.0
        %2593 = vmatpush1.msra.mxu0 %v2125
        %2594 = vmatprep.subr.mxu0 0.0
        %2595 = vmatpush1.msra.mxu0 %v2126
        %2596 = vmatprep.subr.mxu0 0.0
        %2597 = vmatpush1.msra.mxu0 %v2127
        %2598 = vmatprep.subr.mxu0 0.0
        %2599 = vmatpush1.msra.mxu0 %v2128
        %2600 = vmatprep.subr.mxu0 0.0
        %2601 = vmatpush1.msra.mxu0 %v2129
        %2602 = vmatprep.subr.mxu0 0.0
        %2603 = vmatpush1.msra.mxu0 %v2130
        %2604 = vmatprep.subr.mxu0 0.0
        %2605 = vmatpush1.msra.mxu0 %v2131
        %2606 = vmatprep.subr.mxu0 0.0
        %2607 = vmatpush1.msra.mxu0 %v2132
        %2608 = vmatprep.subr.mxu0 0.0
        %2609 = vmatpush1.msra.mxu0 %v2133
        %2610 = vmatprep.subr.mxu0 0.0
        %2611 = vmatpush1.msra.mxu0 %v2134
        %2612 = vmatprep.subr.mxu0 0.0
        %2613 = vmatpush1.msra.mxu0 %v2135
        %2614 = vmatprep.subr.mxu0 0.0
        %2615 = vmatpush1.msra.mxu0 %v2136
        %2616 = vmatprep.subr.mxu0 0.0
        %2617 = vmatpush1.msra.mxu0 %v2137
        %2618 = vmatprep.subr.mxu0 0.0
        %2619 = vmatpush1.msra.mxu0 %v2138
        %2620 = vmatprep.subr.mxu0 0.0
        %2621 = vmatpush1.msra.mxu0 %v2139
        %2622 = vmatprep.subr.mxu0 0.0
        %2623 = vmatpush1.msra.mxu0 %v2140
        %2624 = vmatprep.mubr.f32.mxu0 %v375
        %2625 = vmatmul.mubr.f32.gmra.mrb[0].mxu0 %v374
        %v2626 = vpop.f32.mrb[0].mxu0
        %v2627 = vadd.f32 %v2552, %v2626
        %v2628 = vpop.f32.mrb[0].mxu0
        %2629 = vmatprep.mubr.f32.mxu0 %v395
        %2630 = vmatmul.mubr.f32.gmra.mrb[0].mxu0 %v394
        %v2631 = vpop.f32.mrb[0].mxu0
        %v2632 = vadd.f32 %v2557, %v2631
        %v2633 = vpop.f32.mrb[0].mxu0
        %2634 = vdwg.mxu0
        %2635 = vmatprep.subr.mxu0 0.0
        %2636 = vmatpush1.msra.mxu0 %v2141
        %2637 = vmatprep.subr.mxu0 0.0
        %2638 = vmatpush1.msra.mxu0 %v2142
        %2639 = vmatprep.subr.mxu0 0.0
        %2640 = vmatpush1.msra.mxu0 %v2143
        %2641 = vmatprep.subr.mxu0 0.0
        %2642 = vmatpush1.msra.mxu0 %v2144
        %2643 = vmatprep.subr.mxu0 0.0
        %2644 = vmatpush1.msra.mxu0 %v2145
        %2645 = vmatprep.subr.mxu0 0.0
        %2646 = vmatpush1.msra.mxu0 %v2146
        %2647 = vmatprep.subr.mxu0 0.0
        %2648 = vmatpush1.msra.mxu0 %v2147
        %2649 = vmatprep.subr.mxu0 0.0
        %2650 = vmatpush1.msra.mxu0 %v2148
        %2651 = vmatprep.subr.mxu0 0.0
        %2652 = vmatpush1.msra.mxu0 %v2149
        %2653 = vmatprep.subr.mxu0 0.0
        %2654 = vmatpush1.msra.mxu0 %v2150
        %2655 = vmatprep.subr.mxu0 0.0
        %2656 = vmatpush1.msra.mxu0 %v2151
        %2657 = vmatprep.subr.mxu0 0.0
        %2658 = vmatpush1.msra.mxu0 %v2152
        %2659 = vmatprep.subr.mxu0 0.0
        %2660 = vmatpush1.msra.mxu0 %v2153
        %2661 = vmatprep.subr.mxu0 0.0
        %2662 = vmatpush1.msra.mxu0 %v2154
        %2663 = vmatprep.subr.mxu0 0.0
        %2664 = vmatpush1.msra.mxu0 %v2155
        %2665 = vmatprep.subr.mxu0 0.0
        %2666 = vmatpush1.msra.mxu0 %v2156
        %2667 = vmatprep.subr.mxu0 0.0
        %2668 = vmatpush1.msra.mxu0 %v2157
        %2669 = vmatprep.subr.mxu0 0.0
        %2670 = vmatpush1.msra.mxu0 %v2158
        %2671 = vmatprep.subr.mxu0 0.0
        %2672 = vmatpush1.msra.mxu0 %v2159
        %2673 = vmatprep.subr.mxu0 0.0
        %2674 = vmatpush1.msra.mxu0 %v2160
        %2675 = vmatprep.subr.mxu0 0.0
        %2676 = vmatpush1.msra.mxu0 %v2161
        %2677 = vmatprep.subr.mxu0 0.0
        %2678 = vmatpush1.msra.mxu0 %v2162
        %2679 = vmatprep.subr.mxu0 0.0
        %2680 = vmatpush1.msra.mxu0 %v2163
        %2681 = vmatprep.subr.mxu0 0.0
        %2682 = vmatpush1.msra.mxu0 %v2164
        %2683 = vmatprep.subr.mxu0 0.0
        %2684 = vmatpush1.msra.mxu0 %v2165
        %2685 = vmatprep.subr.mxu0 0.0
        %2686 = vmatpush1.msra.mxu0 %v2166
        %2687 = vmatprep.subr.mxu0 0.0
        %2688 = vmatpush1.msra.mxu0 %v2167
        %2689 = vmatprep.subr.mxu0 0.0
        %2690 = vmatpush1.msra.mxu0 %v2168
        %2691 = vmatprep.subr.mxu0 0.0
        %2692 = vmatpush1.msra.mxu0 %v2169
        %2693 = vmatprep.subr.mxu0 0.0
        %2694 = vmatpush1.msra.mxu0 %v2170
        %2695 = vmatprep.subr.mxu0 0.0
        %2696 = vmatpush1.msra.mxu0 %v2171
        %2697 = vmatprep.subr.mxu0 0.0
        %2698 = vmatpush1.msra.mxu0 %v2172
        %2699 = vmatprep.mubr.f32.mxu0 %v377
        %2700 = vmatmul.mubr.f32.gmra.mrb[0].mxu0 %v376
        %v2701 = vpop.f32.mrb[0].mxu0
        %v2702 = vadd.f32 %v2627, %v2701
        %v2703 = vpop.f32.mrb[0].mxu0
        %2704 = vmatprep.mubr.f32.mxu0 %v397
        %2705 = vmatmul.mubr.f32.gmra.mrb[0].mxu0 %v396
        %v2706 = vpop.f32.mrb[0].mxu0
        %v2707 = vadd.f32 %v2632, %v2706
        %v2708 = vpop.f32.mrb[0].mxu0
        %2709 = vdwg.mxu0
        %2710 = vmatprep.subr.mxu0 0.0
        %2711 = vmatpush1.msra.mxu0 %v2173
        %2712 = vmatprep.subr.mxu0 0.0
        %2713 = vmatpush1.msra.mxu0 %v2174
        %2714 = vmatprep.subr.mxu0 0.0
        %2715 = vmatpush1.msra.mxu0 %v2175
        %2716 = vmatprep.subr.mxu0 0.0
        %2717 = vmatpush1.msra.mxu0 %v2176
        %2718 = vmatprep.subr.mxu0 0.0
        %2719 = vmatpush1.msra.mxu0 %v2177
        %2720 = vmatprep.subr.mxu0 0.0
        %2721 = vmatpush1.msra.mxu0 %v2178
        %2722 = vmatprep.subr.mxu0 0.0
        %2723 = vmatpush1.msra.mxu0 %v2179
        %2724 = vmatprep.subr.mxu0 0.0
        %2725 = vmatpush1.msra.mxu0 %v2180
        %2726 = vmatprep.subr.mxu0 0.0
        %2727 = vmatpush1.msra.mxu0 %v2181
        %2728 = vmatprep.subr.mxu0 0.0
        %2729 = vmatpush1.msra.mxu0 %v2182
        %2730 = vmatprep.subr.mxu0 0.0
        %2731 = vmatpush1.msra.mxu0 %v2183
        %2732 = vmatprep.subr.mxu0 0.0
        %2733 = vmatpush1.msra.mxu0 %v2184
        %2734 = vmatprep.subr.mxu0 0.0
        %2735 = vmatpush1.msra.mxu0 %v2185
        %2736 = vmatprep.subr.mxu0 0.0
        %2737 = vmatpush1.msra.mxu0 %v2186
        %2738 = vmatprep.subr.mxu0 0.0
        %2739 = vmatpush1.msra.mxu0 %v2187
        %2740 = vmatprep.subr.mxu0 0.0
        %2741 = vmatpush1.msra.mxu0 %v2188
        %2742 = vmatprep.subr.mxu0 0.0
        %2743 = vmatpush1.msra.mxu0 %v2189
        %2744 = vmatprep.subr.mxu0 0.0
        %2745 = vmatpush1.msra.mxu0 %v2190
        %2746 = vmatprep.subr.mxu0 0.0
        %2747 = vmatpush1.msra.mxu0 %v2191
        %2748 = vmatprep.subr.mxu0 0.0
        %2749 = vmatpush1.msra.mxu0 %v2192
        %2750 = vmatprep.subr.mxu0 0.0
        %2751 = vmatpush1.msra.mxu0 %v2193
        %2752 = vmatprep.subr.mxu0 0.0
        %2753 = vmatpush1.msra.mxu0 %v2194
        %2754 = vmatprep.subr.mxu0 0.0
        %2755 = vmatpush1.msra.mxu0 %v2195
        %2756 = vmatprep.subr.mxu0 0.0
        %2757 = vmatpush1.msra.mxu0 %v2196
        %2758 = vmatprep.subr.mxu0 0.0
        %2759 = vmatpush1.msra.mxu0 %v2197
        %2760 = vmatprep.subr.mxu0 0.0
        %2761 = vmatpush1.msra.mxu0 %v2198
        %2762 = vmatprep.subr.mxu0 0.0
        %2763 = vmatpush1.msra.mxu0 %v2199
        %2764 = vmatprep.subr.mxu0 0.0
        %2765 = vmatpush1.msra.mxu0 %v2200
        %2766 = vmatprep.subr.mxu0 0.0
        %2767 = vmatpush1.msra.mxu0 %v2201
        %2768 = vmatprep.subr.mxu0 0.0
        %2769 = vmatpush1.msra.mxu0 %v2202
        %2770 = vmatprep.subr.mxu0 0.0
        %2771 = vmatpush1.msra.mxu0 %v2203
        %2772 = vmatprep.subr.mxu0 0.0
        %2773 = vmatpush1.msra.mxu0 %v2204
        %2774 = vmatprep.mubr.f32.mxu0 %v379
        %2775 = vmatmul.mubr.f32.gmra.mrb[0].mxu0 %v378
        %v2776 = vpop.f32.mrb[0].mxu0
        %v2777 = vadd.f32 %v2702, %v2776
        %v2778 = vpop.f32.mrb[0].mxu0
        %2779 = vmatprep.mubr.f32.mxu0 %v399
        %2780 = vmatmul.mubr.f32.gmra.mrb[0].mxu0 %v398
        %v2781 = vpop.f32.mrb[0].mxu0
        %v2782 = vadd.f32 %v2707, %v2781
        %v2783 = vpop.f32.mrb[0].mxu0
        %2784 = vdwg.mxu0
        %2785 = vmatprep.subr.mxu0 0.0
        %2786 = vmatpush1.msra.mxu0 %v2205
        %2787 = vmatprep.subr.mxu0 0.0
        %2788 = vmatpush1.msra.mxu0 %v2206
        %2789 = vmatprep.subr.mxu0 0.0
        %2790 = vmatpush1.msra.mxu0 %v2207
        %2791 = vmatprep.subr.mxu0 0.0
        %2792 = vmatpush1.msra.mxu0 %v2208
        %2793 = vmatprep.subr.mxu0 0.0
        %2794 = vmatpush1.msra.mxu0 %v2209
        %2795 = vmatprep.subr.mxu0 0.0
        %2796 = vmatpush1.msra.mxu0 %v2210
        %2797 = vmatprep.subr.mxu0 0.0
        %2798 = vmatpush1.msra.mxu0 %v2211
        %2799 = vmatprep.subr.mxu0 0.0
        %2800 = vmatpush1.msra.mxu0 %v2212
        %2801 = vmatprep.subr.mxu0 0.0
        %2802 = vmatpush1.msra.mxu0 %v2213
        %2803 = vmatprep.subr.mxu0 0.0
        %2804 = vmatpush1.msra.mxu0 %v2214
        %2805 = vmatprep.subr.mxu0 0.0
        %2806 = vmatpush1.msra.mxu0 %v2215
        %2807 = vmatprep.subr.mxu0 0.0
        %2808 = vmatpush1.msra.mxu0 %v2216
        %2809 = vmatprep.subr.mxu0 0.0
        %2810 = vmatpush1.msra.mxu0 %v2217
        %2811 = vmatprep.subr.mxu0 0.0
        %2812 = vmatpush1.msra.mxu0 %v2218
        %2813 = vmatprep.subr.mxu0 0.0
        %2814 = vmatpush1.msra.mxu0 %v2219
        %2815 = vmatprep.subr.mxu0 0.0
        %2816 = vmatpush1.msra.mxu0 %v2220
        %2817 = vmatprep.subr.mxu0 0.0
        %2818 = vmatpush1.msra.mxu0 %v2221
        %2819 = vmatprep.subr.mxu0 0.0
        %2820 = vmatpush1.msra.mxu0 %v2222
        %2821 = vmatprep.subr.mxu0 0.0
        %2822 = vmatpush1.msra.mxu0 %v2223
        %2823 = vmatprep.subr.mxu0 0.0
        %2824 = vmatpush1.msra.mxu0 %v2224
        %2825 = vmatprep.subr.mxu0 0.0
        %2826 = vmatpush1.msra.mxu0 %v2225
        %2827 = vmatprep.subr.mxu0 0.0
        %2828 = vmatpush1.msra.mxu0 %v2226
        %2829 = vmatprep.subr.mxu0 0.0
        %2830 = vmatpush1.msra.mxu0 %v2227
        %2831 = vmatprep.subr.mxu0 0.0
        %2832 = vmatpush1.msra.mxu0 %v2228
        %2833 = vmatprep.subr.mxu0 0.0
        %2834 = vmatpush1.msra.mxu0 %v2229
        %2835 = vmatprep.subr.mxu0 0.0
        %2836 = vmatpush1.msra.mxu0 %v2230
        %2837 = vmatprep.subr.mxu0 0.0
        %2838 = vmatpush1.msra.mxu0 %v2231
        %2839 = vmatprep.subr.mxu0 0.0
        %2840 = vmatpush1.msra.mxu0 %v2232
        %2841 = vmatprep.subr.mxu0 0.0
        %2842 = vmatpush1.msra.mxu0 %v2233
        %2843 = vmatprep.subr.mxu0 0.0
        %2844 = vmatpush1.msra.mxu0 %v2234
        %2845 = vmatprep.subr.mxu0 0.0
        %2846 = vmatpush1.msra.mxu0 %v2235
        %2847 = vmatprep.subr.mxu0 0.0
        %2848 = vmatpush1.msra.mxu0 %v2236
        %2849 = vmatprep.mubr.f32.mxu0 %v381
        %2850 = vmatmul.mubr.f32.gmra.mrb[0].mxu0 %v380
        %v2851 = vpop.f32.mrb[0].mxu0
        %v2852 = vadd.f32 %v2777, %v2851
        %v2853 = vpop.f32.mrb[0].mxu0
        %2854 = vmatprep.mubr.f32.mxu0 %v401
        %2855 = vmatmul.mubr.f32.gmra.mrb[0].mxu0 %v400
        %v2856 = vpop.f32.mrb[0].mxu0
        %v2857 = vadd.f32 %v2782, %v2856
        %v2858 = vpop.f32.mrb[0].mxu0
        %2859 = vdwg.mxu0
        %2860 = vmatprep.subr.mxu0 0.0
        %2861 = vmatpush1.msra.mxu0 %v2237
        %2862 = vmatprep.subr.mxu0 0.0
        %2863 = vmatpush1.msra.mxu0 %v2238
        %2864 = vmatprep.subr.mxu0 0.0
        %2865 = vmatpush1.msra.mxu0 %v2239
        %2866 = vmatprep.subr.mxu0 0.0
        %2867 = vmatpush1.msra.mxu0 %v2240
        %2868 = vmatprep.subr.mxu0 0.0
        %2869 = vmatpush1.msra.mxu0 %v2241
        %2870 = vmatprep.subr.mxu0 0.0
        %2871 = vmatpush1.msra.mxu0 %v2242
        %2872 = vmatprep.subr.mxu0 0.0
        %2873 = vmatpush1.msra.mxu0 %v2243
        %2874 = vmatprep.subr.mxu0 0.0
        %2875 = vmatpush1.msra.mxu0 %v2244
        %2876 = vmatprep.subr.mxu0 0.0
        %2877 = vmatpush1.msra.mxu0 %v2245
        %2878 = vmatprep.subr.mxu0 0.0
        %2879 = vmatpush1.msra.mxu0 %v2246
        %2880 = vmatprep.subr.mxu0 0.0
        %2881 = vmatpush1.msra.mxu0 %v2247
        %2882 = vmatprep.subr.mxu0 0.0
        %2883 = vmatpush1.msra.mxu0 %v2248
        %2884 = vmatprep.subr.mxu0 0.0
        %2885 = vmatpush1.msra.mxu0 %v2249
        %2886 = vmatprep.subr.mxu0 0.0
        %2887 = vmatpush1.msra.mxu0 %v2250
        %2888 = vmatprep.subr.mxu0 0.0
        %2889 = vmatpush1.msra.mxu0 %v2251
        %2890 = vmatprep.subr.mxu0 0.0
        %2891 = vmatpush1.msra.mxu0 %v2252
        %2892 = vmatprep.subr.mxu0 0.0
        %2893 = vmatpush1.msra.mxu0 %v2253
        %2894 = vmatprep.subr.mxu0 0.0
        %2895 = vmatpush1.msra.mxu0 %v2254
        %2896 = vmatprep.subr.mxu0 0.0
        %2897 = vmatpush1.msra.mxu0 %v2255
        %2898 = vmatprep.subr.mxu0 0.0
        %2899 = vmatpush1.msra.mxu0 %v2256
        %2900 = vmatprep.subr.mxu0 0.0
        %2901 = vmatpush1.msra.mxu0 %v2257
        %2902 = vmatprep.subr.mxu0 0.0
        %2903 = vmatpush1.msra.mxu0 %v2258
        %2904 = vmatprep.subr.mxu0 0.0
        %2905 = vmatpush1.msra.mxu0 %v2259
        %2906 = vmatprep.subr.mxu0 0.0
        %2907 = vmatpush1.msra.mxu0 %v2260
        %2908 = vmatprep.subr.mxu0 0.0
        %2909 = vmatpush1.msra.mxu0 %v2261
        %2910 = vmatprep.subr.mxu0 0.0
        %2911 = vmatpush1.msra.mxu0 %v2262
        %2912 = vmatprep.subr.mxu0 0.0
        %2913 = vmatpush1.msra.mxu0 %v2263
        %2914 = vmatprep.subr.mxu0 0.0
        %2915 = vmatpush1.msra.mxu0 %v2264
        %2916 = vmatprep.subr.mxu0 0.0
        %2917 = vmatpush1.msra.mxu0 %v2265
        %2918 = vmatprep.subr.mxu0 0.0
        %2919 = vmatpush1.msra.mxu0 %v2266
        %2920 = vmatprep.subr.mxu0 0.0
        %2921 = vmatpush1.msra.mxu0 %v2267
        %2922 = vmatprep.subr.mxu0 0.0
        %2923 = vmatpush1.msra.mxu0 %v2268
        %2924 = vmatprep.mubr.f32.mxu0 %v383
        %2925 = vmatmul.mubr.f32.gmra.mrb[0].mxu0 %v382
        %v2926 = vpop.f32.mrb[0].mxu0
        %v2927 = vadd.f32 %v2852, %v2926
        %v2928 = vpop.f32.mrb[0].mxu0
        %2929 = vmatprep.mubr.f32.mxu0 %v403
        %2930 = vmatmul.mubr.f32.gmra.mrb[0].mxu0 %v402
        %v2931 = vpop.f32.mrb[0].mxu0
        %v2932 = vadd.f32 %v2857, %v2931
        %v2933 = vpop.f32.mrb[0].mxu0
        %2934 = vdwg.mxu0
        %2935 = vmatprep.subr.mxu0 0.0
        %2936 = vmatpush1.msra.mxu0 %v2269
        %2937 = vmatprep.subr.mxu0 0.0
        %2938 = vmatpush1.msra.mxu0 %v2270
        %2939 = vmatprep.subr.mxu0 0.0
        %2940 = vmatpush1.msra.mxu0 %v2271
        %2941 = vmatprep.subr.mxu0 0.0
        %2942 = vmatpush1.msra.mxu0 %v2272
        %2943 = vmatprep.subr.mxu0 0.0
        %2944 = vmatpush1.msra.mxu0 %v2273
        %2945 = vmatprep.subr.mxu0 0.0
        %2946 = vmatpush1.msra.mxu0 %v2274
        %2947 = vmatprep.subr.mxu0 0.0
        %2948 = vmatpush1.msra.mxu0 %v2275
        %2949 = vmatprep.subr.mxu0 0.0
        %2950 = vmatpush1.msra.mxu0 %v2276
        %2951 = vmatprep.subr.mxu0 0.0
        %2952 = vmatpush1.msra.mxu0 %v2277
        %2953 = vmatprep.subr.mxu0 0.0
        %2954 = vmatpush1.msra.mxu0 %v2278
        %2955 = vmatprep.subr.mxu0 0.0
        %2956 = vmatpush1.msra.mxu0 %v2279
        %2957 = vmatprep.subr.mxu0 0.0
        %2958 = vmatpush1.msra.mxu0 %v2280
        %2959 = vmatprep.subr.mxu0 0.0
        %2960 = vmatpush1.msra.mxu0 %v2281
        %2961 = vmatprep.subr.mxu0 0.0
        %2962 = vmatpush1.msra.mxu0 %v2282
        %2963 = vmatprep.subr.mxu0 0.0
        %2964 = vmatpush1.msra.mxu0 %v2283
        %2965 = vmatprep.subr.mxu0 0.0
        %2966 = vmatpush1.msra.mxu0 %v2284
        %2967 = vmatprep.subr.mxu0 0.0
        %2968 = vmatpush1.msra.mxu0 %v2285
        %2969 = vmatprep.subr.mxu0 0.0
        %2970 = vmatpush1.msra.mxu0 %v2286
        %2971 = vmatprep.subr.mxu0 0.0
        %2972 = vmatpush1.msra.mxu0 %v2287
        %2973 = vmatprep.subr.mxu0 0.0
        %2974 = vmatpush1.msra.mxu0 %v2288
        %2975 = vmatprep.subr.mxu0 0.0
        %2976 = vmatpush1.msra.mxu0 %v2289
        %2977 = vmatprep.subr.mxu0 0.0
        %2978 = vmatpush1.msra.mxu0 %v2290
        %2979 = vmatprep.subr.mxu0 0.0
        %2980 = vmatpush1.msra.mxu0 %v2291
        %2981 = vmatprep.subr.mxu0 0.0
        %2982 = vmatpush1.msra.mxu0 %v2292
        %2983 = vmatprep.subr.mxu0 0.0
        %2984 = vmatpush1.msra.mxu0 %v2293
        %2985 = vmatprep.subr.mxu0 0.0
        %2986 = vmatpush1.msra.mxu0 %v2294
        %2987 = vmatprep.subr.mxu0 0.0
        %2988 = vmatpush1.msra.mxu0 %v2295
        %2989 = vmatprep.subr.mxu0 0.0
        %2990 = vmatpush1.msra.mxu0 %v2296
        %2991 = vmatprep.subr.mxu0 0.0
        %2992 = vmatpush1.msra.mxu0 %v2297
        %2993 = vmatprep.subr.mxu0 0.0
        %2994 = vmatpush1.msra.mxu0 %v2298
        %2995 = vmatprep.subr.mxu0 0.0
        %2996 = vmatpush1.msra.mxu0 %v2299
        %2997 = vmatprep.subr.mxu0 0.0
        %2998 = vmatpush1.msra.mxu0 %v2300
        %2999 = vmatprep.mubr.f32.mxu0 %v385
        %3000 = vmatmul.mubr.f32.gmra.mrb[0].mxu0 %v384
        %v3001 = vpop.f32.mrb[0].mxu0
        %v3002 = vadd.f32 %v2927, %v3001
        %v3003 = vpop.f32.mrb[0].mxu0
        %3004 = vmatprep.mubr.f32.mxu0 %v405
        %3005 = vmatmul.mubr.f32.gmra.mrb[0].mxu0 %v404
        %v3006 = vpop.f32.mrb[0].mxu0
        %v3007 = vadd.f32 %v2932, %v3006
        %v3008 = vpop.f32.mrb[0].mxu0
        %3009 = vdwg.mxu0
        %3010 = vmatprep.subr.mxu0 0.0
        %3011 = vmatpush1.msra.mxu0 %v2301
        %3012 = vmatprep.subr.mxu0 0.0
        %3013 = vmatpush1.msra.mxu0 %v2302
        %3014 = vmatprep.subr.mxu0 0.0
        %3015 = vmatpush1.msra.mxu0 %v2303
        %3016 = vmatprep.subr.mxu0 0.0
        %3017 = vmatpush1.msra.mxu0 %v2304
        %3018 = vmatprep.subr.mxu0 0.0
        %3019 = vmatpush1.msra.mxu0 %v2305
        %3020 = vmatprep.subr.mxu0 0.0
        %3021 = vmatpush1.msra.mxu0 %v2306
        %3022 = vmatprep.subr.mxu0 0.0
        %3023 = vmatpush1.msra.mxu0 %v2307
        %3024 = vmatprep.subr.mxu0 0.0
        %3025 = vmatpush1.msra.mxu0 %v2308
        %3026 = vmatprep.subr.mxu0 0.0
        %3027 = vmatpush1.msra.mxu0 %v2309
        %3028 = vmatprep.subr.mxu0 0.0
        %3029 = vmatpush1.msra.mxu0 %v2310
        %3030 = vmatprep.subr.mxu0 0.0
        %3031 = vmatpush1.msra.mxu0 %v2311
        %3032 = vmatprep.subr.mxu0 0.0
        %3033 = vmatpush1.msra.mxu0 %v2312
        %3034 = vmatprep.subr.mxu0 0.0
        %3035 = vmatpush1.msra.mxu0 %v2313
        %3036 = vmatprep.subr.mxu0 0.0
        %3037 = vmatpush1.msra.mxu0 %v2314
        %3038 = vmatprep.subr.mxu0 0.0
        %3039 = vmatpush1.msra.mxu0 %v2315
        %3040 = vmatprep.subr.mxu0 0.0
        %3041 = vmatpush1.msra.mxu0 %v2316
        %3042 = vmatprep.subr.mxu0 0.0
        %3043 = vmatpush1.msra.mxu0 %v2317
        %3044 = vmatprep.subr.mxu0 0.0
        %3045 = vmatpush1.msra.mxu0 %v2318
        %3046 = vmatprep.subr.mxu0 0.0
        %3047 = vmatpush1.msra.mxu0 %v2319
        %3048 = vmatprep.subr.mxu0 0.0
        %3049 = vmatpush1.msra.mxu0 %v2320
        %3050 = vmatprep.subr.mxu0 0.0
        %3051 = vmatpush1.msra.mxu0 %v2321
        %3052 = vmatprep.subr.mxu0 0.0
        %3053 = vmatpush1.msra.mxu0 %v2322
        %3054 = vmatprep.subr.mxu0 0.0
        %3055 = vmatpush1.msra.mxu0 %v2323
        %3056 = vmatprep.subr.mxu0 0.0
        %3057 = vmatpush1.msra.mxu0 %v2324
        %3058 = vmatprep.subr.mxu0 0.0
        %3059 = vmatpush1.msra.mxu0 %v2325
        %3060 = vmatprep.subr.mxu0 0.0
        %3061 = vmatpush1.msra.mxu0 %v2326
        %3062 = vmatprep.subr.mxu0 0.0
        %3063 = vmatpush1.msra.mxu0 %v2327
        %3064 = vmatprep.subr.mxu0 0.0
        %3065 = vmatpush1.msra.mxu0 %v2328
        %3066 = vmatprep.subr.mxu0 0.0
        %3067 = vmatpush1.msra.mxu0 %v2329
        %3068 = vmatprep.subr.mxu0 0.0
        %3069 = vmatpush1.msra.mxu0 %v2330
        %3070 = vmatprep.subr.mxu0 0.0
        %3071 = vmatpush1.msra.mxu0 %v2331
        %3072 = vmatprep.subr.mxu0 0.0
        %3073 = vmatpush1.msra.mxu0 %v2332
        %3074 = vmatprep.mubr.f32.mxu0 %v387
        %3075 = vmatmul.mubr.f32.gmra.mrb[0].mxu0 %v386
        %v3076 = vpop.f32.mrb[0].mxu0
        %v3077 = vadd.f32 %v3002, %v3076
        %v3078 = vpop.f32.mrb[0].mxu0
        %3079 = vmatprep.mubr.f32.mxu0 %v407
        %3080 = vmatmul.mubr.f32.gmra.mrb[0].mxu0 %v406
        %v3081 = vpop.f32.mrb[0].mxu0
        %v3082 = vadd.f32 %v3007, %v3081
        %v3083 = vpop.f32.mrb[0].mxu0
        %3084 = vdwg.mxu0
        %v3085 = vmul.f32 %v3077, 0.5
        %v3086 = vmul.f32 %v3082, 0.5
        %v3087 = vtanh.pop %v3085
        %v3088 = vtanh.pop %v3086
        %v3089 = vadd.f32 %v3087, 1.0
        %v3090 = vadd.f32 %v3088, 1.0
        %v3091 = vmul.f32 %v3089, 0.5
        %v3092 = vmul.f32 %v3090, 0.5
        %3093 = vst [vmem:[%s210] sm:$0xff] %v3091
        %3094 = vst [vmem:[%s210 + $0x8] sm:$0xff] %v3092
        %s3095 = sand.u32 %s98, 1
        %s3096 = scalar_lea.sflag [#allocation5], %s3095
        %s3097 = sand.u32 %s98, 1
        %s3098 = smul.addr %s3097, 16
        %s3099 = scalar_lea.vmem [#allocation8], %s3098
        // Predicated region
        $region41: #{tpu_custom_call.1} parent=31 // pred_check
          %p3100 = pneg %p108
        $region42: #{tpu_custom_call.1} parent=31 // pred_check_branch
          %3102 = sbr.rel (%p3100) target = $region44
        $region43: #{tpu_custom_call.1} parent=31 // pred_region
          %s3103 = smul.u32 2, %s22
          %s3104 = ssub.s32 3, %s3103
          %p3105 = scmp.lt.s32.totalorder %s3104, 2
          %s3106 = scalar_select %p3105, %s3104, 2
          %s3107 = smul.u32 128, %s3106
          %s3109 = ssub.s32 256, %s3107
          %3110 = vsyncadd %s3096, %s3109
          %p3111 = scmp.ne.s32.totalorder 0, %s3107
          %s3112 = smul.addr %s3103, 128
          %s3113 = scalar_lea.hbm %s3, %s3112
          %s3114 = smul.u32 8, %s3106
          %s3115 = sshll.u32 %s3099, 4
          %s3116 = int_to_ptr.vmem [resolvable:$true] %s3115
          %s3117 = sshll.u32 %s3114, 4
          %3121 = dma.vmem_to_hbm [thread:$0]  (%p3111), %s3116, %s3117, %s3113, %s3096, 128, 128, 8
        $region44: #{tpu_custom_call.1} parent=31 // pred_fallthru
          _
      $region32: #{tpu_custom_call.1} parent=5 // pred_fallthru
        _
      %p3122 = scmp.le.s32.totalorder 2, %s17
      // Predicated region
      $region45: #{tpu_custom_call.1} parent=5 // pred_check
        %p3123 = pneg %p3122
      $region46: #{tpu_custom_call.1} parent=5 // pred_check_branch
        %3125 = sbr.rel (%p3123) target = $region48
      $region47: #{tpu_custom_call.1} parent=5 // pred_region
        %s3126 = ssub.s32 %s17, 2
        // Predicated region
        $region49: #{tpu_custom_call.1} parent=47 // pred_check
          %p3127 = pneg %p114
        $region50: #{tpu_custom_call.1} parent=47 // pred_check_branch
          %3129 = sbr.rel (%p3127) target = $region52
        $region51: #{tpu_custom_call.1} parent=47 // pred_region
          %s3130 = sand.u32 %s99, 1
          %s3131 = scalar_lea.sflag [#allocation5], %s3130
          %s3132 = sand.u32 %s99, 1
          %s3133 = smul.addr %s3132, 16
          %s3134 = scalar_lea.vmem [#allocation8], %s3133
          %3135 = dma.done %s3131, 256
        $region52: #{tpu_custom_call.1} parent=47 // pred_fallthru
          _
      $region48: #{tpu_custom_call.1} parent=5 // pred_fallthru
        _
    $region6: #{tpu_custom_call.1} parent=1 // loop_footer
      %s21 = sadd.s32 1, %s17
    $region7: #{tpu_custom_call.1} parent=1 // loop_footer_branch
      %16 = sbr.rel target = $region3
    $region8: #{tpu_custom_call.1} parent=1 // loop_exit
      _
    %3136 = vsyncpa [#allocation4], 1
    %s3137 = scalar_lea.sflag [#allocation4], 1
    %3138 = vsyncpa %s3137, 1
    %3139 = vsyncpa [#allocation7], 1
    %3140 = vsyncpa [#allocation5], 1
    %s3141 = scalar_lea.sflag [#allocation5], 1
    %3142 = vsyncpa %s3141, 1

</llo_original>
